<compile_context>
chip_gen: v7x
topology: tpu7x:2x2x1
jax: 0.10.0
libtpu: 0.0.40
codegen_flags: <defaults>
</compile_context>

<pallas_src>
import functools
import math

import numpy as np
import jax
import jax.numpy as jnp
from jax import lax
from jax.experimental import pallas as pl
from jax.experimental.pallas import tpu as pltpu

BN_EPS = 1e-5
LANE = 128


def _round_up(x, m):
    return (x + m - 1) // m * m


# ----------------------------------------------------------------------------
# DCT filter bank (faithful port of dct_filters with groups=1, expand_dim=0)
# ----------------------------------------------------------------------------
def dct_filters_np(k=3, level=None, DC=True, l1_norm=True):
    if level is None:
        nf = k ** 2 - int(not DC)
    elif level <= k:
        nf = level * (level + 1) // 2 - int(not DC)
    else:
        r = 2 * k - 1 - level
        nf = k ** 2 - r * (r + 1) // 2 - int(not DC)
    filter_bank = np.zeros((nf, k, k), dtype=np.float32)
    m = 0
    for i in range(k):
        for j in range(k):
            if (not DC and i == 0 and j == 0) or (level is not None and i + j >= level):
                continue
            for x in range(k):
                for y in range(k):
                    filter_bank[m, x, y] = (
                        math.cos(math.pi * (x + 0.5) * i / k)
                        * math.cos(math.pi * (y + 0.5) * j / k)
                    )
            if l1_norm:
                filter_bank[m, :, :] /= np.sum(np.abs(filter_bank[m, :, :]))
            else:
                ai = 1.0 if i > 0 else 1.0 / math.sqrt(2.0)
                aj = 1.0 if j > 0 else 1.0 / math.sqrt(2.0)
                filter_bank[m, :, :] *= 2.0 / k * ai * aj
            m += 1
    # groups=1, expand_dim=0  ->  shape (1, nf, k, k)
    return filter_bank[None, ...]


# ----------------------------------------------------------------------------
# Fused Pallas kernel: 1x1 -> 3x3 (9 accumulating matmuls) -> 1x1 + residual
# ----------------------------------------------------------------------------
def _fused_bottleneck_kernel(x_ref, w1_ref, b1_ref, f2_ref, b2_ref,
                             w3_ref, b3_ref, ml_ref, mr_ref,
                             o_ref, h1s_ref, *, H, W, guard):
    HW = H * W
    Wp = w1_ref.shape[1]

    # ---- stage 1: 1x1 conv (BN1 scale folded into w1) + shift + ReLU ----
    h1 = jnp.dot(x_ref[0].astype(jnp.bfloat16), w1_ref[...],
                 preferred_element_type=jnp.float32)
    h1 = jnp.maximum(h1 + b1_ref[...], 0.0)

    # Zero ONLY the guard bands (row halo of the 3x3 conv); the interior is
    # fully overwritten below.  Kept per grid step (batch axis is "parallel").
    zb = jnp.zeros((guard, Wp), h1s_ref.dtype)
    for c in range(3):
        h1s_ref[c, :guard, :] = zb
        h1s_ref[c, guard + HW:, :] = zb

    # Center (kw=1) copy of h1, bf16, in flattened-row guarded layout.
    h1s_ref[1, guard:guard + HW, :] = h1.astype(jnp.bfloat16)
    # kw=0 / kw=2 pre-shifted + column-masked copies (built once; the 9 tap
    # reads below are then all sublane-aligned and need no per-tap masks).
    left = ml_ref[...] * h1s_ref[1, guard - 1:guard - 1 + HW, :]
    right = mr_ref[...] * h1s_ref[1, guard + 1:guard + 1 + HW, :]
    h1s_ref[0, guard:guard + HW, :] = left.astype(jnp.bfloat16)
    h1s_ref[2, guard:guard + HW, :] = right.astype(jnp.bfloat16)

    # ---- stage 2: 3x3 conv = 9 accumulating MXU matmuls (no im2col buffer).
    # Row (kh) boundaries come from the zero guard bands; column (kw)
    # boundaries are already baked into the shifted/masked copies.
    acc = jnp.zeros((HW, Wp), jnp.float32)
    for kh in range(3):
        off = guard + (kh - 1) * W
        for kw in range(3):
            t = kh * 3 + kw
            acc = acc + jnp.dot(h1s_ref[kw, off:off + HW, :], f2_ref[t],
                                preferred_element_type=jnp.float32)
    h2 = jnp.maximum(acc + b2_ref[...], 0.0).astype(jnp.bfloat16)

    # ---- stage 3: 1x1 conv + shift + residual add + ReLU ----
    y = jnp.dot(h2, w3_ref[...], preferred_element_type=jnp.float32)
    o_ref[0] = jnp.maximum(y + b3_ref[...] + x_ref[0], 0.0).astype(o_ref.dtype)


# ----------------------------------------------------------------------------
# Parameters / BN folding
# ----------------------------------------------------------------------------
def bn_scale_shift(gamma, beta, mean, var):
    scale = gamma / jnp.sqrt(var + BN_EPS)
    shift = beta - mean * scale
    return scale, shift


def init_params(key, inplanes, planes, base_width=64, groups=1):
    width = int(planes * (base_width / 64.0)) * groups
    out_ch = planes * 4
    ks = jax.random.split(key, 8)

    def bn_params(k, c):
        k1, k2, k3, k4 = jax.random.split(k, 4)
        gamma = 1.0 + 0.1 * jax.random.normal(k1, (c,), jnp.float32)
        beta = 0.05 * jax.random.normal(k2, (c,), jnp.float32)
        mean = 0.1 * jax.random.normal(k3, (c,), jnp.float32)
        var = 0.5 + 0.5 * jax.random.uniform(k4, (c,), jnp.float32)
        return gamma, beta, mean, var

    # conv1: 1x1 (inplanes -> width), stored as (inplanes, width) matmul weight
    w1 = 0.1 * jax.random.normal(ks[0], (inplanes, width), jnp.float32)
    # Harm2d conv2 (use_bn=False): weight (no=width, ni=width, nf=9, 1, 1)
    harm_w = 0.1 * jax.random.normal(ks[1], (width, width, 9, 1, 1), jnp.float32)
    dct = jnp.asarray(dct_filters_np(k=3, level=None, DC=True, l1_norm=True))  # (1, 9, 3, 3)
    # conv3: 1x1 (width -> out_ch), stored as (width, out_ch)
    w3 = 0.1 * jax.random.normal(ks[2], (width, out_ch), jnp.float32)

    return dict(
        w1=w1, harm_w=harm_w, dct=dct, w3=w3,
        bn1=bn_params(ks[3], width),
        bn2=bn_params(ks[4], width),
        bn3=bn_params(ks[5], out_ch),
    )


# ----------------------------------------------------------------------------
# One-time preprocessing (hoisted out of the per-call path)
# ----------------------------------------------------------------------------
def prepare_params(params, H, W):
    """BN folding, DCT filter reconstruction, channel padding, bf16 casts and
    column masks — done once at weight-load time."""
    HW = H * W
    assert HW % 8 == 0, "H*W must be sublane-aligned"  # TODO(synk): pad spatial otherwise
    Cin, width = params["w1"].shape
    out_ch = params["w3"].shape[1]
    assert Cin == out_ch, "downsample=None requires inplanes == planes * expansion"

    Cp = _round_up(Cin, LANE)     # padded in/out channels (identical: residual add)
    Wp = _round_up(width, LANE)   # padded bottleneck width
    # Guard rows: >= W (row halo of the 3x3 conv) and 16-aligned so the bf16
    # (packed-sublane) halo scratch stores / tap reads stay aligned.
    guard = max(16, _round_up(W, 16))

    # BN folding: bn(conv(x)) = conv_with_scaled_weight(x) + shift
    s1, b1 = bn_scale_shift(*params["bn1"])
    s2, b2 = bn_scale_shift(*params["bn2"])
    s3, b3 = bn_scale_shift(*params["bn3"])

    # Harm2d filter reconstruction: filt = sum(weight * dct, dim=2)
    filt_oihw = jnp.sum(params["harm_w"] * params["dct"].reshape(1, 1, 9, 3, 3),
                        axis=2)                                   # (no, ni, 3, 3)
    filt_hwio = jnp.transpose(filt_oihw, (2, 3, 1, 0))            # (3, 3, ni, no)

    w1f = params["w1"] * s1[None, :]
    f2f = filt_hwio * s2[None, None, None, :]
    w3f = params["w3"] * s3[None, :]

    # Pad to lane-dense channel sizes; matmul operands in bf16.
    w1p = jnp.zeros((Cp, Wp), jnp.float32).at[:Cin, :width].set(w1f).astype(jnp.bfloat16)
    f2p = (jnp.zeros((3, 3, Wp, Wp), jnp.float32)
           .at[:, :, :width, :width].set(f2f)
           .reshape(9, Wp, Wp).astype(jnp.bfloat16))              # tap-major: t = kh*3+kw
    w3p = jnp.zeros((Wp, Cp), jnp.float32).at[:width, :out_ch].set(w3f).astype(jnp.bfloat16)
    b1p = jnp.zeros((1, Wp), jnp.float32).at[0, :width].set(b1)
    b2p = jnp.zeros((1, Wp), jnp.float32).at[0, :width].set(b2)
    b3p = jnp.zeros((1, Cp), jnp.float32).at[0, :out_ch].set(b3)

    # Column-boundary masks for the kw = -1 / +1 taps of the 3x3 conv.
    j = np.arange(HW, dtype=np.int32) % W
    mask_l = jnp.asarray((j >= 1).astype(np.float32).reshape(HW, 1))
    mask_r = jnp.asarray((j <= W - 2).astype(np.float32).reshape(HW, 1))

    return dict(w1p=w1p, b1p=b1p, f2p=f2p, b2p=b2p, w3p=w3p, b3p=b3p,
                mask_l=mask_l, mask_r=mask_r,
                H=H, W=W, Cin=Cin, out_ch=out_ch, Cp=Cp, Wp=Wp, guard=guard)


# ----------------------------------------------------------------------------
# Forward (jitted per-call path)
# ----------------------------------------------------------------------------
@functools.partial(jax.jit,
                   static_argnames=("H", "W", "Cin", "out_ch", "Cp", "Wp", "guard"))
def _forward_impl(x_nchw, w1p, b1p, f2p, b2p, w3p, b3p, ml, mr, *,
                  H, W, Cin, out_ch, Cp, Wp, guard):
    N = x_nchw.shape[0]
    HW = H * W

    x = jnp.transpose(x_nchw, (0, 2, 3, 1)).astype(jnp.float32).reshape(N, HW, Cin)
    xp = jnp.pad(x, ((0, 0), (0, 0), (0, Cp - Cin)))
    # TODO(synk): when chaining blocks, keep the padded (N, HW, Cp) NHWC layout
    # (and a bf16 output) between blocks instead of re-padding / transposing
    # back to NCHW on every call.

    kernel = functools.partial(_fused_bottleneck_kernel, H=H, W=W, guard=guard)

    flops = 2 * N * HW * (Cp * Wp + 9 * Wp * Wp + Wp * Cp)
    bytes_accessed = (2 * N * HW * Cp * 4
                      + (Cp * Wp + 9 * Wp * Wp + Wp * Cp) * 2
                      + (2 * Wp + Cp) * 4 + 2 * HW * 4)

    vmem_bytes = (4 * HW * Cp * 4                               # x + out blocks, double-buffered
                  + 2 * (Cp * Wp + 9 * Wp * Wp + Wp * Cp) * 2   # weights (bf16, double-buffered)
                  + 3 * (HW + 2 * guard) * Wp * 2               # h1 halo scratch (bf16)
                  + 8 * 1024 * 1024)                            # temporaries / headroom
    vmem_limit = int(min(100 * 1024 * 1024, max(vmem_bytes, 32 * 1024 * 1024)))

    out = pl.pallas_call(
        kernel,
        out_shape=jax.ShapeDtypeStruct((N, HW, Cp), jnp.float32),
        grid=(N,),
        # TODO(synk): add the H-strip grid axis here for ResNet-scale H*W
        # (grid=(N, H//strip), 1-row halo with stage-1 recompute).
        in_specs=[
            pl.BlockSpec((1, HW, Cp), lambda b: (b, 0, 0)),      # x (f32, residual; aliased w/ out)
            # Grid-invariant operands below.  TODO(synk): pipeline_mode=
            # pl.Buffered(1) to drop their second pipeline buffer (v7x headroom).
            pl.BlockSpec((Cp, Wp), lambda b: (0, 0)),            # w1 (bf16, BN1 folded)
            pl.BlockSpec((1, Wp), lambda b: (0, 0)),             # bn1 shift
            pl.BlockSpec((9, Wp, Wp), lambda b: (0, 0, 0)),      # 3x3 filter taps (bf16, BN2 folded)
            pl.BlockSpec((1, Wp), lambda b: (0, 0)),             # bn2 shift
            pl.BlockSpec((Wp, Cp), lambda b: (0, 0)),            # w3 (bf16, BN3 folded)
            pl.BlockSpec((1, Cp), lambda b: (0, 0)),             # bn3 shift
            pl.BlockSpec((HW, 1), lambda b: (0, 0)),             # left-column mask
            pl.BlockSpec((HW, 1), lambda b: (0, 0)),             # right-column mask
        ],
        out_specs=pl.BlockSpec((1, HW, Cp), lambda b: (b, 0, 0)),
        scratch_shapes=[
            pltpu.VMEM((3, HW + 2 * guard, Wp), jnp.bfloat16),   # kw-shifted h1 halo copies
        ],
        input_output_aliases={0: 0},     # each x block is fully read before its writeback
        cost_estimate=pl.CostEstimate(flops=flops, transcendentals=0,
                                      bytes_accessed=bytes_accessed),
        compiler_params=pltpu.CompilerParams(
            dimension_semantics=("parallel",),
            vmem_limit_bytes=vmem_limit),
    )(xp, w1p, b1p, f2p, b2p, w3p, b3p, ml, mr)

    out = out[:, :, :out_ch].reshape(N, H, W, out_ch)
    return jnp.transpose(out, (0, 3, 1, 2))                      # NHWC -> NCHW


def bottleneck_forward(x_nchw, prepped):
    """Fused Pallas forward. Input/output are NCHW to match the PyTorch module."""
    return _forward_impl(
        x_nchw, prepped["w1p"], prepped["b1p"], prepped["f2p"], prepped["b2p"],
        prepped["w3p"], prepped["b3p"], prepped["mask_l"], prepped["mask_r"],
        H=prepped["H"], W=prepped["W"], Cin=prepped["Cin"],
        out_ch=prepped["out_ch"], Cp=prepped["Cp"], Wp=prepped["Wp"],
        guard=prepped["guard"])


# ----------------------------------------------------------------------------
# Pure-JAX reference (mirrors the kernel's bf16-matmul / f32-epilogue numerics)
# ----------------------------------------------------------------------------
def bottleneck_reference(x_nchw, params):
    x = jnp.transpose(x_nchw, (0, 2, 3, 1)).astype(jnp.float32)

    s1, b1 = bn_scale_shift(*params["bn1"])
    s2, b2 = bn_scale_shift(*params["bn2"])
    s3, b3 = bn_scale_shift(*params["bn3"])

    w1f = (params["w1"] * s1[None, :]).astype(jnp.bfloat16)
    h1 = jnp.einsum("nhwc,cd->nhwd", x.astype(jnp.bfloat16), w1f,
                    preferred_element_type=jnp.float32)
    h1 = jax.nn.relu(h1 + b1)

    filt_oihw = jnp.sum(params["harm_w"] * params["dct"].reshape(1, 1, 9, 3, 3), axis=2)
    filt_hwio = jnp.transpose(filt_oihw, (2, 3, 1, 0))
    f2f = (filt_hwio * s2[None, None, None, :]).astype(jnp.bfloat16)
    h2 = lax.conv_general_dilated(
        h1.astype(jnp.bfloat16), f2f, window_strides=(1, 1), padding="SAME",
        dimension_numbers=("NHWC", "HWIO", "NHWC"),
        preferred_element_type=jnp.float32)
    h2 = jax.nn.relu(h2 + b2)

    w3f = (params["w3"] * s3[None, :]).astype(jnp.bfloat16)
    y = jnp.einsum("nhwc,cd->nhwd", h2.astype(jnp.bfloat16), w3f,
                   preferred_element_type=jnp.float32)
    y = jax.nn.relu(y + b3 + x)
    return jnp.transpose(y, (0, 3, 1, 2))


# ----------------------------------------------------------------------------
if __name__ == "__main__":
    key = jax.random.PRNGKey(0)
    kx, kp = jax.random.split(key)

    # Bottleneck(inplanes=16, planes=4): width=4, out channels = 4*4 = 16;
    # downsample=None requires inplanes == planes * expansion.
    N, inplanes, planes, H, W = 2, 16, 4, 16, 16
    x = jax.random.normal(kx, (N, inplanes, H, W), jnp.float32)   # NCHW like PyTorch
    params = init_params(kp, inplanes, planes)
    prepped = prepare_params(params, H, W)

    out = jax.block_until_ready(bottleneck_forward(x, prepped))
    ref = jax.block_until_ready(bottleneck_reference(x, params))

    assert out.shape == (N, planes * 4, H, W), out.shape
    np.testing.assert_allclose(np.asarray(out), np.asarray(ref), rtol=2e-2, atol=2e-2)
    print("KERNEL_OK")
</pallas_src>

<mosaic_0001>
module attributes {stable_mosaic.version = 11 : i64} {
  func.func @_fused_bottleneck_kernel(%arg0: i32, %arg1: memref<1x256x128xf32, #tpu.memory_space<vmem>>, %arg2: memref<128x128xbf16, #tpu.memory_space<vmem>>, %arg3: memref<1x128xf32, #tpu.memory_space<vmem>>, %arg4: memref<9x128x128xbf16, #tpu.memory_space<vmem>>, %arg5: memref<1x128xf32, #tpu.memory_space<vmem>>, %arg6: memref<128x128xbf16, #tpu.memory_space<vmem>>, %arg7: memref<1x128xf32, #tpu.memory_space<vmem>>, %arg8: memref<256x1xf32, #tpu.memory_space<vmem>>, %arg9: memref<256x1xf32, #tpu.memory_space<vmem>>, %arg10: memref<1x256x128xf32, #tpu.memory_space<vmem>>, %arg11: memref<3x288x128xbf16, #tpu.memory_space<vmem>>) attributes {dimension_semantics = [#tpu.dimension_semantics<parallel>], iteration_bounds = array<i64: 2>, scalar_prefetch = 0 : i64, scratch_operands = 1 : i64, tpu.core_type = #tpu.core_type<tc>, window_params = [{transform_indices = @transform_0, window_bounds = array<i64: 1, 256, 128>}, {pipeline_mode = #tpu.pipeline_mode<synchronous>, transform_indices = @transform_1, window_bounds = array<i64: 128, 128>}, {pipeline_mode = #tpu.pipeline_mode<synchronous>, transform_indices = @transform_2, window_bounds = array<i64: 1, 128>}, {pipeline_mode = #tpu.pipeline_mode<synchronous>, transform_indices = @transform_3, window_bounds = array<i64: 9, 128, 128>}, {pipeline_mode = #tpu.pipeline_mode<synchronous>, transform_indices = @transform_4, window_bounds = array<i64: 1, 128>}, {pipeline_mode = #tpu.pipeline_mode<synchronous>, transform_indices = @transform_5, window_bounds = array<i64: 128, 128>}, {pipeline_mode = #tpu.pipeline_mode<synchronous>, transform_indices = @transform_6, window_bounds = array<i64: 1, 128>}, {pipeline_mode = #tpu.pipeline_mode<synchronous>, transform_indices = @transform_7, window_bounds = array<i64: 256, 1>}, {pipeline_mode = #tpu.pipeline_mode<synchronous>, transform_indices = @transform_8, window_bounds = array<i64: 256, 1>}, {transform_indices = @transform_9, window_bounds = array<i64: 1, 256, 128>}]} {
    %c0 = arith.constant 0 : index
    %c0_0 = arith.constant 0 : index
    %c0_1 = arith.constant 0 : index
    %0 = vector.load %arg1[%c0, %c0_0, %c0_1] : memref<1x256x128xf32, #tpu.memory_space<vmem>>, vector<1x256x128xf32>
    %1 = vector.shape_cast %0 : vector<1x256x128xf32> to vector<256x128xf32>
    %2 = arith.truncf %1 : vector<256x128xf32> to vector<256x128xbf16>
    %c0_2 = arith.constant 0 : index
    %c0_3 = arith.constant 0 : index
    %3 = vector.load %arg2[%c0_2, %c0_3] : memref<128x128xbf16, #tpu.memory_space<vmem>>, vector<128x128xbf16>
    %cst = arith.constant dense<0.000000e+00> : vector<256x128xf32>
    %4 = tpu.matmul %2, %3, %cst {dimension_numbers = #tpu.dot_dimension_numbers<[1], [0], [0], [1], [0, 0, 1, 1], [], []>} : vector<256x128xbf16>, vector<128x128xbf16>, vector<256x128xf32> -> vector<256x128xf32>
    %c0_4 = arith.constant 0 : index
    %c0_5 = arith.constant 0 : index
    %5 = vector.load %arg3[%c0_4, %c0_5] : memref<1x128xf32, #tpu.memory_space<vmem>>, vector<1x128xf32>
    %6 = vector.broadcast %5 : vector<1x128xf32> to vector<256x128xf32>
    %7 = arith.addf %4, %6 : vector<256x128xf32>
    %cst_6 = arith.constant 0.000000e+00 : f32
    %8 = vector.broadcast %cst_6 : f32 to vector<256x128xf32>
    %9 = arith.maximumf %7, %8 : vector<256x128xf32>
    %cst_7 = arith.constant 0.000000e+00 : bf16
    %10 = vector.broadcast %cst_7 : bf16 to vector<16x128xbf16>
    %c0_8 = arith.constant 0 : index
    %c0_9 = arith.constant 0 : index
    %c0_10 = arith.constant 0 : index
    %11 = vector.load %arg11[%c0_8, %c0_9, %c0_10] : memref<3x288x128xbf16, #tpu.memory_space<vmem>>, vector<1x16x128xbf16>
    %12 = vector.shape_cast %11 : vector<1x16x128xbf16> to vector<16x128xbf16>
    %13 = vector.shape_cast %10 : vector<16x128xbf16> to vector<1x16x128xbf16>
    tpu.vector_store %arg11[%c0_8, %c0_9, %c0_10], %13 {strides = array<i32>} : memref<3x288x128xbf16, #tpu.memory_space<vmem>>, vector<1x16x128xbf16>,
    %c0_11 = arith.constant 0 : index
    %c272 = arith.constant 272 : index
    %c0_12 = arith.constant 0 : index
    %14 = vector.load %arg11[%c0_11, %c272, %c0_12] : memref<3x288x128xbf16, #tpu.memory_space<vmem>>, vector<1x16x128xbf16>
    %15 = vector.shape_cast %14 : vector<1x16x128xbf16> to vector<16x128xbf16>
    %16 = vector.shape_cast %10 : vector<16x128xbf16> to vector<1x16x128xbf16>
    tpu.vector_store %arg11[%c0_11, %c272, %c0_12], %16 {strides = array<i32>} : memref<3x288x128xbf16, #tpu.memory_space<vmem>>, vector<1x16x128xbf16>,
    %c1 = arith.constant 1 : index
    %c0_13 = arith.constant 0 : index
    %c0_14 = arith.constant 0 : index
    %17 = vector.load %arg11[%c1, %c0_13, %c0_14] : memref<3x288x128xbf16, #tpu.memory_space<vmem>>, vector<1x16x128xbf16>
    %18 = vector.shape_cast %17 : vector<1x16x128xbf16> to vector<16x128xbf16>
    %19 = vector.shape_cast %10 : vector<16x128xbf16> to vector<1x16x128xbf16>
    tpu.vector_store %arg11[%c1, %c0_13, %c0_14], %19 {strides = array<i32>} : memref<3x288x128xbf16, #tpu.memory_space<vmem>>, vector<1x16x128xbf16>,
    %c1_15 = arith.constant 1 : index
    %c272_16 = arith.constant 272 : index
    %c0_17 = arith.constant 0 : index
    %20 = vector.load %arg11[%c1_15, %c272_16, %c0_17] : memref<3x288x128xbf16, #tpu.memory_space<vmem>>, vector<1x16x128xbf16>
    %21 = vector.shape_cast %20 : vector<1x16x128xbf16> to vector<16x128xbf16>
    %22 = vector.shape_cast %10 : vector<16x128xbf16> to vector<1x16x128xbf16>
    tpu.vector_store %arg11[%c1_15, %c272_16, %c0_17], %22 {strides = array<i32>} : memref<3x288x128xbf16, #tpu.memory_space<vmem>>, vector<1x16x128xbf16>,
    %c2 = arith.constant 2 : index
    %c0_18 = arith.constant 0 : index
    %c0_19 = arith.constant 0 : index
    %23 = vector.load %arg11[%c2, %c0_18, %c0_19] : memref<3x288x128xbf16, #tpu.memory_space<vmem>>, vector<1x16x128xbf16>
    %24 = vector.shape_cast %23 : vector<1x16x128xbf16> to vector<16x128xbf16>
    %25 = vector.shape_cast %10 : vector<16x128xbf16> to vector<1x16x128xbf16>
    tpu.vector_store %arg11[%c2, %c0_18, %c0_19], %25 {strides = array<i32>} : memref<3x288x128xbf16, #tpu.memory_space<vmem>>, vector<1x16x128xbf16>,
    %c2_20 = arith.constant 2 : index
    %c272_21 = arith.constant 272 : index
    %c0_22 = arith.constant 0 : index
    %26 = vector.load %arg11[%c2_20, %c272_21, %c0_22] : memref<3x288x128xbf16, #tpu.memory_space<vmem>>, vector<1x16x128xbf16>
    %27 = vector.shape_cast %26 : vector<1x16x128xbf16> to vector<16x128xbf16>
    %28 = vector.shape_cast %10 : vector<16x128xbf16> to vector<1x16x128xbf16>
    tpu.vector_store %arg11[%c2_20, %c272_21, %c0_22], %28 {strides = array<i32>} : memref<3x288x128xbf16, #tpu.memory_space<vmem>>, vector<1x16x128xbf16>,
    %29 = arith.truncf %9 : vector<256x128xf32> to vector<256x128xbf16>
    %c1_23 = arith.constant 1 : index
    %c16 = arith.constant 16 : index
    %c0_24 = arith.constant 0 : index
    %30 = vector.load %arg11[%c1_23, %c16, %c0_24] : memref<3x288x128xbf16, #tpu.memory_space<vmem>>, vector<1x256x128xbf16>
    %31 = vector.shape_cast %30 : vector<1x256x128xbf16> to vector<256x128xbf16>
    %32 = vector.shape_cast %29 : vector<256x128xbf16> to vector<1x256x128xbf16>
    tpu.vector_store %arg11[%c1_23, %c16, %c0_24], %32 {strides = array<i32>} : memref<3x288x128xbf16, #tpu.memory_space<vmem>>, vector<1x256x128xbf16>,
    %c0_25 = arith.constant 0 : index
    %c0_26 = arith.constant 0 : index
    %33 = vector.load %arg8[%c0_25, %c0_26] : memref<256x1xf32, #tpu.memory_space<vmem>>, vector<256x1xf32>
    %c1_27 = arith.constant 1 : index
    %c15 = arith.constant 15 : index
    %c0_28 = arith.constant 0 : index
    %34 = vector.load %arg11[%c1_27, %c15, %c0_28] : memref<3x288x128xbf16, #tpu.memory_space<vmem>>, vector<1x256x128xbf16>
    %35 = vector.shape_cast %34 : vector<1x256x128xbf16> to vector<256x128xbf16>
    %36 = arith.extf %35 : vector<256x128xbf16> to vector<256x128xf32>
    %37 = vector.broadcast %33 : vector<256x1xf32> to vector<256x128xf32>
    %38 = arith.mulf %37, %36 : vector<256x128xf32>
    %c0_29 = arith.constant 0 : index
    %c0_30 = arith.constant 0 : index
    %39 = vector.load %arg9[%c0_29, %c0_30] : memref<256x1xf32, #tpu.memory_space<vmem>>, vector<256x1xf32>
    %c1_31 = arith.constant 1 : index
    %c17 = arith.constant 17 : index
    %c0_32 = arith.constant 0 : index
    %40 = vector.load %arg11[%c1_31, %c17, %c0_32] : memref<3x288x128xbf16, #tpu.memory_space<vmem>>, vector<1x256x128xbf16>
    %41 = vector.shape_cast %40 : vector<1x256x128xbf16> to vector<256x128xbf16>
    %42 = arith.extf %41 : vector<256x128xbf16> to vector<256x128xf32>
    %43 = vector.broadcast %39 : vector<256x1xf32> to vector<256x128xf32>
    %44 = arith.mulf %43, %42 : vector<256x128xf32>
    %45 = arith.truncf %38 : vector<256x128xf32> to vector<256x128xbf16>
    %c0_33 = arith.constant 0 : index
    %c16_34 = arith.constant 16 : index
    %c0_35 = arith.constant 0 : index
    %46 = vector.load %arg11[%c0_33, %c16_34, %c0_35] : memref<3x288x128xbf16, #tpu.memory_space<vmem>>, vector<1x256x128xbf16>
    %47 = vector.shape_cast %46 : vector<1x256x128xbf16> to vector<256x128xbf16>
    %48 = vector.shape_cast %45 : vector<256x128xbf16> to vector<1x256x128xbf16>
    tpu.vector_store %arg11[%c0_33, %c16_34, %c0_35], %48 {strides = array<i32>} : memref<3x288x128xbf16, #tpu.memory_space<vmem>>, vector<1x256x128xbf16>,
    %49 = arith.truncf %44 : vector<256x128xf32> to vector<256x128xbf16>
    %c2_36 = arith.constant 2 : index
    %c16_37 = arith.constant 16 : index
    %c0_38 = arith.constant 0 : index
    %50 = vector.load %arg11[%c2_36, %c16_37, %c0_38] : memref<3x288x128xbf16, #tpu.memory_space<vmem>>, vector<1x256x128xbf16>
    %51 = vector.shape_cast %50 : vector<1x256x128xbf16> to vector<256x128xbf16>
    %52 = vector.shape_cast %49 : vector<256x128xbf16> to vector<1x256x128xbf16>
    tpu.vector_store %arg11[%c2_36, %c16_37, %c0_38], %52 {strides = array<i32>} : memref<3x288x128xbf16, #tpu.memory_space<vmem>>, vector<1x256x128xbf16>,
    %cst_39 = arith.constant 0.000000e+00 : f32
    %53 = vector.broadcast %cst_39 : f32 to vector<256x128xf32>
    %c0_40 = arith.constant 0 : index
    %c0_41 = arith.constant 0 : index
    %c0_42 = arith.constant 0 : index
    %54 = vector.load %arg11[%c0_40, %c0_41, %c0_42] : memref<3x288x128xbf16, #tpu.memory_space<vmem>>, vector<1x256x128xbf16>
    %55 = vector.shape_cast %54 : vector<1x256x128xbf16> to vector<256x128xbf16>
    %c0_43 = arith.constant 0 : index
    %c0_44 = arith.constant 0 : index
    %c0_45 = arith.constant 0 : index
    %56 = vector.load %arg4[%c0_43, %c0_44, %c0_45] : memref<9x128x128xbf16, #tpu.memory_space<vmem>>, vector<1x128x128xbf16>
    %57 = vector.shape_cast %56 : vector<1x128x128xbf16> to vector<128x128xbf16>
    %cst_46 = arith.constant dense<0.000000e+00> : vector<256x128xf32>
    %58 = tpu.matmul %55, %57, %cst_46 {dimension_numbers = #tpu.dot_dimension_numbers<[1], [0], [0], [1], [0, 0, 1, 1], [], []>} : vector<256x128xbf16>, vector<128x128xbf16>, vector<256x128xf32> -> vector<256x128xf32>
    %59 = arith.addf %53, %58 : vector<256x128xf32>
    %c1_47 = arith.constant 1 : index
    %c0_48 = arith.constant 0 : index
    %c0_49 = arith.constant 0 : index
    %60 = vector.load %arg11[%c1_47, %c0_48, %c0_49] : memref<3x288x128xbf16, #tpu.memory_space<vmem>>, vector<1x256x128xbf16>
    %61 = vector.shape_cast %60 : vector<1x256x128xbf16> to vector<256x128xbf16>
    %c1_50 = arith.constant 1 : index
    %c0_51 = arith.constant 0 : index
    %c0_52 = arith.constant 0 : index
    %62 = vector.load %arg4[%c1_50, %c0_51, %c0_52] : memref<9x128x128xbf16, #tpu.memory_space<vmem>>, vector<1x128x128xbf16>
    %63 = vector.shape_cast %62 : vector<1x128x128xbf16> to vector<128x128xbf16>
    %cst_53 = arith.constant dense<0.000000e+00> : vector<256x128xf32>
    %64 = tpu.matmul %61, %63, %cst_53 {dimension_numbers = #tpu.dot_dimension_numbers<[1], [0], [0], [1], [0, 0, 1, 1], [], []>} : vector<256x128xbf16>, vector<128x128xbf16>, vector<256x128xf32> -> vector<256x128xf32>
    %65 = arith.addf %59, %64 : vector<256x128xf32>
    %c2_54 = arith.constant 2 : index
    %c0_55 = arith.constant 0 : index
    %c0_56 = arith.constant 0 : index
    %66 = vector.load %arg11[%c2_54, %c0_55, %c0_56] : memref<3x288x128xbf16, #tpu.memory_space<vmem>>, vector<1x256x128xbf16>
    %67 = vector.shape_cast %66 : vector<1x256x128xbf16> to vector<256x128xbf16>
    %c2_57 = arith.constant 2 : index
    %c0_58 = arith.constant 0 : index
    %c0_59 = arith.constant 0 : index
    %68 = vector.load %arg4[%c2_57, %c0_58, %c0_59] : memref<9x128x128xbf16, #tpu.memory_space<vmem>>, vector<1x128x128xbf16>
    %69 = vector.shape_cast %68 : vector<1x128x128xbf16> to vector<128x128xbf16>
    %cst_60 = arith.constant dense<0.000000e+00> : vector<256x128xf32>
    %70 = tpu.matmul %67, %69, %cst_60 {dimension_numbers = #tpu.dot_dimension_numbers<[1], [0], [0], [1], [0, 0, 1, 1], [], []>} : vector<256x128xbf16>, vector<128x128xbf16>, vector<256x128xf32> -> vector<256x128xf32>
    %71 = arith.addf %65, %70 : vector<256x128xf32>
    %c0_61 = arith.constant 0 : index
    %c16_62 = arith.constant 16 : index
    %c0_63 = arith.constant 0 : index
    %72 = vector.load %arg11[%c0_61, %c16_62, %c0_63] : memref<3x288x128xbf16, #tpu.memory_space<vmem>>, vector<1x256x128xbf16>
    %73 = vector.shape_cast %72 : vector<1x256x128xbf16> to vector<256x128xbf16>
    %c3 = arith.constant 3 : index
    %c0_64 = arith.constant 0 : index
    %c0_65 = arith.constant 0 : index
    %74 = vector.load %arg4[%c3, %c0_64, %c0_65] : memref<9x128x128xbf16, #tpu.memory_space<vmem>>, vector<1x128x128xbf16>
    %75 = vector.shape_cast %74 : vector<1x128x128xbf16> to vector<128x128xbf16>
    %cst_66 = arith.constant dense<0.000000e+00> : vector<256x128xf32>
    %76 = tpu.matmul %73, %75, %cst_66 {dimension_numbers = #tpu.dot_dimension_numbers<[1], [0], [0], [1], [0, 0, 1, 1], [], []>} : vector<256x128xbf16>, vector<128x128xbf16>, vector<256x128xf32> -> vector<256x128xf32>
    %77 = arith.addf %71, %76 : vector<256x128xf32>
    %c1_67 = arith.constant 1 : index
    %c16_68 = arith.constant 16 : index
    %c0_69 = arith.constant 0 : index
    %78 = vector.load %arg11[%c1_67, %c16_68, %c0_69] : memref<3x288x128xbf16, #tpu.memory_space<vmem>>, vector<1x256x128xbf16>
    %79 = vector.shape_cast %78 : vector<1x256x128xbf16> to vector<256x128xbf16>
    %c4 = arith.constant 4 : index
    %c0_70 = arith.constant 0 : index
    %c0_71 = arith.constant 0 : index
    %80 = vector.load %arg4[%c4, %c0_70, %c0_71] : memref<9x128x128xbf16, #tpu.memory_space<vmem>>, vector<1x128x128xbf16>
    %81 = vector.shape_cast %80 : vector<1x128x128xbf16> to vector<128x128xbf16>
    %cst_72 = arith.constant dense<0.000000e+00> : vector<256x128xf32>
    %82 = tpu.matmul %79, %81, %cst_72 {dimension_numbers = #tpu.dot_dimension_numbers<[1], [0], [0], [1], [0, 0, 1, 1], [], []>} : vector<256x128xbf16>, vector<128x128xbf16>, vector<256x128xf32> -> vector<256x128xf32>
    %83 = arith.addf %77, %82 : vector<256x128xf32>
    %c2_73 = arith.constant 2 : index
    %c16_74 = arith.constant 16 : index
    %c0_75 = arith.constant 0 : index
    %84 = vector.load %arg11[%c2_73, %c16_74, %c0_75] : memref<3x288x128xbf16, #tpu.memory_space<vmem>>, vector<1x256x128xbf16>
    %85 = vector.shape_cast %84 : vector<1x256x128xbf16> to vector<256x128xbf16>
    %c5 = arith.constant 5 : index
    %c0_76 = arith.constant 0 : index
    %c0_77 = arith.constant 0 : index
    %86 = vector.load %arg4[%c5, %c0_76, %c0_77] : memref<9x128x128xbf16, #tpu.memory_space<vmem>>, vector<1x128x128xbf16>
    %87 = vector.shape_cast %86 : vector<1x128x128xbf16> to vector<128x128xbf16>
    %cst_78 = arith.constant dense<0.000000e+00> : vector<256x128xf32>
    %88 = tpu.matmul %85, %87, %cst_78 {dimension_numbers = #tpu.dot_dimension_numbers<[1], [0], [0], [1], [0, 0, 1, 1], [], []>} : vector<256x128xbf16>, vector<128x128xbf16>, vector<256x128xf32> -> vector<256x128xf32>
    %89 = arith.addf %83, %88 : vector<256x128xf32>
    %c0_79 = arith.constant 0 : index
    %c32 = arith.constant 32 : index
    %c0_80 = arith.constant 0 : index
    %90 = vector.load %arg11[%c0_79, %c32, %c0_80] : memref<3x288x128xbf16, #tpu.memory_space<vmem>>, vector<1x256x128xbf16>
    %91 = vector.shape_cast %90 : vector<1x256x128xbf16> to vector<256x128xbf16>
    %c6 = arith.constant 6 : index
    %c0_81 = arith.constant 0 : index
    %c0_82 = arith.constant 0 : index
    %92 = vector.load %arg4[%c6, %c0_81, %c0_82] : memref<9x128x128xbf16, #tpu.memory_space<vmem>>, vector<1x128x128xbf16>
    %93 = vector.shape_cast %92 : vector<1x128x128xbf16> to vector<128x128xbf16>
    %cst_83 = arith.constant dense<0.000000e+00> : vector<256x128xf32>
    %94 = tpu.matmul %91, %93, %cst_83 {dimension_numbers = #tpu.dot_dimension_numbers<[1], [0], [0], [1], [0, 0, 1, 1], [], []>} : vector<256x128xbf16>, vector<128x128xbf16>, vector<256x128xf32> -> vector<256x128xf32>
    %95 = arith.addf %89, %94 : vector<256x128xf32>
    %c1_84 = arith.constant 1 : index
    %c32_85 = arith.constant 32 : index
    %c0_86 = arith.constant 0 : index
    %96 = vector.load %arg11[%c1_84, %c32_85, %c0_86] : memref<3x288x128xbf16, #tpu.memory_space<vmem>>, vector<1x256x128xbf16>
    %97 = vector.shape_cast %96 : vector<1x256x128xbf16> to vector<256x128xbf16>
    %c7 = arith.constant 7 : index
    %c0_87 = arith.constant 0 : index
    %c0_88 = arith.constant 0 : index
    %98 = vector.load %arg4[%c7, %c0_87, %c0_88] : memref<9x128x128xbf16, #tpu.memory_space<vmem>>, vector<1x128x128xbf16>
    %99 = vector.shape_cast %98 : vector<1x128x128xbf16> to vector<128x128xbf16>
    %cst_89 = arith.constant dense<0.000000e+00> : vector<256x128xf32>
    %100 = tpu.matmul %97, %99, %cst_89 {dimension_numbers = #tpu.dot_dimension_numbers<[1], [0], [0], [1], [0, 0, 1, 1], [], []>} : vector<256x128xbf16>, vector<128x128xbf16>, vector<256x128xf32> -> vector<256x128xf32>
    %101 = arith.addf %95, %100 : vector<256x128xf32>
    %c2_90 = arith.constant 2 : index
    %c32_91 = arith.constant 32 : index
    %c0_92 = arith.constant 0 : index
    %102 = vector.load %arg11[%c2_90, %c32_91, %c0_92] : memref<3x288x128xbf16, #tpu.memory_space<vmem>>, vector<1x256x128xbf16>
    %103 = vector.shape_cast %102 : vector<1x256x128xbf16> to vector<256x128xbf16>
    %c8 = arith.constant 8 : index
    %c0_93 = arith.constant 0 : index
    %c0_94 = arith.constant 0 : index
    %104 = vector.load %arg4[%c8, %c0_93, %c0_94] : memref<9x128x128xbf16, #tpu.memory_space<vmem>>, vector<1x128x128xbf16>
    %105 = vector.shape_cast %104 : vector<1x128x128xbf16> to vector<128x128xbf16>
    %cst_95 = arith.constant dense<0.000000e+00> : vector<256x128xf32>
    %106 = tpu.matmul %103, %105, %cst_95 {dimension_numbers = #tpu.dot_dimension_numbers<[1], [0], [0], [1], [0, 0, 1, 1], [], []>} : vector<256x128xbf16>, vector<128x128xbf16>, vector<256x128xf32> -> vector<256x128xf32>
    %107 = arith.addf %101, %106 : vector<256x128xf32>
    %c0_96 = arith.constant 0 : index
    %c0_97 = arith.constant 0 : index
    %108 = vector.load %arg5[%c0_96, %c0_97] : memref<1x128xf32, #tpu.memory_space<vmem>>, vector<1x128xf32>
    %109 = vector.broadcast %108 : vector<1x128xf32> to vector<256x128xf32>
    %110 = arith.addf %107, %109 : vector<256x128xf32>
    %cst_98 = arith.constant 0.000000e+00 : f32
    %111 = vector.broadcast %cst_98 : f32 to vector<256x128xf32>
    %112 = arith.maximumf %110, %111 : vector<256x128xf32>
    %113 = arith.truncf %112 : vector<256x128xf32> to vector<256x128xbf16>
    %c0_99 = arith.constant 0 : index
    %c0_100 = arith.constant 0 : index
    %114 = vector.load %arg6[%c0_99, %c0_100] : memref<128x128xbf16, #tpu.memory_space<vmem>>, vector<128x128xbf16>
    %cst_101 = arith.constant dense<0.000000e+00> : vector<256x128xf32>
    %115 = tpu.matmul %113, %114, %cst_101 {dimension_numbers = #tpu.dot_dimension_numbers<[1], [0], [0], [1], [0, 0, 1, 1], [], []>} : vector<256x128xbf16>, vector<128x128xbf16>, vector<256x128xf32> -> vector<256x128xf32>
    %c0_102 = arith.constant 0 : index
    %c0_103 = arith.constant 0 : index
    %116 = vector.load %arg7[%c0_102, %c0_103] : memref<1x128xf32, #tpu.memory_space<vmem>>, vector<1x128xf32>
    %117 = vector.broadcast %116 : vector<1x128xf32> to vector<256x128xf32>
    %118 = arith.addf %115, %117 : vector<256x128xf32>
    %c0_104 = arith.constant 0 : index
    %c0_105 = arith.constant 0 : index
    %c0_106 = arith.constant 0 : index
    %119 = vector.load %arg1[%c0_104, %c0_105, %c0_106] : memref<1x256x128xf32, #tpu.memory_space<vmem>>, vector<1x256x128xf32>
    %120 = vector.shape_cast %119 : vector<1x256x128xf32> to vector<256x128xf32>
    %121 = arith.addf %118, %120 : vector<256x128xf32>
    %cst_107 = arith.constant 0.000000e+00 : f32
    %122 = vector.broadcast %cst_107 : f32 to vector<256x128xf32>
    %123 = arith.maximumf %121, %122 : vector<256x128xf32>
    %c0_108 = arith.constant 0 : index
    %c0_109 = arith.constant 0 : index
    %c0_110 = arith.constant 0 : index
    %124 = vector.load %arg10[%c0_108, %c0_109, %c0_110] : memref<1x256x128xf32, #tpu.memory_space<vmem>>, vector<1x256x128xf32>
    %125 = vector.shape_cast %124 : vector<1x256x128xf32> to vector<256x128xf32>
    %126 = vector.shape_cast %123 : vector<256x128xf32> to vector<1x256x128xf32>
    tpu.vector_store %arg10[%c0_108, %c0_109, %c0_110], %126 {strides = array<i32>} : memref<1x256x128xf32, #tpu.memory_space<vmem>>, vector<1x256x128xf32>,
    return
  }
  func.func @transform_0(%arg0: i32) -> (i32, i32, i32) {
    %c0_i32 = arith.constant 0 : i32
    %c0_i32_0 = arith.constant 0 : i32
    %c0_i32_1 = arith.constant 0 : i32
    return %arg0, %c0_i32, %c0_i32_0 : i32, i32, i32
  }
  func.func @transform_1(%arg0: i32) -> (i32, i32) {
    %c0_i32 = arith.constant 0 : i32
    %c0_i32_0 = arith.constant 0 : i32
    %c0_i32_1 = arith.constant 0 : i32
    return %c0_i32, %c0_i32_0 : i32, i32
  }
  func.func @transform_2(%arg0: i32) -> (i32, i32) {
    %c0_i32 = arith.constant 0 : i32
    %c0_i32_0 = arith.constant 0 : i32
    %c0_i32_1 = arith.constant 0 : i32
    return %c0_i32, %c0_i32_0 : i32, i32
  }
  func.func @transform_3(%arg0: i32) -> (i32, i32, i32) {
    %c0_i32 = arith.constant 0 : i32
    %c0_i32_0 = arith.constant 0 : i32
    %c0_i32_1 = arith.constant 0 : i32
    %c0_i32_2 = arith.constant 0 : i32
    return %c0_i32, %c0_i32_0, %c0_i32_1 : i32, i32, i32
  }
  func.func @transform_4(%arg0: i32) -> (i32, i32) {
    %c0_i32 = arith.constant 0 : i32
    %c0_i32_0 = arith.constant 0 : i32
    %c0_i32_1 = arith.constant 0 : i32
    return %c0_i32, %c0_i32_0 : i32, i32
  }
  func.func @transform_5(%arg0: i32) -> (i32, i32) {
    %c0_i32 = arith.constant 0 : i32
    %c0_i32_0 = arith.constant 0 : i32
    %c0_i32_1 = arith.constant 0 : i32
    return %c0_i32, %c0_i32_0 : i32, i32
  }
  func.func @transform_6(%arg0: i32) -> (i32, i32) {
    %c0_i32 = arith.constant 0 : i32
    %c0_i32_0 = arith.constant 0 : i32
    %c0_i32_1 = arith.constant 0 : i32
    return %c0_i32, %c0_i32_0 : i32, i32
  }
  func.func @transform_7(%arg0: i32) -> (i32, i32) {
    %c0_i32 = arith.constant 0 : i32
    %c0_i32_0 = arith.constant 0 : i32
    %c0_i32_1 = arith.constant 0 : i32
    return %c0_i32, %c0_i32_0 : i32, i32
  }
  func.func @transform_8(%arg0: i32) -> (i32, i32) {
    %c0_i32 = arith.constant 0 : i32
    %c0_i32_0 = arith.constant 0 : i32
    %c0_i32_1 = arith.constant 0 : i32
    return %c0_i32, %c0_i32_0 : i32, i32
  }
  func.func @transform_9(%arg0: i32) -> (i32, i32, i32) {
    %c0_i32 = arith.constant 0 : i32
    %c0_i32_0 = arith.constant 0 : i32
    %c0_i32_1 = arith.constant 0 : i32
    return %arg0, %c0_i32, %c0_i32_0 : i32, i32, i32
  }
}

</mosaic_0001>

<llo_original>
// kernel: _forward_impl.1
$region0: #{_forward_impl.1}
  #allocation0 [shape = 'u32[]', space=smem, size = 0x4, offset = 0x4, fixed_abs, tag = 'smem constant byte address 0x4 - core index']
  #allocation1 [shape = 'u32[144,128]{1,0:T(1,128)}', space=vmem, size = 0x12000, scoped, tag = 'internal scratch']
  #allocation2 [shape = 'bf16[3,288,128]{2,1,0:T(16,128)(2,1)}', space=vmem, size = 0x36000, scoped, tag = 'scratch operand']
  %s0 = inlined_call_operand.vmem [shape: f32[2,256,128], index: 0, kind: input, shape index: {}, may-alias: {0,9}]
  %s1 = inlined_call_operand.vmem [shape: bf16[128,128], index: 1, kind: input, shape index: {}]
  %s2 = inlined_call_operand.vmem [shape: f32[1,128], index: 2, kind: input, shape index: {}]
  %s3 = inlined_call_operand.vmem [shape: bf16[9,128,128], index: 3, kind: input, shape index: {}]
  %s4 = inlined_call_operand.vmem [shape: f32[1,128], index: 4, kind: input, shape index: {}]
  %s5 = inlined_call_operand.vmem [shape: bf16[128,128], index: 5, kind: input, shape index: {}]
  %s6 = inlined_call_operand.vmem [shape: f32[1,128], index: 6, kind: input, shape index: {}]
  %s7 = inlined_call_operand.vmem [shape: f32[256,1], index: 7, kind: input, shape index: {}]
  %s8 = inlined_call_operand.vmem [shape: f32[256,1], index: 8, kind: input, shape index: {}]
  %s9 = inlined_call_operand.vmem [shape: f32[2,256,128], index: 9, kind: output, shape index: {}, may-alias: {0,9}]
  %s10 = sld [smem:[#allocation0]]
  $region69: #{_forward_impl.1} parent=0
    _
  %s12 = ssub.s32 1, %s10
  %s13 = scalar_select 0, %s12, %s10
  loop: start=0, step=1, limit=4
  $region2: #{_forward_impl.1} parent=0 // loop_pre_header
    _
  $region3: #{_forward_impl.1} parent=0 // loop_header
    %s15 = sphi 0, %s19
    %p16 = scmp.ge.s32.totalorder %s15, 4
    %s25 = sphi 0, %s27
    %s28 = sphi 0, %s25
    %s29 = sphi 0, %s28
    %s45 = sphi 0, %s29
    %s49 = sphi 0, %s49
    %s51 = sphi 0, %s49
    %s52 = sphi 0, %s51
    %s66 = sphi 0, %s52
    %s70 = sphi 0, %s70
    %s72 = sphi 0, %s70
    %s73 = sphi 0, %s72
    %s87 = sphi 0, %s73
    %s91 = sphi 0, %s91
    %s93 = sphi 0, %s91
    %s94 = sphi 0, %s93
    %s108 = sphi 0, %s94
    %s112 = sphi 0, %s112
    %s114 = sphi 0, %s112
    %s115 = sphi 0, %s114
    %s129 = sphi 0, %s115
    %s133 = sphi 0, %s133
    %s135 = sphi 0, %s133
    %s136 = sphi 0, %s135
    %s150 = sphi 0, %s136
    %s154 = sphi 0, %s154
    %s156 = sphi 0, %s154
    %s157 = sphi 0, %s156
    %s171 = sphi 0, %s157
    %s175 = sphi 0, %s175
    %s177 = sphi 0, %s175
    %s178 = sphi 0, %s177
    %s192 = sphi 0, %s178
    %s196 = sphi 0, %s196
    %s198 = sphi 0, %s196
    %s199 = sphi 0, %s198
    %s213 = sphi 0, %s199
    %s219 = sphi 0, %s221
    %s222 = sphi 0, %s219
    %s223 = sphi 0, %s222
    %s239 = sphi 0, %s223
  $region4: #{_forward_impl.1} parent=0 // loop_header_branch
    %18 = sbr.rel (%p16) target = $region8
  $region5: #{_forward_impl.1} parent=0 // loop_body
    %s20 = ssub.s32 %s15, 1
    %s21 = ssub.s32 %s15, 2
    %s22 = sadd.s32 %s15, 1
    %s23 = ssub.s32 %s15, %s22
    %p24 = scmp.eq.s32.totalorder %s23, 0
    %s26 = sadd.s32 %s25, 1
    %s27 = scalar_select %p24, %s25, %s26
    %p30 = pneg %p24
    %p31 = scmp.eq.s32.totalorder %s15, 1
    %p32 = por %p30, %p31
    %p33 = scmp.ne.s32.totalorder %s25, %s28
    %p34 = scmp.eq.s32.totalorder %s15, 0
    %p35 = por %p33, %p34
    %p36 = scmp.ne.s32.totalorder %s25, %s28
    %p37 = scmp.eq.s32.totalorder %s20, 1
    %p38 = por %p36, %p37
    %p39 = scmp.ne.s32.totalorder %s28, %s29
    %p40 = scmp.eq.s32.totalorder %s20, 0
    %p41 = por %p39, %p40
    %p42 = scmp.ne.s32.totalorder %s28, %s29
    %p43 = scmp.eq.s32.totalorder %s21, 1
    %p44 = por %p42, %p43
    %p46 = scmp.ne.s32.totalorder %s29, %s45
    %p47 = scmp.eq.s32.totalorder %s21, 0
    %p48 = por %p46, %p47
    %s50 = sadd.s32 %s49, 1
    %p53 = scmp.eq.s32.totalorder %s15, 1
    %p54 = scmp.ne.s32.totalorder %s49, %s51
    %p55 = scmp.eq.s32.totalorder %s15, 0
    %p56 = por %p54, %p55
    %p57 = scmp.ne.s32.totalorder %s49, %s51
    %p58 = scmp.eq.s32.totalorder %s20, 1
    %p59 = por %p57, %p58
    %p60 = scmp.ne.s32.totalorder %s51, %s52
    %p61 = scmp.eq.s32.totalorder %s20, 0
    %p62 = por %p60, %p61
    %p63 = scmp.ne.s32.totalorder %s51, %s52
    %p64 = scmp.eq.s32.totalorder %s21, 1
    %p65 = por %p63, %p64
    %p67 = scmp.ne.s32.totalorder %s52, %s66
    %p68 = scmp.eq.s32.totalorder %s21, 0
    %p69 = por %p67, %p68
    %s71 = sadd.s32 %s70, 1
    %p74 = scmp.eq.s32.totalorder %s15, 1
    %p75 = scmp.ne.s32.totalorder %s70, %s72
    %p76 = scmp.eq.s32.totalorder %s15, 0
    %p77 = por %p75, %p76
    %p78 = scmp.ne.s32.totalorder %s70, %s72
    %p79 = scmp.eq.s32.totalorder %s20, 1
    %p80 = por %p78, %p79
    %p81 = scmp.ne.s32.totalorder %s72, %s73
    %p82 = scmp.eq.s32.totalorder %s20, 0
    %p83 = por %p81, %p82
    %p84 = scmp.ne.s32.totalorder %s72, %s73
    %p85 = scmp.eq.s32.totalorder %s21, 1
    %p86 = por %p84, %p85
    %p88 = scmp.ne.s32.totalorder %s73, %s87
    %p89 = scmp.eq.s32.totalorder %s21, 0
    %p90 = por %p88, %p89
    %s92 = sadd.s32 %s91, 1
    %p95 = scmp.eq.s32.totalorder %s15, 1
    %p96 = scmp.ne.s32.totalorder %s91, %s93
    %p97 = scmp.eq.s32.totalorder %s15, 0
    %p98 = por %p96, %p97
    %p99 = scmp.ne.s32.totalorder %s91, %s93
    %p100 = scmp.eq.s32.totalorder %s20, 1
    %p101 = por %p99, %p100
    %p102 = scmp.ne.s32.totalorder %s93, %s94
    %p103 = scmp.eq.s32.totalorder %s20, 0
    %p104 = por %p102, %p103
    %p105 = scmp.ne.s32.totalorder %s93, %s94
    %p106 = scmp.eq.s32.totalorder %s21, 1
    %p107 = por %p105, %p106
    %p109 = scmp.ne.s32.totalorder %s94, %s108
    %p110 = scmp.eq.s32.totalorder %s21, 0
    %p111 = por %p109, %p110
    %s113 = sadd.s32 %s112, 1
    %p116 = scmp.eq.s32.totalorder %s15, 1
    %p117 = scmp.ne.s32.totalorder %s112, %s114
    %p118 = scmp.eq.s32.totalorder %s15, 0
    %p119 = por %p117, %p118
    %p120 = scmp.ne.s32.totalorder %s112, %s114
    %p121 = scmp.eq.s32.totalorder %s20, 1
    %p122 = por %p120, %p121
    %p123 = scmp.ne.s32.totalorder %s114, %s115
    %p124 = scmp.eq.s32.totalorder %s20, 0
    %p125 = por %p123, %p124
    %p126 = scmp.ne.s32.totalorder %s114, %s115
    %p127 = scmp.eq.s32.totalorder %s21, 1
    %p128 = por %p126, %p127
    %p130 = scmp.ne.s32.totalorder %s115, %s129
    %p131 = scmp.eq.s32.totalorder %s21, 0
    %p132 = por %p130, %p131
    %s134 = sadd.s32 %s133, 1
    %p137 = scmp.eq.s32.totalorder %s15, 1
    %p138 = scmp.ne.s32.totalorder %s133, %s135
    %p139 = scmp.eq.s32.totalorder %s15, 0
    %p140 = por %p138, %p139
    %p141 = scmp.ne.s32.totalorder %s133, %s135
    %p142 = scmp.eq.s32.totalorder %s20, 1
    %p143 = por %p141, %p142
    %p144 = scmp.ne.s32.totalorder %s135, %s136
    %p145 = scmp.eq.s32.totalorder %s20, 0
    %p146 = por %p144, %p145
    %p147 = scmp.ne.s32.totalorder %s135, %s136
    %p148 = scmp.eq.s32.totalorder %s21, 1
    %p149 = por %p147, %p148
    %p151 = scmp.ne.s32.totalorder %s136, %s150
    %p152 = scmp.eq.s32.totalorder %s21, 0
    %p153 = por %p151, %p152
    %s155 = sadd.s32 %s154, 1
    %p158 = scmp.eq.s32.totalorder %s15, 1
    %p159 = scmp.ne.s32.totalorder %s154, %s156
    %p160 = scmp.eq.s32.totalorder %s15, 0
    %p161 = por %p159, %p160
    %p162 = scmp.ne.s32.totalorder %s154, %s156
    %p163 = scmp.eq.s32.totalorder %s20, 1
    %p164 = por %p162, %p163
    %p165 = scmp.ne.s32.totalorder %s156, %s157
    %p166 = scmp.eq.s32.totalorder %s20, 0
    %p167 = por %p165, %p166
    %p168 = scmp.ne.s32.totalorder %s156, %s157
    %p169 = scmp.eq.s32.totalorder %s21, 1
    %p170 = por %p168, %p169
    %p172 = scmp.ne.s32.totalorder %s157, %s171
    %p173 = scmp.eq.s32.totalorder %s21, 0
    %p174 = por %p172, %p173
    %s176 = sadd.s32 %s175, 1
    %p179 = scmp.eq.s32.totalorder %s15, 1
    %p180 = scmp.ne.s32.totalorder %s175, %s177
    %p181 = scmp.eq.s32.totalorder %s15, 0
    %p182 = por %p180, %p181
    %p183 = scmp.ne.s32.totalorder %s175, %s177
    %p184 = scmp.eq.s32.totalorder %s20, 1
    %p185 = por %p183, %p184
    %p186 = scmp.ne.s32.totalorder %s177, %s178
    %p187 = scmp.eq.s32.totalorder %s20, 0
    %p188 = por %p186, %p187
    %p189 = scmp.ne.s32.totalorder %s177, %s178
    %p190 = scmp.eq.s32.totalorder %s21, 1
    %p191 = por %p189, %p190
    %p193 = scmp.ne.s32.totalorder %s178, %s192
    %p194 = scmp.eq.s32.totalorder %s21, 0
    %p195 = por %p193, %p194
    %s197 = sadd.s32 %s196, 1
    %p200 = scmp.eq.s32.totalorder %s15, 1
    %p201 = scmp.ne.s32.totalorder %s196, %s198
    %p202 = scmp.eq.s32.totalorder %s15, 0
    %p203 = por %p201, %p202
    %p204 = scmp.ne.s32.totalorder %s196, %s198
    %p205 = scmp.eq.s32.totalorder %s20, 1
    %p206 = por %p204, %p205
    %p207 = scmp.ne.s32.totalorder %s198, %s199
    %p208 = scmp.eq.s32.totalorder %s20, 0
    %p209 = por %p207, %p208
    %p210 = scmp.ne.s32.totalorder %s198, %s199
    %p211 = scmp.eq.s32.totalorder %s21, 1
    %p212 = por %p210, %p211
    %p214 = scmp.ne.s32.totalorder %s199, %s213
    %p215 = scmp.eq.s32.totalorder %s21, 0
    %p216 = por %p214, %p215
    %s217 = ssub.s32 %s15, %s22
    %p218 = scmp.eq.s32.totalorder %s217, 0
    %s220 = sadd.s32 %s219, 1
    %s221 = scalar_select %p218, %s219, %s220
    %p224 = pneg %p218
    %p225 = scmp.eq.s32.totalorder %s15, 1
    %p226 = por %p224, %p225
    %p227 = scmp.ne.s32.totalorder %s219, %s222
    %p228 = scmp.eq.s32.totalorder %s15, 0
    %p229 = por %p227, %p228
    %p230 = scmp.ne.s32.totalorder %s219, %s222
    %p231 = scmp.eq.s32.totalorder %s20, 1
    %p232 = por %p230, %p231
    %p233 = scmp.ne.s32.totalorder %s222, %s223
    %p234 = scmp.eq.s32.totalorder %s20, 0
    %p235 = por %p233, %p234
    %p236 = scmp.ne.s32.totalorder %s222, %s223
    %p237 = scmp.eq.s32.totalorder %s21, 1
    %p238 = por %p236, %p237
    %p240 = scmp.ne.s32.totalorder %s223, %s239
    %p241 = scmp.eq.s32.totalorder %s21, 0
    %p242 = por %p240, %p241
    %p243 = scmp.le.s32.totalorder 1, %s15
    %p244 = scmp.lt.s32.totalorder %s15, 3
    %p245 = pnand %p243, %p244
    %p246 = pneg %p245
    // Predicated region
    $region9: #{_forward_impl.1} parent=5 // pred_check
      _
    $region10: #{_forward_impl.1} parent=5 // pred_check_branch
      %248 = sbr.rel (%p245) target = $region12
    $region11: #{_forward_impl.1} parent=5 // pred_region
      %s249 = ssub.s32 %s15, 1
      // Predicated region
      $region13: #{_forward_impl.1} parent=11 // pred_check
        %p250 = pneg %p62
      $region14: #{_forward_impl.1} parent=11 // pred_check_branch
        %252 = sbr.rel (%p250) target = $region16
      $region15: #{_forward_impl.1} parent=11 // pred_region
        _
      $region16: #{_forward_impl.1} parent=11 // pred_fallthru
        _
      // Predicated region
      $region17: #{_forward_impl.1} parent=11 // pred_check
        %p253 = pneg %p83
      $region18: #{_forward_impl.1} parent=11 // pred_check_branch
        %255 = sbr.rel (%p253) target = $region20
      $region19: #{_forward_impl.1} parent=11 // pred_region
        _
      $region20: #{_forward_impl.1} parent=11 // pred_fallthru
        _
      // Predicated region
      $region21: #{_forward_impl.1} parent=11 // pred_check
        %p256 = pneg %p104
      $region22: #{_forward_impl.1} parent=11 // pred_check_branch
        %258 = sbr.rel (%p256) target = $region24
      $region23: #{_forward_impl.1} parent=11 // pred_region
        _
      $region24: #{_forward_impl.1} parent=11 // pred_fallthru
        _
      // Predicated region
      $region25: #{_forward_impl.1} parent=11 // pred_check
        %p259 = pneg %p125
      $region26: #{_forward_impl.1} parent=11 // pred_check_branch
        %261 = sbr.rel (%p259) target = $region28
      $region27: #{_forward_impl.1} parent=11 // pred_region
        _
      $region28: #{_forward_impl.1} parent=11 // pred_fallthru
        _
      // Predicated region
      $region29: #{_forward_impl.1} parent=11 // pred_check
        %p262 = pneg %p146
      $region30: #{_forward_impl.1} parent=11 // pred_check_branch
        %264 = sbr.rel (%p262) target = $region32
      $region31: #{_forward_impl.1} parent=11 // pred_region
        _
      $region32: #{_forward_impl.1} parent=11 // pred_fallthru
        _
      // Predicated region
      $region33: #{_forward_impl.1} parent=11 // pred_check
        %p265 = pneg %p167
      $region34: #{_forward_impl.1} parent=11 // pred_check_branch
        %267 = sbr.rel (%p265) target = $region36
      $region35: #{_forward_impl.1} parent=11 // pred_region
        _
      $region36: #{_forward_impl.1} parent=11 // pred_fallthru
        _
      // Predicated region
      $region37: #{_forward_impl.1} parent=11 // pred_check
        %p268 = pneg %p188
      $region38: #{_forward_impl.1} parent=11 // pred_check_branch
        %270 = sbr.rel (%p268) target = $region40
      $region39: #{_forward_impl.1} parent=11 // pred_region
        _
      $region40: #{_forward_impl.1} parent=11 // pred_fallthru
        _
      // Predicated region
      $region41: #{_forward_impl.1} parent=11 // pred_check
        %p271 = pneg %p209
      $region42: #{_forward_impl.1} parent=11 // pred_check_branch
        %273 = sbr.rel (%p271) target = $region44
      $region43: #{_forward_impl.1} parent=11 // pred_region
        _
      $region44: #{_forward_impl.1} parent=11 // pred_fallthru
        _
    $region12: #{_forward_impl.1} parent=5 // pred_fallthru
      _
    %p274 = scmp.lt.s32.totalorder %s15, 2
    // Predicated region
    $region45: #{_forward_impl.1} parent=5 // pred_check
      %p275 = pneg %p274
    $region46: #{_forward_impl.1} parent=5 // pred_check_branch
      %277 = sbr.rel (%p275) target = $region48
    $region47: #{_forward_impl.1} parent=5 // pred_region
      // Predicated region
      $region49: #{_forward_impl.1} parent=47 // pred_check
        %p278 = pneg %p35
      $region50: #{_forward_impl.1} parent=47 // pred_check_branch
        %280 = sbr.rel (%p278) target = $region52
      $region51: #{_forward_impl.1} parent=47 // pred_region
        %p281 = scmp.lt.s32.totalorder %s15, 1
        %s282 = scalar_select %p281, %s15, 1
        %s283 = smul.addr %s282, 32
        %s284 = smul.addr %s283, 8
        %s285 = scalar_lea.vmem %s0, %s284
      $region52: #{_forward_impl.1} parent=47 // pred_fallthru
        _
    $region48: #{_forward_impl.1} parent=5 // pred_fallthru
      _
    %p286 = scmp.le.s32.totalorder 1, %s15
    %p287 = scmp.lt.s32.totalorder %s15, 3
    %p288 = pnand %p286, %p287
    %p289 = pneg %p288
    // Predicated region
    $region53: #{_forward_impl.1} parent=5 // pred_check
      _
    $region54: #{_forward_impl.1} parent=5 // pred_check_branch
      %291 = sbr.rel (%p288) target = $region56
    $region55: #{_forward_impl.1} parent=5 // pred_region
      %s292 = ssub.s32 %s15, 1
      %p293 = scmp.lt.s32.totalorder %s20, 1
      %s294 = scalar_select %p293, %s20, 1
      %s295 = smul.addr %s294, 32
      %s296 = smul.addr %s295, 8
      %s297 = scalar_lea.vmem %s0, %s296
      %p298 = pneg %p41
      %p299 = pneg %p38
      %p300 = pneg %p62
      %p301 = pneg %p59
      %p302 = pneg %p83
      %p303 = pneg %p80
      %p304 = pneg %p104
      %p305 = pneg %p101
      %p306 = pneg %p125
      %p307 = pneg %p122
      %p308 = pneg %p146
      %p309 = pneg %p143
      %p310 = pneg %p167
      %p311 = pneg %p164
      %p312 = pneg %p188
      %p313 = pneg %p185
      %p314 = pneg %p209
      %p315 = pneg %p206
      %p316 = pneg %p235
      %p317 = pneg %p232
      %p318 = scmp.lt.s32.totalorder %s20, 1
      %s319 = scalar_select %p318, %s20, 1
      %s320 = smul.addr %s319, 32
      %s321 = smul.addr %s320, 8
      %s322 = scalar_lea.vmem %s9, %s321
      %p323 = scmp.lt.s32.totalorder %s20, 1
      %s324 = scalar_select %p323, %s20, 1
      %s325 = smul.addr %s324, 32
      %s326 = smul.addr %s325, 8
      %s327 = scalar_lea.vmem %s0, %s326
      %p328 = scmp.lt.s32.totalorder %s20, 1
      %s329 = scalar_select %p328, %s20, 1
      %s330 = smul.addr %s329, 32
      %s331 = smul.addr %s330, 8
      %s332 = scalar_lea.vmem %s9, %s331
      %v334 = vld [vmem:[%s327] sm:$0xff]
      %v335 = vld [vmem:[%s327 + $0x8] sm:$0xff]
      %v336 = vld [vmem:[%s327 + $0x10] sm:$0xff]
      %v337 = vld [vmem:[%s327 + $0x18] sm:$0xff]
      %v338 = vld [vmem:[%s327 + $0x20] sm:$0xff]
      %v339 = vld [vmem:[%s327 + $0x28] sm:$0xff]
      %v340 = vld [vmem:[%s327 + $0x30] sm:$0xff]
      %v341 = vld [vmem:[%s327 + $0x38] sm:$0xff]
      %v342 = vld [vmem:[%s327 + $0x40] sm:$0xff]
      %v343 = vld [vmem:[%s327 + $0x48] sm:$0xff]
      %v344 = vld [vmem:[%s327 + $0x50] sm:$0xff]
      %v345 = vld [vmem:[%s327 + $0x58] sm:$0xff]
      %v346 = vld [vmem:[%s327 + $0x60] sm:$0xff]
      %v347 = vld [vmem:[%s327 + $0x68] sm:$0xff]
      %v348 = vld [vmem:[%s327 + $0x70] sm:$0xff]
      %v349 = vld [vmem:[%s327 + $0x78] sm:$0xff]
      %v350 = vld [vmem:[%s327 + $0x80] sm:$0xff]
      %v351 = vld [vmem:[%s327 + $0x88] sm:$0xff]
      %v352 = vld [vmem:[%s327 + $0x90] sm:$0xff]
      %v353 = vld [vmem:[%s327 + $0x98] sm:$0xff]
      %v354 = vld [vmem:[%s327 + $0xa0] sm:$0xff]
      %v355 = vld [vmem:[%s327 + $0xa8] sm:$0xff]
      %v356 = vld [vmem:[%s327 + $0xb0] sm:$0xff]
      %v357 = vld [vmem:[%s327 + $0xb8] sm:$0xff]
      %v358 = vld [vmem:[%s327 + $0xc0] sm:$0xff]
      %v359 = vld [vmem:[%s327 + $0xc8] sm:$0xff]
      %v360 = vld [vmem:[%s327 + $0xd0] sm:$0xff]
      %v361 = vld [vmem:[%s327 + $0xd8] sm:$0xff]
      %v362 = vld [vmem:[%s327 + $0xe0] sm:$0xff]
      %v363 = vld [vmem:[%s327 + $0xe8] sm:$0xff]
      %v364 = vld [vmem:[%s327 + $0xf0] sm:$0xff]
      %v365 = vld [vmem:[%s327 + $0xf8] sm:$0xff]
      %v366 = vpack.c.bf16 %v335, %v334
      %v367 = vpack.c.bf16 %v337, %v336
      %v368 = vpack.c.bf16 %v339, %v338
      %v369 = vpack.c.bf16 %v341, %v340
      %v370 = vpack.c.bf16 %v343, %v342
      %v371 = vpack.c.bf16 %v345, %v344
      %v372 = vpack.c.bf16 %v347, %v346
      %v373 = vpack.c.bf16 %v349, %v348
      %v374 = vpack.c.bf16 %v351, %v350
      %v375 = vpack.c.bf16 %v353, %v352
      %v376 = vpack.c.bf16 %v355, %v354
      %v377 = vpack.c.bf16 %v357, %v356
      %v378 = vpack.c.bf16 %v359, %v358
      %v379 = vpack.c.bf16 %v361, %v360
      %v380 = vpack.c.bf16 %v363, %v362
      %v381 = vpack.c.bf16 %v365, %v364
      %v382 = vld [vmem:[%s1] sm:$0xf]
      %v383 = vld [vmem:[%s1 + $0x4] sm:$0xf]
      %v384 = vld [vmem:[%s1 + $0x8] sm:$0xf]
      %v385 = vld [vmem:[%s1 + $0xc] sm:$0xf]
      %v386 = vld [vmem:[%s1 + $0x10] sm:$0xf]
      %v387 = vld [vmem:[%s1 + $0x14] sm:$0xf]
      %v388 = vld [vmem:[%s1 + $0x18] sm:$0xf]
      %v389 = vld [vmem:[%s1 + $0x1c] sm:$0xf]
      %v390 = vld [vmem:[%s1 + $0x20] sm:$0xf]
      %v391 = vld [vmem:[%s1 + $0x24] sm:$0xf]
      %v392 = vld [vmem:[%s1 + $0x28] sm:$0xf]
      %v393 = vld [vmem:[%s1 + $0x2c] sm:$0xf]
      %v394 = vld [vmem:[%s1 + $0x30] sm:$0xf]
      %v395 = vld [vmem:[%s1 + $0x34] sm:$0xf]
      %v396 = vld [vmem:[%s1 + $0x38] sm:$0xf]
      %v397 = vld [vmem:[%s1 + $0x3c] sm:$0xf]
      %v398 = vld [vmem:[%s2] sm:$0x1]
      %v400 = vlaneseq
      %v401 = vshrl.u32 %v400, 7
      %v402 = vsub.s32 0, %v401
      %v403 = vrot.slane %v398, %v402
      %v421 = vunpack.c.l.b16 %v382
      %v422 = vunpack.c.l.b16 %v383
      %v423 = vunpack.c.l.b16 %v384
      %v424 = vunpack.c.l.b16 %v385
      %v425 = vunpack.c.l.b16 %v386
      %v426 = vunpack.c.l.b16 %v387
      %v427 = vunpack.c.l.b16 %v388
      %v428 = vunpack.c.l.b16 %v389
      %v429 = vunpack.c.l.b16 %v390
      %v430 = vunpack.c.l.b16 %v391
      %v431 = vunpack.c.l.b16 %v392
      %v432 = vunpack.c.l.b16 %v393
      %v433 = vunpack.c.l.b16 %v394
      %v434 = vunpack.c.l.b16 %v395
      %v435 = vunpack.c.l.b16 %v396
      %v436 = vunpack.c.l.b16 %v397
      %v437 = vpack.c.b16 %v422, %v421
      %v438 = vpack.c.b16 %v424, %v423
      %v439 = vpack.c.b16 %v426, %v425
      %v440 = vpack.c.b16 %v428, %v427
      %v441 = vpack.c.b16 %v430, %v429
      %v442 = vpack.c.b16 %v432, %v431
      %v443 = vpack.c.b16 %v434, %v433
      %v444 = vpack.c.b16 %v436, %v435
      %453 = vmatprep.subr.bf16.mxu0 0
      %454 = vmatpush1.bf16.msra.mxu0 %v437
      %455 = vmatprep.subr.bf16.mxu0 0
      %456 = vmatpush1.bf16.msra.mxu0 %v438
      %457 = vmatprep.subr.bf16.mxu0 0
      %458 = vmatpush1.bf16.msra.mxu0 %v439
      %459 = vmatprep.subr.bf16.mxu0 0
      %460 = vmatpush1.bf16.msra.mxu0 %v440
      %461 = vmatprep.subr.bf16.mxu0 0
      %462 = vmatpush1.bf16.msra.mxu0 %v441
      %463 = vmatprep.subr.bf16.mxu0 0
      %464 = vmatpush1.bf16.msra.mxu0 %v442
      %465 = vmatprep.subr.bf16.mxu0 0
      %466 = vmatpush1.bf16.msra.mxu0 %v443
      %467 = vmatprep.subr.bf16.mxu0 0
      %468 = vmatpush1.bf16.msra.mxu0 %v444
      %469 = vmatprep.subr.bf16.mxu0 0
      %470 = vmatpush1.bf16.msra.mxu0 0
      %471 = vmatprep.subr.bf16.mxu0 0
      %472 = vmatpush1.bf16.msra.mxu0 0
      %473 = vmatprep.subr.bf16.mxu0 0
      %474 = vmatpush1.bf16.msra.mxu0 0
      %475 = vmatprep.subr.bf16.mxu0 0
      %476 = vmatpush1.bf16.msra.mxu0 0
      %477 = vmatprep.subr.bf16.mxu0 0
      %478 = vmatpush1.bf16.msra.mxu0 0
      %479 = vmatprep.subr.bf16.mxu0 0
      %480 = vmatpush1.bf16.msra.mxu0 0
      %481 = vmatprep.subr.bf16.mxu0 0
      %482 = vmatpush1.bf16.msra.mxu0 0
      %483 = vmatprep.subr.bf16.mxu0 0
      %484 = vmatpush1.bf16.msra.mxu0 0
      %485 = vmatprep.mubr.bf16.mxu0 0
      %486 = vmatmul.mubr.bf16.gmra.mrb[0].mxu0 %v366
      %v487 = vpop.f32.mrb[0].mxu0
      %v488 = vadd.f32 %v403, %v487
      %v489 = vpop.f32.mrb[0].mxu0
      %v490 = vpop.f32.mrb[0].mxu0
      %v491 = vadd.f32 %v403, %v490
      %v492 = vpop.f32.mrb[0].mxu0
      %493 = vmatprep.mubr.bf16.mxu0 0
      %494 = vmatmul.mubr.bf16.gmra.mrb[0].mxu0 %v367
      %v495 = vpop.f32.mrb[0].mxu0
      %v496 = vadd.f32 %v403, %v495
      %v497 = vpop.f32.mrb[0].mxu0
      %v498 = vpop.f32.mrb[0].mxu0
      %v499 = vadd.f32 %v403, %v498
      %v500 = vpop.f32.mrb[0].mxu0
      %501 = vmatprep.mubr.bf16.mxu0 0
      %502 = vmatmul.mubr.bf16.gmra.mrb[0].mxu0 %v368
      %v503 = vpop.f32.mrb[0].mxu0
      %v504 = vadd.f32 %v403, %v503
      %v505 = vpop.f32.mrb[0].mxu0
      %v506 = vpop.f32.mrb[0].mxu0
      %v507 = vadd.f32 %v403, %v506
      %v508 = vpop.f32.mrb[0].mxu0
      %509 = vmatprep.mubr.bf16.mxu0 0
      %510 = vmatmul.mubr.bf16.gmra.mrb[0].mxu0 %v369
      %v511 = vpop.f32.mrb[0].mxu0
      %v512 = vadd.f32 %v403, %v511
      %v513 = vpop.f32.mrb[0].mxu0
      %v514 = vpop.f32.mrb[0].mxu0
      %v515 = vadd.f32 %v403, %v514
      %v516 = vpop.f32.mrb[0].mxu0
      %517 = vmatprep.mubr.bf16.mxu0 0
      %518 = vmatmul.mubr.bf16.gmra.mrb[0].mxu0 %v370
      %v519 = vpop.f32.mrb[0].mxu0
      %v520 = vadd.f32 %v403, %v519
      %v521 = vpop.f32.mrb[0].mxu0
      %v522 = vpop.f32.mrb[0].mxu0
      %v523 = vadd.f32 %v403, %v522
      %v524 = vpop.f32.mrb[0].mxu0
      %525 = vmatprep.mubr.bf16.mxu0 0
      %526 = vmatmul.mubr.bf16.gmra.mrb[0].mxu0 %v371
      %v527 = vpop.f32.mrb[0].mxu0
      %v528 = vadd.f32 %v403, %v527
      %v529 = vpop.f32.mrb[0].mxu0
      %v530 = vpop.f32.mrb[0].mxu0
      %v531 = vadd.f32 %v403, %v530
      %v532 = vpop.f32.mrb[0].mxu0
      %533 = vmatprep.mubr.bf16.mxu0 0
      %534 = vmatmul.mubr.bf16.gmra.mrb[0].mxu0 %v372
      %v535 = vpop.f32.mrb[0].mxu0
      %v536 = vadd.f32 %v403, %v535
      %v537 = vpop.f32.mrb[0].mxu0
      %v538 = vpop.f32.mrb[0].mxu0
      %v539 = vadd.f32 %v403, %v538
      %v540 = vpop.f32.mrb[0].mxu0
      %541 = vmatprep.mubr.bf16.mxu0 0
      %542 = vmatmul.mubr.bf16.gmra.mrb[0].mxu0 %v373
      %v543 = vpop.f32.mrb[0].mxu0
      %v544 = vadd.f32 %v403, %v543
      %v545 = vpop.f32.mrb[0].mxu0
      %v546 = vpop.f32.mrb[0].mxu0
      %v547 = vadd.f32 %v403, %v546
      %v548 = vpop.f32.mrb[0].mxu0
      %549 = vmatprep.mubr.bf16.mxu0 0
      %550 = vmatmul.mubr.bf16.gmra.mrb[0].mxu0 %v374
      %v551 = vpop.f32.mrb[0].mxu0
      %v552 = vadd.f32 %v403, %v551
      %v553 = vpop.f32.mrb[0].mxu0
      %v554 = vpop.f32.mrb[0].mxu0
      %v555 = vadd.f32 %v403, %v554
      %v556 = vpop.f32.mrb[0].mxu0
      %557 = vmatprep.mubr.bf16.mxu0 0
      %558 = vmatmul.mubr.bf16.gmra.mrb[0].mxu0 %v375
      %v559 = vpop.f32.mrb[0].mxu0
      %v560 = vadd.f32 %v403, %v559
      %v561 = vpop.f32.mrb[0].mxu0
      %v562 = vpop.f32.mrb[0].mxu0
      %v563 = vadd.f32 %v403, %v562
      %v564 = vpop.f32.mrb[0].mxu0
      %565 = vmatprep.mubr.bf16.mxu0 0
      %566 = vmatmul.mubr.bf16.gmra.mrb[0].mxu0 %v376
      %v567 = vpop.f32.mrb[0].mxu0
      %v568 = vadd.f32 %v403, %v567
      %v569 = vpop.f32.mrb[0].mxu0
      %v570 = vpop.f32.mrb[0].mxu0
      %v571 = vadd.f32 %v403, %v570
      %v572 = vpop.f32.mrb[0].mxu0
      %573 = vmatprep.mubr.bf16.mxu0 0
      %574 = vmatmul.mubr.bf16.gmra.mrb[0].mxu0 %v377
      %v575 = vpop.f32.mrb[0].mxu0
      %v576 = vadd.f32 %v403, %v575
      %v577 = vpop.f32.mrb[0].mxu0
      %v578 = vpop.f32.mrb[0].mxu0
      %v579 = vadd.f32 %v403, %v578
      %v580 = vpop.f32.mrb[0].mxu0
      %581 = vmatprep.mubr.bf16.mxu0 0
      %582 = vmatmul.mubr.bf16.gmra.mrb[0].mxu0 %v378
      %v583 = vpop.f32.mrb[0].mxu0
      %v584 = vadd.f32 %v403, %v583
      %v585 = vpop.f32.mrb[0].mxu0
      %v586 = vpop.f32.mrb[0].mxu0
      %v587 = vadd.f32 %v403, %v586
      %v588 = vpop.f32.mrb[0].mxu0
      %589 = vmatprep.mubr.bf16.mxu0 0
      %590 = vmatmul.mubr.bf16.gmra.mrb[0].mxu0 %v379
      %v591 = vpop.f32.mrb[0].mxu0
      %v592 = vadd.f32 %v403, %v591
      %v593 = vpop.f32.mrb[0].mxu0
      %v594 = vpop.f32.mrb[0].mxu0
      %v595 = vadd.f32 %v403, %v594
      %v596 = vpop.f32.mrb[0].mxu0
      %597 = vmatprep.mubr.bf16.mxu0 0
      %598 = vmatmul.mubr.bf16.gmra.mrb[0].mxu0 %v380
      %v599 = vpop.f32.mrb[0].mxu0
      %v600 = vadd.f32 %v403, %v599
      %v601 = vpop.f32.mrb[0].mxu0
      %v602 = vpop.f32.mrb[0].mxu0
      %v603 = vadd.f32 %v403, %v602
      %v604 = vpop.f32.mrb[0].mxu0
      %605 = vmatprep.mubr.bf16.mxu0 0
      %606 = vmatmul.mubr.bf16.gmra.mrb[0].mxu0 %v381
      %v607 = vpop.f32.mrb[0].mxu0
      %v608 = vadd.f32 %v403, %v607
      %v609 = vpop.f32.mrb[0].mxu0
      %v610 = vpop.f32.mrb[0].mxu0
      %v611 = vadd.f32 %v403, %v610
      %v612 = vpop.f32.mrb[0].mxu0
      %613 = vdwg.mxu0
      %v614 = vmax.f32 %v488, 0.0
      %v615 = vmax.f32 %v491, 0.0
      %v616 = vmax.f32 %v496, 0.0
      %v617 = vmax.f32 %v499, 0.0
      %v618 = vmax.f32 %v504, 0.0
      %v619 = vmax.f32 %v507, 0.0
      %v620 = vmax.f32 %v512, 0.0
      %v621 = vmax.f32 %v515, 0.0
      %v622 = vmax.f32 %v520, 0.0
      %v623 = vmax.f32 %v523, 0.0
      %v624 = vmax.f32 %v528, 0.0
      %v625 = vmax.f32 %v531, 0.0
      %v626 = vmax.f32 %v536, 0.0
      %v627 = vmax.f32 %v539, 0.0
      %v628 = vmax.f32 %v544, 0.0
      %v629 = vmax.f32 %v547, 0.0
      %v630 = vmax.f32 %v552, 0.0
      %v631 = vmax.f32 %v555, 0.0
      %v632 = vmax.f32 %v560, 0.0
      %v633 = vmax.f32 %v563, 0.0
      %v634 = vmax.f32 %v568, 0.0
      %v635 = vmax.f32 %v571, 0.0
      %v636 = vmax.f32 %v576, 0.0
      %v637 = vmax.f32 %v579, 0.0
      %v638 = vmax.f32 %v584, 0.0
      %v639 = vmax.f32 %v587, 0.0
      %v640 = vmax.f32 %v592, 0.0
      %v641 = vmax.f32 %v595, 0.0
      %v642 = vmax.f32 %v600, 0.0
      %v643 = vmax.f32 %v603, 0.0
      %v644 = vmax.f32 %v608, 0.0
      %v645 = vmax.f32 %v611, 0.0
      %646 = vst [vmem:[#allocation2] sm:$0xff] 0
      %647 = vst [vmem:[#allocation2 + $0x88] sm:$0xff] 0
      %s648 = scalar_lea.vmem [#allocation2], 144
      %649 = vst [vmem:[%s648] sm:$0xff] 0
      %650 = vst [vmem:[%s648 + $0x88] sm:$0xff] 0
      %s651 = scalar_lea.vmem [#allocation2], 288
      %652 = vst [vmem:[%s651] sm:$0xff] 0
      %653 = vst [vmem:[%s651 + $0x88] sm:$0xff] 0
      %v654 = vpack.c.bf16 %v615, %v614
      %v655 = vpack.c.bf16 %v617, %v616
      %v656 = vpack.c.bf16 %v619, %v618
      %v657 = vpack.c.bf16 %v621, %v620
      %v658 = vpack.c.bf16 %v623, %v622
      %v659 = vpack.c.bf16 %v625, %v624
      %v660 = vpack.c.bf16 %v627, %v626
      %v661 = vpack.c.bf16 %v629, %v628
      %v662 = vpack.c.bf16 %v631, %v630
      %v663 = vpack.c.bf16 %v633, %v632
      %v664 = vpack.c.bf16 %v635, %v634
      %v665 = vpack.c.bf16 %v637, %v636
      %v666 = vpack.c.bf16 %v639, %v638
      %v667 = vpack.c.bf16 %v641, %v640
      %v668 = vpack.c.bf16 %v643, %v642
      %v669 = vpack.c.bf16 %v645, %v644
      %670 = vst [vmem:[%s648 + $0x8] sm:$0xff] %v654
      %671 = vst [vmem:[%s648 + $0x10] sm:$0xff] %v655
      %672 = vst [vmem:[%s648 + $0x18] sm:$0xff] %v656
      %673 = vst [vmem:[%s648 + $0x20] sm:$0xff] %v657
      %674 = vst [vmem:[%s648 + $0x28] sm:$0xff] %v658
      %675 = vst [vmem:[%s648 + $0x30] sm:$0xff] %v659
      %676 = vst [vmem:[%s648 + $0x38] sm:$0xff] %v660
      %677 = vst [vmem:[%s648 + $0x40] sm:$0xff] %v661
      %678 = vst [vmem:[%s648 + $0x48] sm:$0xff] %v662
      %679 = vst [vmem:[%s648 + $0x50] sm:$0xff] %v663
      %680 = vst [vmem:[%s648 + $0x58] sm:$0xff] %v664
      %681 = vst [vmem:[%s648 + $0x60] sm:$0xff] %v665
      %682 = vst [vmem:[%s648 + $0x68] sm:$0xff] %v666
      %683 = vst [vmem:[%s648 + $0x70] sm:$0xff] %v667
      %684 = vst [vmem:[%s648 + $0x78] sm:$0xff] %v668
      %685 = vst [vmem:[%s648 + $0x80] sm:$0xff] %v669
      %v686 = vld [vmem:[%s7] sm:$0xff]
      %v687 = vld [vmem:[%s7 + $0x8] sm:$0xff]
      %v688 = vld [vmem:[%s7 + $0x10] sm:$0xff]
      %v689 = vld [vmem:[%s7 + $0x18] sm:$0xff]
      %v690 = vld [vmem:[%s7 + $0x20] sm:$0xff]
      %v691 = vld [vmem:[%s7 + $0x28] sm:$0xff]
      %v692 = vld [vmem:[%s7 + $0x30] sm:$0xff]
      %v693 = vld [vmem:[%s7 + $0x38] sm:$0xff]
      %v694 = vld [vmem:[%s7 + $0x40] sm:$0xff]
      %v695 = vld [vmem:[%s7 + $0x48] sm:$0xff]
      %v696 = vld [vmem:[%s7 + $0x50] sm:$0xff]
      %v697 = vld [vmem:[%s7 + $0x58] sm:$0xff]
      %v698 = vld [vmem:[%s7 + $0x60] sm:$0xff]
      %v699 = vld [vmem:[%s7 + $0x68] sm:$0xff]
      %v700 = vld [vmem:[%s7 + $0x70] sm:$0xff]
      %v701 = vld [vmem:[%s7 + $0x78] sm:$0xff]
      %v702 = vld [vmem:[%s7 + $0x80] sm:$0xff]
      %v703 = vld [vmem:[%s7 + $0x88] sm:$0xff]
      %v704 = vld [vmem:[%s7 + $0x90] sm:$0xff]
      %v705 = vld [vmem:[%s7 + $0x98] sm:$0xff]
      %v706 = vld [vmem:[%s7 + $0xa0] sm:$0xff]
      %v707 = vld [vmem:[%s7 + $0xa8] sm:$0xff]
      %v708 = vld [vmem:[%s7 + $0xb0] sm:$0xff]
      %v709 = vld [vmem:[%s7 + $0xb8] sm:$0xff]
      %v710 = vld [vmem:[%s7 + $0xc0] sm:$0xff]
      %v711 = vld [vmem:[%s7 + $0xc8] sm:$0xff]
      %v712 = vld [vmem:[%s7 + $0xd0] sm:$0xff]
      %v713 = vld [vmem:[%s7 + $0xd8] sm:$0xff]
      %v714 = vld [vmem:[%s7 + $0xe0] sm:$0xff]
      %v715 = vld [vmem:[%s7 + $0xe8] sm:$0xff]
      %v716 = vld [vmem:[%s7 + $0xf0] sm:$0xff]
      %v717 = vld [vmem:[%s7 + $0xf8] sm:$0xff]
      %v718 = vld [vmem:[%s648] sm:$0x80]
      %v719 = vld [vmem:[%s648 + $0x8] sm:$0xff]
      %v720 = vld [vmem:[%s648 + $0x10] sm:$0xff]
      %v721 = vld [vmem:[%s648 + $0x18] sm:$0xff]
      %v722 = vld [vmem:[%s648 + $0x20] sm:$0xff]
      %v723 = vld [vmem:[%s648 + $0x28] sm:$0xff]
      %v724 = vld [vmem:[%s648 + $0x30] sm:$0xff]
      %v725 = vld [vmem:[%s648 + $0x38] sm:$0xff]
      %v726 = vld [vmem:[%s648 + $0x40] sm:$0xff]
      %v727 = vld [vmem:[%s648 + $0x48] sm:$0xff]
      %v728 = vld [vmem:[%s648 + $0x50] sm:$0xff]
      %v729 = vld [vmem:[%s648 + $0x58] sm:$0xff]
      %v730 = vld [vmem:[%s648 + $0x60] sm:$0xff]
      %v731 = vld [vmem:[%s648 + $0x68] sm:$0xff]
      %v732 = vld [vmem:[%s648 + $0x70] sm:$0xff]
      %v733 = vld [vmem:[%s648 + $0x78] sm:$0xff]
      %v734 = vld [vmem:[%s648 + $0x80] sm:$0xff]
      %vm752 = vcmask 1043456
      %v753 = vrot.slane %v718, 4
      %v754 = vrot.slane %v719, 4
      %v755 = vsel %vm752, %v753, %v754
      %v756 = vrot.slane %v720, 4
      %v757 = vsel %vm752, %v754, %v756
      %v758 = vrot.slane %v721, 4
      %v759 = vsel %vm752, %v756, %v758
      %v760 = vrot.slane %v722, 4
      %v761 = vsel %vm752, %v758, %v760
      %v762 = vrot.slane %v723, 4
      %v763 = vsel %vm752, %v760, %v762
      %v764 = vrot.slane %v724, 4
      %v765 = vsel %vm752, %v762, %v764
      %v766 = vrot.slane %v725, 4
      %v767 = vsel %vm752, %v764, %v766
      %v768 = vrot.slane %v726, 4
      %v769 = vsel %vm752, %v766, %v768
      %v770 = vrot.slane %v727, 4
      %v771 = vsel %vm752, %v768, %v770
      %v772 = vrot.slane %v728, 4
      %v773 = vsel %vm752, %v770, %v772
      %v774 = vrot.slane %v729, 4
      %v775 = vsel %vm752, %v772, %v774
      %v776 = vrot.slane %v730, 4
      %v777 = vsel %vm752, %v774, %v776
      %v778 = vrot.slane %v731, 4
      %v779 = vsel %vm752, %v776, %v778
      %v780 = vrot.slane %v732, 4
      %v781 = vsel %vm752, %v778, %v780
      %v782 = vrot.slane %v733, 4
      %v783 = vsel %vm752, %v780, %v782
      %v784 = vrot.slane %v734, 4
      %v785 = vsel %vm752, %v782, %v784
      %v803 = vunpack.c.l.bf16 %v755
      %v804 = vunpack.c.h.bf16 %v755
      %v805 = vunpack.c.l.bf16 %v757
      %v806 = vunpack.c.h.bf16 %v757
      %v807 = vunpack.c.l.bf16 %v759
      %v808 = vunpack.c.h.bf16 %v759
      %v809 = vunpack.c.l.bf16 %v761
      %v810 = vunpack.c.h.bf16 %v761
      %v811 = vunpack.c.l.bf16 %v763
      %v812 = vunpack.c.h.bf16 %v763
      %v813 = vunpack.c.l.bf16 %v765
      %v814 = vunpack.c.h.bf16 %v765
      %v815 = vunpack.c.l.bf16 %v767
      %v816 = vunpack.c.h.bf16 %v767
      %v817 = vunpack.c.l.bf16 %v769
      %v818 = vunpack.c.h.bf16 %v769
      %v819 = vunpack.c.l.bf16 %v771
      %v820 = vunpack.c.h.bf16 %v771
      %v821 = vunpack.c.l.bf16 %v773
      %v822 = vunpack.c.h.bf16 %v773
      %v823 = vunpack.c.l.bf16 %v775
      %v824 = vunpack.c.h.bf16 %v775
      %v825 = vunpack.c.l.bf16 %v777
      %v826 = vunpack.c.h.bf16 %v777
      %v827 = vunpack.c.l.bf16 %v779
      %v828 = vunpack.c.h.bf16 %v779
      %v829 = vunpack.c.l.bf16 %v781
      %v830 = vunpack.c.h.bf16 %v781
      %v831 = vunpack.c.l.bf16 %v783
      %v832 = vunpack.c.h.bf16 %v783
      %v833 = vunpack.c.l.bf16 %v785
      %v834 = vunpack.c.h.bf16 %v785
      %v835 = vunpack.c.l.bf16 %v784
      %837 = vset.pattern.permute.xlu0 0
      %838 = vperm.xlu0 %837, %v686
      %v839 = vpop.permute.xlu0 %838
      %842 = vset.pattern.permute.xlu0 0
      %843 = vperm.xlu0 %842, %v687
      %v844 = vpop.permute.xlu0 %843
      %847 = vset.pattern.permute.xlu0 0
      %848 = vperm.xlu0 %847, %v688
      %v849 = vpop.permute.xlu0 %848
      %852 = vset.pattern.permute.xlu0 0
      %853 = vperm.xlu0 %852, %v689
      %v854 = vpop.permute.xlu0 %853
      %857 = vset.pattern.permute.xlu0 0
      %858 = vperm.xlu0 %857, %v690
      %v859 = vpop.permute.xlu0 %858
      %862 = vset.pattern.permute.xlu0 0
      %863 = vperm.xlu0 %862, %v691
      %v864 = vpop.permute.xlu0 %863
      %867 = vset.pattern.permute.xlu0 0
      %868 = vperm.xlu0 %867, %v692
      %v869 = vpop.permute.xlu0 %868
      %872 = vset.pattern.permute.xlu0 0
      %873 = vperm.xlu0 %872, %v693
      %v874 = vpop.permute.xlu0 %873
      %877 = vset.pattern.permute.xlu0 0
      %878 = vperm.xlu0 %877, %v694
      %v879 = vpop.permute.xlu0 %878
      %882 = vset.pattern.permute.xlu0 0
      %883 = vperm.xlu0 %882, %v695
      %v884 = vpop.permute.xlu0 %883
      %887 = vset.pattern.permute.xlu0 0
      %888 = vperm.xlu0 %887, %v696
      %v889 = vpop.permute.xlu0 %888
      %892 = vset.pattern.permute.xlu0 0
      %893 = vperm.xlu0 %892, %v697
      %v894 = vpop.permute.xlu0 %893
      %897 = vset.pattern.permute.xlu0 0
      %898 = vperm.xlu0 %897, %v698
      %v899 = vpop.permute.xlu0 %898
      %902 = vset.pattern.permute.xlu0 0
      %903 = vperm.xlu0 %902, %v699
      %v904 = vpop.permute.xlu0 %903
      %907 = vset.pattern.permute.xlu0 0
      %908 = vperm.xlu0 %907, %v700
      %v909 = vpop.permute.xlu0 %908
      %912 = vset.pattern.permute.xlu0 0
      %913 = vperm.xlu0 %912, %v701
      %v914 = vpop.permute.xlu0 %913
      %917 = vset.pattern.permute.xlu0 0
      %918 = vperm.xlu0 %917, %v702
      %v919 = vpop.permute.xlu0 %918
      %922 = vset.pattern.permute.xlu0 0
      %923 = vperm.xlu0 %922, %v703
      %v924 = vpop.permute.xlu0 %923
      %927 = vset.pattern.permute.xlu0 0
      %928 = vperm.xlu0 %927, %v704
      %v929 = vpop.permute.xlu0 %928
      %932 = vset.pattern.permute.xlu0 0
      %933 = vperm.xlu0 %932, %v705
      %v934 = vpop.permute.xlu0 %933
      %937 = vset.pattern.permute.xlu0 0
      %938 = vperm.xlu0 %937, %v706
      %v939 = vpop.permute.xlu0 %938
      %942 = vset.pattern.permute.xlu0 0
      %943 = vperm.xlu0 %942, %v707
      %v944 = vpop.permute.xlu0 %943
      %947 = vset.pattern.permute.xlu0 0
      %948 = vperm.xlu0 %947, %v708
      %v949 = vpop.permute.xlu0 %948
      %952 = vset.pattern.permute.xlu0 0
      %953 = vperm.xlu0 %952, %v709
      %v954 = vpop.permute.xlu0 %953
      %957 = vset.pattern.permute.xlu0 0
      %958 = vperm.xlu0 %957, %v710
      %v959 = vpop.permute.xlu0 %958
      %962 = vset.pattern.permute.xlu0 0
      %963 = vperm.xlu0 %962, %v711
      %v964 = vpop.permute.xlu0 %963
      %967 = vset.pattern.permute.xlu0 0
      %968 = vperm.xlu0 %967, %v712
      %v969 = vpop.permute.xlu0 %968
      %972 = vset.pattern.permute.xlu0 0
      %973 = vperm.xlu0 %972, %v713
      %v974 = vpop.permute.xlu0 %973
      %977 = vset.pattern.permute.xlu0 0
      %978 = vperm.xlu0 %977, %v714
      %v979 = vpop.permute.xlu0 %978
      %982 = vset.pattern.permute.xlu0 0
      %983 = vperm.xlu0 %982, %v715
      %v984 = vpop.permute.xlu0 %983
      %987 = vset.pattern.permute.xlu0 0
      %988 = vperm.xlu0 %987, %v716
      %v989 = vpop.permute.xlu0 %988
      %992 = vset.pattern.permute.xlu0 0
      %993 = vperm.xlu0 %992, %v717
      %v994 = vpop.permute.xlu0 %993
      %vm1029 = vcmask 1040384
      %v1030 = vrot.slane %v803, 7
      %v1031 = vrot.slane %v804, 7
      %v1032 = vsel %vm1029, %v1030, %v1031
      %v1033 = vrot.slane %v805, 7
      %v1034 = vsel %vm1029, %v1031, %v1033
      %v1035 = vrot.slane %v806, 7
      %v1036 = vsel %vm1029, %v1033, %v1035
      %v1037 = vrot.slane %v807, 7
      %v1038 = vsel %vm1029, %v1035, %v1037
      %v1039 = vrot.slane %v808, 7
      %v1040 = vsel %vm1029, %v1037, %v1039
      %v1041 = vrot.slane %v809, 7
      %v1042 = vsel %vm1029, %v1039, %v1041
      %v1043 = vrot.slane %v810, 7
      %v1044 = vsel %vm1029, %v1041, %v1043
      %v1045 = vrot.slane %v811, 7
      %v1046 = vsel %vm1029, %v1043, %v1045
      %v1047 = vrot.slane %v812, 7
      %v1048 = vsel %vm1029, %v1045, %v1047
      %v1049 = vrot.slane %v813, 7
      %v1050 = vsel %vm1029, %v1047, %v1049
      %v1051 = vrot.slane %v814, 7
      %v1052 = vsel %vm1029, %v1049, %v1051
      %v1053 = vrot.slane %v815, 7
      %v1054 = vsel %vm1029, %v1051, %v1053
      %v1055 = vrot.slane %v816, 7
      %v1056 = vsel %vm1029, %v1053, %v1055
      %v1057 = vrot.slane %v817, 7
      %v1058 = vsel %vm1029, %v1055, %v1057
      %v1059 = vrot.slane %v818, 7
      %v1060 = vsel %vm1029, %v1057, %v1059
      %v1061 = vrot.slane %v819, 7
      %v1062 = vsel %vm1029, %v1059, %v1061
      %v1063 = vrot.slane %v820, 7
      %v1064 = vsel %vm1029, %v1061, %v1063
      %v1065 = vrot.slane %v821, 7
      %v1066 = vsel %vm1029, %v1063, %v1065
      %v1067 = vrot.slane %v822, 7
      %v1068 = vsel %vm1029, %v1065, %v1067
      %v1069 = vrot.slane %v823, 7
      %v1070 = vsel %vm1029, %v1067, %v1069
      %v1071 = vrot.slane %v824, 7
      %v1072 = vsel %vm1029, %v1069, %v1071
      %v1073 = vrot.slane %v825, 7
      %v1074 = vsel %vm1029, %v1071, %v1073
      %v1075 = vrot.slane %v826, 7
      %v1076 = vsel %vm1029, %v1073, %v1075
      %v1077 = vrot.slane %v827, 7
      %v1078 = vsel %vm1029, %v1075, %v1077
      %v1079 = vrot.slane %v828, 7
      %v1080 = vsel %vm1029, %v1077, %v1079
      %v1081 = vrot.slane %v829, 7
      %v1082 = vsel %vm1029, %v1079, %v1081
      %v1083 = vrot.slane %v830, 7
      %v1084 = vsel %vm1029, %v1081, %v1083
      %v1085 = vrot.slane %v831, 7
      %v1086 = vsel %vm1029, %v1083, %v1085
      %v1087 = vrot.slane %v832, 7
      %v1088 = vsel %vm1029, %v1085, %v1087
      %v1089 = vrot.slane %v833, 7
      %v1090 = vsel %vm1029, %v1087, %v1089
      %v1091 = vrot.slane %v834, 7
      %v1092 = vsel %vm1029, %v1089, %v1091
      %v1093 = vrot.slane %v835, 7
      %v1094 = vsel %vm1029, %v1091, %v1093
      %v1127 = vmul.f32 %v839, %v1032
      %v1128 = vmul.f32 %v844, %v1034
      %v1129 = vmul.f32 %v849, %v1036
      %v1130 = vmul.f32 %v854, %v1038
      %v1131 = vmul.f32 %v859, %v1040
      %v1132 = vmul.f32 %v864, %v1042
      %v1133 = vmul.f32 %v869, %v1044
      %v1134 = vmul.f32 %v874, %v1046
      %v1135 = vmul.f32 %v879, %v1048
      %v1136 = vmul.f32 %v884, %v1050
      %v1137 = vmul.f32 %v889, %v1052
      %v1138 = vmul.f32 %v894, %v1054
      %v1139 = vmul.f32 %v899, %v1056
      %v1140 = vmul.f32 %v904, %v1058
      %v1141 = vmul.f32 %v909, %v1060
      %v1142 = vmul.f32 %v914, %v1062
      %v1143 = vmul.f32 %v919, %v1064
      %v1144 = vmul.f32 %v924, %v1066
      %v1145 = vmul.f32 %v929, %v1068
      %v1146 = vmul.f32 %v934, %v1070
      %v1147 = vmul.f32 %v939, %v1072
      %v1148 = vmul.f32 %v944, %v1074
      %v1149 = vmul.f32 %v949, %v1076
      %v1150 = vmul.f32 %v954, %v1078
      %v1151 = vmul.f32 %v959, %v1080
      %v1152 = vmul.f32 %v964, %v1082
      %v1153 = vmul.f32 %v969, %v1084
      %v1154 = vmul.f32 %v974, %v1086
      %v1155 = vmul.f32 %v979, %v1088
      %v1156 = vmul.f32 %v984, %v1090
      %v1157 = vmul.f32 %v989, %v1092
      %v1158 = vmul.f32 %v994, %v1094
      %v1159 = vld [vmem:[%s8] sm:$0xff]
      %v1160 = vld [vmem:[%s8 + $0x8] sm:$0xff]
      %v1161 = vld [vmem:[%s8 + $0x10] sm:$0xff]
      %v1162 = vld [vmem:[%s8 + $0x18] sm:$0xff]
      %v1163 = vld [vmem:[%s8 + $0x20] sm:$0xff]
      %v1164 = vld [vmem:[%s8 + $0x28] sm:$0xff]
      %v1165 = vld [vmem:[%s8 + $0x30] sm:$0xff]
      %v1166 = vld [vmem:[%s8 + $0x38] sm:$0xff]
      %v1167 = vld [vmem:[%s8 + $0x40] sm:$0xff]
      %v1168 = vld [vmem:[%s8 + $0x48] sm:$0xff]
      %v1169 = vld [vmem:[%s8 + $0x50] sm:$0xff]
      %v1170 = vld [vmem:[%s8 + $0x58] sm:$0xff]
      %v1171 = vld [vmem:[%s8 + $0x60] sm:$0xff]
      %v1172 = vld [vmem:[%s8 + $0x68] sm:$0xff]
      %v1173 = vld [vmem:[%s8 + $0x70] sm:$0xff]
      %v1174 = vld [vmem:[%s8 + $0x78] sm:$0xff]
      %v1175 = vld [vmem:[%s8 + $0x80] sm:$0xff]
      %v1176 = vld [vmem:[%s8 + $0x88] sm:$0xff]
      %v1177 = vld [vmem:[%s8 + $0x90] sm:$0xff]
      %v1178 = vld [vmem:[%s8 + $0x98] sm:$0xff]
      %v1179 = vld [vmem:[%s8 + $0xa0] sm:$0xff]
      %v1180 = vld [vmem:[%s8 + $0xa8] sm:$0xff]
      %v1181 = vld [vmem:[%s8 + $0xb0] sm:$0xff]
      %v1182 = vld [vmem:[%s8 + $0xb8] sm:$0xff]
      %v1183 = vld [vmem:[%s8 + $0xc0] sm:$0xff]
      %v1184 = vld [vmem:[%s8 + $0xc8] sm:$0xff]
      %v1185 = vld [vmem:[%s8 + $0xd0] sm:$0xff]
      %v1186 = vld [vmem:[%s8 + $0xd8] sm:$0xff]
      %v1187 = vld [vmem:[%s8 + $0xe0] sm:$0xff]
      %v1188 = vld [vmem:[%s8 + $0xe8] sm:$0xff]
      %v1189 = vld [vmem:[%s8 + $0xf0] sm:$0xff]
      %v1190 = vld [vmem:[%s8 + $0xf8] sm:$0xff]
      %v1191 = vld [vmem:[%s648 + $0x8] sm:$0xff]
      %v1192 = vld [vmem:[%s648 + $0x10] sm:$0xff]
      %v1193 = vld [vmem:[%s648 + $0x18] sm:$0xff]
      %v1194 = vld [vmem:[%s648 + $0x20] sm:$0xff]
      %v1195 = vld [vmem:[%s648 + $0x28] sm:$0xff]
      %v1196 = vld [vmem:[%s648 + $0x30] sm:$0xff]
      %v1197 = vld [vmem:[%s648 + $0x38] sm:$0xff]
      %v1198 = vld [vmem:[%s648 + $0x40] sm:$0xff]
      %v1199 = vld [vmem:[%s648 + $0x48] sm:$0xff]
      %v1200 = vld [vmem:[%s648 + $0x50] sm:$0xff]
      %v1201 = vld [vmem:[%s648 + $0x58] sm:$0xff]
      %v1202 = vld [vmem:[%s648 + $0x60] sm:$0xff]
      %v1203 = vld [vmem:[%s648 + $0x68] sm:$0xff]
      %v1204 = vld [vmem:[%s648 + $0x70] sm:$0xff]
      %v1205 = vld [vmem:[%s648 + $0x78] sm:$0xff]
      %v1206 = vld [vmem:[%s648 + $0x80] sm:$0xff]
      %v1207 = vld [vmem:[%s648 + $0x88] sm:$0x1]
      %v1208 = vunpack.c.l.bf16 %v1191
      %v1209 = vunpack.c.h.bf16 %v1191
      %v1210 = vunpack.c.l.bf16 %v1192
      %v1211 = vunpack.c.h.bf16 %v1192
      %v1212 = vunpack.c.l.bf16 %v1193
      %v1213 = vunpack.c.h.bf16 %v1193
      %v1214 = vunpack.c.l.bf16 %v1194
      %v1215 = vunpack.c.h.bf16 %v1194
      %v1216 = vunpack.c.l.bf16 %v1195
      %v1217 = vunpack.c.h.bf16 %v1195
      %v1218 = vunpack.c.l.bf16 %v1196
      %v1219 = vunpack.c.h.bf16 %v1196
      %v1220 = vunpack.c.l.bf16 %v1197
      %v1221 = vunpack.c.h.bf16 %v1197
      %v1222 = vunpack.c.l.bf16 %v1198
      %v1223 = vunpack.c.h.bf16 %v1198
      %v1224 = vunpack.c.l.bf16 %v1199
      %v1225 = vunpack.c.h.bf16 %v1199
      %v1226 = vunpack.c.l.bf16 %v1200
      %v1227 = vunpack.c.h.bf16 %v1200
      %v1228 = vunpack.c.l.bf16 %v1201
      %v1229 = vunpack.c.h.bf16 %v1201
      %v1230 = vunpack.c.l.bf16 %v1202
      %v1231 = vunpack.c.h.bf16 %v1202
      %v1232 = vunpack.c.l.bf16 %v1203
      %v1233 = vunpack.c.h.bf16 %v1203
      %v1234 = vunpack.c.l.bf16 %v1204
      %v1235 = vunpack.c.h.bf16 %v1204
      %v1236 = vunpack.c.l.bf16 %v1205
      %v1237 = vunpack.c.h.bf16 %v1205
      %v1238 = vunpack.c.l.bf16 %v1206
      %v1239 = vunpack.c.h.bf16 %v1206
      %v1240 = vunpack.c.l.bf16 %v1207
      %1242 = vset.pattern.permute.xlu0 0
      %1243 = vperm.xlu0 %1242, %v1159
      %v1244 = vpop.permute.xlu0 %1243
      %1247 = vset.pattern.permute.xlu0 0
      %1248 = vperm.xlu0 %1247, %v1160
      %v1249 = vpop.permute.xlu0 %1248
      %1252 = vset.pattern.permute.xlu0 0
      %1253 = vperm.xlu0 %1252, %v1161
      %v1254 = vpop.permute.xlu0 %1253
      %1257 = vset.pattern.permute.xlu0 0
      %1258 = vperm.xlu0 %1257, %v1162
      %v1259 = vpop.permute.xlu0 %1258
      %1262 = vset.pattern.permute.xlu0 0
      %1263 = vperm.xlu0 %1262, %v1163
      %v1264 = vpop.permute.xlu0 %1263
      %1267 = vset.pattern.permute.xlu0 0
      %1268 = vperm.xlu0 %1267, %v1164
      %v1269 = vpop.permute.xlu0 %1268
      %1272 = vset.pattern.permute.xlu0 0
      %1273 = vperm.xlu0 %1272, %v1165
      %v1274 = vpop.permute.xlu0 %1273
      %1277 = vset.pattern.permute.xlu0 0
      %1278 = vperm.xlu0 %1277, %v1166
      %v1279 = vpop.permute.xlu0 %1278
      %1282 = vset.pattern.permute.xlu0 0
      %1283 = vperm.xlu0 %1282, %v1167
      %v1284 = vpop.permute.xlu0 %1283
      %1287 = vset.pattern.permute.xlu0 0
      %1288 = vperm.xlu0 %1287, %v1168
      %v1289 = vpop.permute.xlu0 %1288
      %1292 = vset.pattern.permute.xlu0 0
      %1293 = vperm.xlu0 %1292, %v1169
      %v1294 = vpop.permute.xlu0 %1293
      %1297 = vset.pattern.permute.xlu0 0
      %1298 = vperm.xlu0 %1297, %v1170
      %v1299 = vpop.permute.xlu0 %1298
      %1302 = vset.pattern.permute.xlu0 0
      %1303 = vperm.xlu0 %1302, %v1171
      %v1304 = vpop.permute.xlu0 %1303
      %1307 = vset.pattern.permute.xlu0 0
      %1308 = vperm.xlu0 %1307, %v1172
      %v1309 = vpop.permute.xlu0 %1308
      %1312 = vset.pattern.permute.xlu0 0
      %1313 = vperm.xlu0 %1312, %v1173
      %v1314 = vpop.permute.xlu0 %1313
      %1317 = vset.pattern.permute.xlu0 0
      %1318 = vperm.xlu0 %1317, %v1174
      %v1319 = vpop.permute.xlu0 %1318
      %1322 = vset.pattern.permute.xlu0 0
      %1323 = vperm.xlu0 %1322, %v1175
      %v1324 = vpop.permute.xlu0 %1323
      %1327 = vset.pattern.permute.xlu0 0
      %1328 = vperm.xlu0 %1327, %v1176
      %v1329 = vpop.permute.xlu0 %1328
      %1332 = vset.pattern.permute.xlu0 0
      %1333 = vperm.xlu0 %1332, %v1177
      %v1334 = vpop.permute.xlu0 %1333
      %1337 = vset.pattern.permute.xlu0 0
      %1338 = vperm.xlu0 %1337, %v1178
      %v1339 = vpop.permute.xlu0 %1338
      %1342 = vset.pattern.permute.xlu0 0
      %1343 = vperm.xlu0 %1342, %v1179
      %v1344 = vpop.permute.xlu0 %1343
      %1347 = vset.pattern.permute.xlu0 0
      %1348 = vperm.xlu0 %1347, %v1180
      %v1349 = vpop.permute.xlu0 %1348
      %1352 = vset.pattern.permute.xlu0 0
      %1353 = vperm.xlu0 %1352, %v1181
      %v1354 = vpop.permute.xlu0 %1353
      %1357 = vset.pattern.permute.xlu0 0
      %1358 = vperm.xlu0 %1357, %v1182
      %v1359 = vpop.permute.xlu0 %1358
      %1362 = vset.pattern.permute.xlu0 0
      %1363 = vperm.xlu0 %1362, %v1183
      %v1364 = vpop.permute.xlu0 %1363
      %1367 = vset.pattern.permute.xlu0 0
      %1368 = vperm.xlu0 %1367, %v1184
      %v1369 = vpop.permute.xlu0 %1368
      %1372 = vset.pattern.permute.xlu0 0
      %1373 = vperm.xlu0 %1372, %v1185
      %v1374 = vpop.permute.xlu0 %1373
      %1377 = vset.pattern.permute.xlu0 0
      %1378 = vperm.xlu0 %1377, %v1186
      %v1379 = vpop.permute.xlu0 %1378
      %1382 = vset.pattern.permute.xlu0 0
      %1383 = vperm.xlu0 %1382, %v1187
      %v1384 = vpop.permute.xlu0 %1383
      %1387 = vset.pattern.permute.xlu0 0
      %1388 = vperm.xlu0 %1387, %v1188
      %v1389 = vpop.permute.xlu0 %1388
      %1392 = vset.pattern.permute.xlu0 0
      %1393 = vperm.xlu0 %1392, %v1189
      %v1394 = vpop.permute.xlu0 %1393
      %1397 = vset.pattern.permute.xlu0 0
      %1398 = vperm.xlu0 %1397, %v1190
      %v1399 = vpop.permute.xlu0 %1398
      %vm1434 = vcmask 1046528
      %v1435 = vrot.slane %v1208, 1
      %v1436 = vrot.slane %v1209, 1
      %v1437 = vsel %vm1434, %v1435, %v1436
      %v1438 = vrot.slane %v1210, 1
      %v1439 = vsel %vm1434, %v1436, %v1438
      %v1440 = vrot.slane %v1211, 1
      %v1441 = vsel %vm1434, %v1438, %v1440
      %v1442 = vrot.slane %v1212, 1
      %v1443 = vsel %vm1434, %v1440, %v1442
      %v1444 = vrot.slane %v1213, 1
      %v1445 = vsel %vm1434, %v1442, %v1444
      %v1446 = vrot.slane %v1214, 1
      %v1447 = vsel %vm1434, %v1444, %v1446
      %v1448 = vrot.slane %v1215, 1
      %v1449 = vsel %vm1434, %v1446, %v1448
      %v1450 = vrot.slane %v1216, 1
      %v1451 = vsel %vm1434, %v1448, %v1450
      %v1452 = vrot.slane %v1217, 1
      %v1453 = vsel %vm1434, %v1450, %v1452
      %v1454 = vrot.slane %v1218, 1
      %v1455 = vsel %vm1434, %v1452, %v1454
      %v1456 = vrot.slane %v1219, 1
      %v1457 = vsel %vm1434, %v1454, %v1456
      %v1458 = vrot.slane %v1220, 1
      %v1459 = vsel %vm1434, %v1456, %v1458
      %v1460 = vrot.slane %v1221, 1
      %v1461 = vsel %vm1434, %v1458, %v1460
      %v1462 = vrot.slane %v1222, 1
      %v1463 = vsel %vm1434, %v1460, %v1462
      %v1464 = vrot.slane %v1223, 1
      %v1465 = vsel %vm1434, %v1462, %v1464
      %v1466 = vrot.slane %v1224, 1
      %v1467 = vsel %vm1434, %v1464, %v1466
      %v1468 = vrot.slane %v1225, 1
      %v1469 = vsel %vm1434, %v1466, %v1468
      %v1470 = vrot.slane %v1226, 1
      %v1471 = vsel %vm1434, %v1468, %v1470
      %v1472 = vrot.slane %v1227, 1
      %v1473 = vsel %vm1434, %v1470, %v1472
      %v1474 = vrot.slane %v1228, 1
      %v1475 = vsel %vm1434, %v1472, %v1474
      %v1476 = vrot.slane %v1229, 1
      %v1477 = vsel %vm1434, %v1474, %v1476
      %v1478 = vrot.slane %v1230, 1
      %v1479 = vsel %vm1434, %v1476, %v1478
      %v1480 = vrot.slane %v1231, 1
      %v1481 = vsel %vm1434, %v1478, %v1480
      %v1482 = vrot.slane %v1232, 1
      %v1483 = vsel %vm1434, %v1480, %v1482
      %v1484 = vrot.slane %v1233, 1
      %v1485 = vsel %vm1434, %v1482, %v1484
      %v1486 = vrot.slane %v1234, 1
      %v1487 = vsel %vm1434, %v1484, %v1486
      %v1488 = vrot.slane %v1235, 1
      %v1489 = vsel %vm1434, %v1486, %v1488
      %v1490 = vrot.slane %v1236, 1
      %v1491 = vsel %vm1434, %v1488, %v1490
      %v1492 = vrot.slane %v1237, 1
      %v1493 = vsel %vm1434, %v1490, %v1492
      %v1494 = vrot.slane %v1238, 1
      %v1495 = vsel %vm1434, %v1492, %v1494
      %v1496 = vrot.slane %v1239, 1
      %v1497 = vsel %vm1434, %v1494, %v1496
      %v1498 = vrot.slane %v1240, 1
      %v1499 = vsel %vm1434, %v1496, %v1498
      %v1532 = vmul.f32 %v1244, %v1437
      %v1533 = vmul.f32 %v1249, %v1439
      %v1534 = vmul.f32 %v1254, %v1441
      %v1535 = vmul.f32 %v1259, %v1443
      %v1536 = vmul.f32 %v1264, %v1445
      %v1537 = vmul.f32 %v1269, %v1447
      %v1538 = vmul.f32 %v1274, %v1449
      %v1539 = vmul.f32 %v1279, %v1451
      %v1540 = vmul.f32 %v1284, %v1453
      %v1541 = vmul.f32 %v1289, %v1455
      %v1542 = vmul.f32 %v1294, %v1457
      %v1543 = vmul.f32 %v1299, %v1459
      %v1544 = vmul.f32 %v1304, %v1461
      %v1545 = vmul.f32 %v1309, %v1463
      %v1546 = vmul.f32 %v1314, %v1465
      %v1547 = vmul.f32 %v1319, %v1467
      %v1548 = vmul.f32 %v1324, %v1469
      %v1549 = vmul.f32 %v1329, %v1471
      %v1550 = vmul.f32 %v1334, %v1473
      %v1551 = vmul.f32 %v1339, %v1475
      %v1552 = vmul.f32 %v1344, %v1477
      %v1553 = vmul.f32 %v1349, %v1479
      %v1554 = vmul.f32 %v1354, %v1481
      %v1555 = vmul.f32 %v1359, %v1483
      %v1556 = vmul.f32 %v1364, %v1485
      %v1557 = vmul.f32 %v1369, %v1487
      %v1558 = vmul.f32 %v1374, %v1489
      %v1559 = vmul.f32 %v1379, %v1491
      %v1560 = vmul.f32 %v1384, %v1493
      %v1561 = vmul.f32 %v1389, %v1495
      %v1562 = vmul.f32 %v1394, %v1497
      %v1563 = vmul.f32 %v1399, %v1499
      %v1564 = vpack.c.bf16 %v1128, %v1127
      %v1565 = vpack.c.bf16 %v1130, %v1129
      %v1566 = vpack.c.bf16 %v1132, %v1131
      %v1567 = vpack.c.bf16 %v1134, %v1133
      %v1568 = vpack.c.bf16 %v1136, %v1135
      %v1569 = vpack.c.bf16 %v1138, %v1137
      %v1570 = vpack.c.bf16 %v1140, %v1139
      %v1571 = vpack.c.bf16 %v1142, %v1141
      %v1572 = vpack.c.bf16 %v1144, %v1143
      %v1573 = vpack.c.bf16 %v1146, %v1145
      %v1574 = vpack.c.bf16 %v1148, %v1147
      %v1575 = vpack.c.bf16 %v1150, %v1149
      %v1576 = vpack.c.bf16 %v1152, %v1151
      %v1577 = vpack.c.bf16 %v1154, %v1153
      %v1578 = vpack.c.bf16 %v1156, %v1155
      %v1579 = vpack.c.bf16 %v1158, %v1157
      %1580 = vst [vmem:[#allocation2 + $0x8] sm:$0xff] %v1564
      %1581 = vst [vmem:[#allocation2 + $0x10] sm:$0xff] %v1565
      %1582 = vst [vmem:[#allocation2 + $0x18] sm:$0xff] %v1566
      %1583 = vst [vmem:[#allocation2 + $0x20] sm:$0xff] %v1567
      %1584 = vst [vmem:[#allocation2 + $0x28] sm:$0xff] %v1568
      %1585 = vst [vmem:[#allocation2 + $0x30] sm:$0xff] %v1569
      %1586 = vst [vmem:[#allocation2 + $0x38] sm:$0xff] %v1570
      %1587 = vst [vmem:[#allocation2 + $0x40] sm:$0xff] %v1571
      %1588 = vst [vmem:[#allocation2 + $0x48] sm:$0xff] %v1572
      %1589 = vst [vmem:[#allocation2 + $0x50] sm:$0xff] %v1573
      %1590 = vst [vmem:[#allocation2 + $0x58] sm:$0xff] %v1574
      %1591 = vst [vmem:[#allocation2 + $0x60] sm:$0xff] %v1575
      %1592 = vst [vmem:[#allocation2 + $0x68] sm:$0xff] %v1576
      %1593 = vst [vmem:[#allocation2 + $0x70] sm:$0xff] %v1577
      %1594 = vst [vmem:[#allocation2 + $0x78] sm:$0xff] %v1578
      %1595 = vst [vmem:[#allocation2 + $0x80] sm:$0xff] %v1579
      %v1596 = vpack.c.bf16 %v1533, %v1532
      %v1597 = vpack.c.bf16 %v1535, %v1534
      %v1598 = vpack.c.bf16 %v1537, %v1536
      %v1599 = vpack.c.bf16 %v1539, %v1538
      %v1600 = vpack.c.bf16 %v1541, %v1540
      %v1601 = vpack.c.bf16 %v1543, %v1542
      %v1602 = vpack.c.bf16 %v1545, %v1544
      %v1603 = vpack.c.bf16 %v1547, %v1546
      %v1604 = vpack.c.bf16 %v1549, %v1548
      %v1605 = vpack.c.bf16 %v1551, %v1550
      %v1606 = vpack.c.bf16 %v1553, %v1552
      %v1607 = vpack.c.bf16 %v1555, %v1554
      %v1608 = vpack.c.bf16 %v1557, %v1556
      %v1609 = vpack.c.bf16 %v1559, %v1558
      %v1610 = vpack.c.bf16 %v1561, %v1560
      %v1611 = vpack.c.bf16 %v1563, %v1562
      %1612 = vst [vmem:[%s651 + $0x8] sm:$0xff] %v1596
      %1613 = vst [vmem:[%s651 + $0x10] sm:$0xff] %v1597
      %1614 = vst [vmem:[%s651 + $0x18] sm:$0xff] %v1598
      %1615 = vst [vmem:[%s651 + $0x20] sm:$0xff] %v1599
      %1616 = vst [vmem:[%s651 + $0x28] sm:$0xff] %v1600
      %1617 = vst [vmem:[%s651 + $0x30] sm:$0xff] %v1601
      %1618 = vst [vmem:[%s651 + $0x38] sm:$0xff] %v1602
      %1619 = vst [vmem:[%s651 + $0x40] sm:$0xff] %v1603
      %1620 = vst [vmem:[%s651 + $0x48] sm:$0xff] %v1604
      %1621 = vst [vmem:[%s651 + $0x50] sm:$0xff] %v1605
      %1622 = vst [vmem:[%s651 + $0x58] sm:$0xff] %v1606
      %1623 = vst [vmem:[%s651 + $0x60] sm:$0xff] %v1607
      %1624 = vst [vmem:[%s651 + $0x68] sm:$0xff] %v1608
      %1625 = vst [vmem:[%s651 + $0x70] sm:$0xff] %v1609
      %1626 = vst [vmem:[%s651 + $0x78] sm:$0xff] %v1610
      %1627 = vst [vmem:[%s651 + $0x80] sm:$0xff] %v1611
      %v1628 = vld [vmem:[#allocation2] sm:$0xff]
      %v1629 = vld [vmem:[#allocation2 + $0x8] sm:$0xff]
      %v1630 = vld [vmem:[#allocation2 + $0x10] sm:$0xff]
      %v1631 = vld [vmem:[#allocation2 + $0x18] sm:$0xff]
      %v1632 = vld [vmem:[#allocation2 + $0x20] sm:$0xff]
      %v1633 = vld [vmem:[#allocation2 + $0x28] sm:$0xff]
      %v1634 = vld [vmem:[#allocation2 + $0x30] sm:$0xff]
      %v1635 = vld [vmem:[#allocation2 + $0x38] sm:$0xff]
      %v1636 = vld [vmem:[#allocation2 + $0x40] sm:$0xff]
      %v1637 = vld [vmem:[#allocation2 + $0x48] sm:$0xff]
      %v1638 = vld [vmem:[#allocation2 + $0x50] sm:$0xff]
      %v1639 = vld [vmem:[#allocation2 + $0x58] sm:$0xff]
      %v1640 = vld [vmem:[#allocation2 + $0x60] sm:$0xff]
      %v1641 = vld [vmem:[#allocation2 + $0x68] sm:$0xff]
      %v1642 = vld [vmem:[#allocation2 + $0x70] sm:$0xff]
      %v1643 = vld [vmem:[#allocation2 + $0x78] sm:$0xff]
      %v1644 = vld [vmem:[%s3] sm:$0xf]
      %v1645 = vld [vmem:[%s3 + $0x4] sm:$0xf]
      %v1646 = vld [vmem:[%s3 + $0x8] sm:$0xf]
      %v1647 = vld [vmem:[%s3 + $0xc] sm:$0xf]
      %v1648 = vld [vmem:[%s3 + $0x10] sm:$0xf]
      %v1649 = vld [vmem:[%s3 + $0x14] sm:$0xf]
      %v1650 = vld [vmem:[%s3 + $0x18] sm:$0xf]
      %v1651 = vld [vmem:[%s3 + $0x1c] sm:$0xf]
      %v1652 = vld [vmem:[%s3 + $0x20] sm:$0xf]
      %v1653 = vld [vmem:[%s3 + $0x24] sm:$0xf]
      %v1654 = vld [vmem:[%s3 + $0x28] sm:$0xf]
      %v1655 = vld [vmem:[%s3 + $0x2c] sm:$0xf]
      %v1656 = vld [vmem:[%s3 + $0x30] sm:$0xf]
      %v1657 = vld [vmem:[%s3 + $0x34] sm:$0xf]
      %v1658 = vld [vmem:[%s3 + $0x38] sm:$0xf]
      %v1659 = vld [vmem:[%s3 + $0x3c] sm:$0xf]
      %v1660 = vld [vmem:[%s648] sm:$0xff]
      %v1661 = vld [vmem:[%s648 + $0x8] sm:$0xff]
      %v1662 = vld [vmem:[%s648 + $0x10] sm:$0xff]
      %v1663 = vld [vmem:[%s648 + $0x18] sm:$0xff]
      %v1664 = vld [vmem:[%s648 + $0x20] sm:$0xff]
      %v1665 = vld [vmem:[%s648 + $0x28] sm:$0xff]
      %v1666 = vld [vmem:[%s648 + $0x30] sm:$0xff]
      %v1667 = vld [vmem:[%s648 + $0x38] sm:$0xff]
      %v1668 = vld [vmem:[%s648 + $0x40] sm:$0xff]
      %v1669 = vld [vmem:[%s648 + $0x48] sm:$0xff]
      %v1670 = vld [vmem:[%s648 + $0x50] sm:$0xff]
      %v1671 = vld [vmem:[%s648 + $0x58] sm:$0xff]
      %v1672 = vld [vmem:[%s648 + $0x60] sm:$0xff]
      %v1673 = vld [vmem:[%s648 + $0x68] sm:$0xff]
      %v1674 = vld [vmem:[%s648 + $0x70] sm:$0xff]
      %v1675 = vld [vmem:[%s648 + $0x78] sm:$0xff]
      %s1676 = scalar_lea.vmem %s3, 64
      %v1677 = vld [vmem:[%s1676] sm:$0xf]
      %v1678 = vld [vmem:[%s1676 + $0x4] sm:$0xf]
      %v1679 = vld [vmem:[%s1676 + $0x8] sm:$0xf]
      %v1680 = vld [vmem:[%s1676 + $0xc] sm:$0xf]
      %v1681 = vld [vmem:[%s1676 + $0x10] sm:$0xf]
      %v1682 = vld [vmem:[%s1676 + $0x14] sm:$0xf]
      %v1683 = vld [vmem:[%s1676 + $0x18] sm:$0xf]
      %v1684 = vld [vmem:[%s1676 + $0x1c] sm:$0xf]
      %v1685 = vld [vmem:[%s1676 + $0x20] sm:$0xf]
      %v1686 = vld [vmem:[%s1676 + $0x24] sm:$0xf]
      %v1687 = vld [vmem:[%s1676 + $0x28] sm:$0xf]
      %v1688 = vld [vmem:[%s1676 + $0x2c] sm:$0xf]
      %v1689 = vld [vmem:[%s1676 + $0x30] sm:$0xf]
      %v1690 = vld [vmem:[%s1676 + $0x34] sm:$0xf]
      %v1691 = vld [vmem:[%s1676 + $0x38] sm:$0xf]
      %v1692 = vld [vmem:[%s1676 + $0x3c] sm:$0xf]
      %v1709 = vunpack.c.l.b16 %v1677
      %v1710 = vunpack.c.l.b16 %v1678
      %v1711 = vunpack.c.l.b16 %v1679
      %v1712 = vunpack.c.l.b16 %v1680
      %v1713 = vunpack.c.l.b16 %v1681
      %v1714 = vunpack.c.l.b16 %v1682
      %v1715 = vunpack.c.l.b16 %v1683
      %v1716 = vunpack.c.l.b16 %v1684
      %v1717 = vunpack.c.l.b16 %v1685
      %v1718 = vunpack.c.l.b16 %v1686
      %v1719 = vunpack.c.l.b16 %v1687
      %v1720 = vunpack.c.l.b16 %v1688
      %v1721 = vunpack.c.l.b16 %v1689
      %v1722 = vunpack.c.l.b16 %v1690
      %v1723 = vunpack.c.l.b16 %v1691
      %v1724 = vunpack.c.l.b16 %v1692
      %v1725 = vpack.c.b16 %v1710, %v1709
      %v1726 = vpack.c.b16 %v1712, %v1711
      %v1727 = vpack.c.b16 %v1714, %v1713
      %v1728 = vpack.c.b16 %v1716, %v1715
      %v1729 = vpack.c.b16 %v1718, %v1717
      %v1730 = vpack.c.b16 %v1720, %v1719
      %v1731 = vpack.c.b16 %v1722, %v1721
      %v1732 = vpack.c.b16 %v1724, %v1723
      %1741 = vmatprep.subr.bf16.mxu0 0
      %1742 = vmatpush1.bf16.msra.mxu0 %v1725
      %1743 = vmatprep.subr.bf16.mxu0 0
      %1744 = vmatpush1.bf16.msra.mxu0 %v1726
      %1745 = vmatprep.subr.bf16.mxu0 0
      %1746 = vmatpush1.bf16.msra.mxu0 %v1727
      %1747 = vmatprep.subr.bf16.mxu0 0
      %1748 = vmatpush1.bf16.msra.mxu0 %v1728
      %1749 = vmatprep.subr.bf16.mxu0 0
      %1750 = vmatpush1.bf16.msra.mxu0 %v1729
      %1751 = vmatprep.subr.bf16.mxu0 0
      %1752 = vmatpush1.bf16.msra.mxu0 %v1730
      %1753 = vmatprep.subr.bf16.mxu0 0
      %1754 = vmatpush1.bf16.msra.mxu0 %v1731
      %1755 = vmatprep.subr.bf16.mxu0 0
      %1756 = vmatpush1.bf16.msra.mxu0 %v1732
      %1757 = vmatprep.subr.bf16.mxu0 0
      %1758 = vmatpush1.bf16.msra.mxu0 0
      %1759 = vmatprep.subr.bf16.mxu0 0
      %1760 = vmatpush1.bf16.msra.mxu0 0
      %1761 = vmatprep.subr.bf16.mxu0 0
      %1762 = vmatpush1.bf16.msra.mxu0 0
      %1763 = vmatprep.subr.bf16.mxu0 0
      %1764 = vmatpush1.bf16.msra.mxu0 0
      %1765 = vmatprep.subr.bf16.mxu0 0
      %1766 = vmatpush1.bf16.msra.mxu0 0
      %1767 = vmatprep.subr.bf16.mxu0 0
      %1768 = vmatpush1.bf16.msra.mxu0 0
      %1769 = vmatprep.subr.bf16.mxu0 0
      %1770 = vmatpush1.bf16.msra.mxu0 0
      %1771 = vmatprep.subr.bf16.mxu0 0
      %1772 = vmatpush1.bf16.msra.mxu0 0
      %1773 = vmatprep.mubr.bf16.mxu0 0
      %1774 = vmatmul.mubr.bf16.gmra.mrb[0].mxu0 %v1660
      %v1775 = vpop.f32.mrb[0].mxu0
      %v1776 = vadd.f32 0.0, %v1775
      %v1777 = vpop.f32.mrb[0].mxu0
      %v1778 = vpop.f32.mrb[0].mxu0
      %v1779 = vadd.f32 0.0, %v1778
      %v1780 = vpop.f32.mrb[0].mxu0
      %1781 = vmatprep.mubr.bf16.mxu0 0
      %1782 = vmatmul.mubr.bf16.gmra.mrb[0].mxu0 %v1661
      %v1783 = vpop.f32.mrb[0].mxu0
      %v1784 = vadd.f32 0.0, %v1783
      %v1785 = vpop.f32.mrb[0].mxu0
      %v1786 = vpop.f32.mrb[0].mxu0
      %v1787 = vadd.f32 0.0, %v1786
      %v1788 = vpop.f32.mrb[0].mxu0
      %1789 = vmatprep.mubr.bf16.mxu0 0
      %1790 = vmatmul.mubr.bf16.gmra.mrb[0].mxu0 %v1662
      %v1791 = vpop.f32.mrb[0].mxu0
      %v1792 = vadd.f32 0.0, %v1791
      %v1793 = vpop.f32.mrb[0].mxu0
      %v1794 = vpop.f32.mrb[0].mxu0
      %v1795 = vadd.f32 0.0, %v1794
      %v1796 = vpop.f32.mrb[0].mxu0
      %1797 = vmatprep.mubr.bf16.mxu0 0
      %1798 = vmatmul.mubr.bf16.gmra.mrb[0].mxu0 %v1663
      %v1799 = vpop.f32.mrb[0].mxu0
      %v1800 = vadd.f32 0.0, %v1799
      %v1801 = vpop.f32.mrb[0].mxu0
      %v1802 = vpop.f32.mrb[0].mxu0
      %v1803 = vadd.f32 0.0, %v1802
      %v1804 = vpop.f32.mrb[0].mxu0
      %1805 = vmatprep.mubr.bf16.mxu0 0
      %1806 = vmatmul.mubr.bf16.gmra.mrb[0].mxu0 %v1664
      %v1807 = vpop.f32.mrb[0].mxu0
      %v1808 = vadd.f32 0.0, %v1807
      %v1809 = vpop.f32.mrb[0].mxu0
      %v1810 = vpop.f32.mrb[0].mxu0
      %v1811 = vadd.f32 0.0, %v1810
      %v1812 = vpop.f32.mrb[0].mxu0
      %1813 = vmatprep.mubr.bf16.mxu0 0
      %1814 = vmatmul.mubr.bf16.gmra.mrb[0].mxu0 %v1665
      %v1815 = vpop.f32.mrb[0].mxu0
      %v1816 = vadd.f32 0.0, %v1815
      %v1817 = vpop.f32.mrb[0].mxu0
      %v1818 = vpop.f32.mrb[0].mxu0
      %v1819 = vadd.f32 0.0, %v1818
      %v1820 = vpop.f32.mrb[0].mxu0
      %1821 = vmatprep.mubr.bf16.mxu0 0
      %1822 = vmatmul.mubr.bf16.gmra.mrb[0].mxu0 %v1666
      %v1823 = vpop.f32.mrb[0].mxu0
      %v1824 = vadd.f32 0.0, %v1823
      %v1825 = vpop.f32.mrb[0].mxu0
      %v1826 = vpop.f32.mrb[0].mxu0
      %v1827 = vadd.f32 0.0, %v1826
      %v1828 = vpop.f32.mrb[0].mxu0
      %1829 = vmatprep.mubr.bf16.mxu0 0
      %1830 = vmatmul.mubr.bf16.gmra.mrb[0].mxu0 %v1667
      %v1831 = vpop.f32.mrb[0].mxu0
      %v1832 = vadd.f32 0.0, %v1831
      %v1833 = vpop.f32.mrb[0].mxu0
      %v1834 = vpop.f32.mrb[0].mxu0
      %v1835 = vadd.f32 0.0, %v1834
      %v1836 = vpop.f32.mrb[0].mxu0
      %1837 = vmatprep.mubr.bf16.mxu0 0
      %1838 = vmatmul.mubr.bf16.gmra.mrb[0].mxu0 %v1668
      %v1839 = vpop.f32.mrb[0].mxu0
      %v1840 = vadd.f32 0.0, %v1839
      %v1841 = vpop.f32.mrb[0].mxu0
      %v1842 = vpop.f32.mrb[0].mxu0
      %v1843 = vadd.f32 0.0, %v1842
      %v1844 = vpop.f32.mrb[0].mxu0
      %1845 = vmatprep.mubr.bf16.mxu0 0
      %1846 = vmatmul.mubr.bf16.gmra.mrb[0].mxu0 %v1669
      %v1847 = vpop.f32.mrb[0].mxu0
      %v1848 = vadd.f32 0.0, %v1847
      %v1849 = vpop.f32.mrb[0].mxu0
      %v1850 = vpop.f32.mrb[0].mxu0
      %v1851 = vadd.f32 0.0, %v1850
      %v1852 = vpop.f32.mrb[0].mxu0
      %1853 = vmatprep.mubr.bf16.mxu0 0
      %1854 = vmatmul.mubr.bf16.gmra.mrb[0].mxu0 %v1670
      %v1855 = vpop.f32.mrb[0].mxu0
      %v1856 = vadd.f32 0.0, %v1855
      %v1857 = vpop.f32.mrb[0].mxu0
      %v1858 = vpop.f32.mrb[0].mxu0
      %v1859 = vadd.f32 0.0, %v1858
      %v1860 = vpop.f32.mrb[0].mxu0
      %1861 = vmatprep.mubr.bf16.mxu0 0
      %1862 = vmatmul.mubr.bf16.gmra.mrb[0].mxu0 %v1671
      %v1863 = vpop.f32.mrb[0].mxu0
      %v1864 = vadd.f32 0.0, %v1863
      %v1865 = vpop.f32.mrb[0].mxu0
      %v1866 = vpop.f32.mrb[0].mxu0
      %v1867 = vadd.f32 0.0, %v1866
      %v1868 = vpop.f32.mrb[0].mxu0
      %1869 = vmatprep.mubr.bf16.mxu0 0
      %1870 = vmatmul.mubr.bf16.gmra.mrb[0].mxu0 %v1672
      %v1871 = vpop.f32.mrb[0].mxu0
      %v1872 = vadd.f32 0.0, %v1871
      %v1873 = vpop.f32.mrb[0].mxu0
      %v1874 = vpop.f32.mrb[0].mxu0
      %v1875 = vadd.f32 0.0, %v1874
      %v1876 = vpop.f32.mrb[0].mxu0
      %1877 = vmatprep.mubr.bf16.mxu0 0
      %1878 = vmatmul.mubr.bf16.gmra.mrb[0].mxu0 %v1673
      %v1879 = vpop.f32.mrb[0].mxu0
      %v1880 = vadd.f32 0.0, %v1879
      %v1881 = vpop.f32.mrb[0].mxu0
      %v1882 = vpop.f32.mrb[0].mxu0
      %v1883 = vadd.f32 0.0, %v1882
      %v1884 = vpop.f32.mrb[0].mxu0
      %1885 = vmatprep.mubr.bf16.mxu0 0
      %1886 = vmatmul.mubr.bf16.gmra.mrb[0].mxu0 %v1674
      %v1887 = vpop.f32.mrb[0].mxu0
      %v1888 = vadd.f32 0.0, %v1887
      %v1889 = vpop.f32.mrb[0].mxu0
      %v1890 = vpop.f32.mrb[0].mxu0
      %v1891 = vadd.f32 0.0, %v1890
      %v1892 = vpop.f32.mrb[0].mxu0
      %1893 = vmatprep.mubr.bf16.mxu0 0
      %1894 = vmatmul.mubr.bf16.gmra.mrb[0].mxu0 %v1675
      %v1895 = vpop.f32.mrb[0].mxu0
      %v1896 = vadd.f32 0.0, %v1895
      %v1897 = vpop.f32.mrb[0].mxu0
      %v1898 = vpop.f32.mrb[0].mxu0
      %v1899 = vadd.f32 0.0, %v1898
      %v1900 = vpop.f32.mrb[0].mxu0
      %1901 = vdwg.mxu0
      %v1918 = vunpack.c.l.b16 %v1644
      %v1919 = vunpack.c.l.b16 %v1645
      %v1920 = vunpack.c.l.b16 %v1646
      %v1921 = vunpack.c.l.b16 %v1647
      %v1922 = vunpack.c.l.b16 %v1648
      %v1923 = vunpack.c.l.b16 %v1649
      %v1924 = vunpack.c.l.b16 %v1650
      %v1925 = vunpack.c.l.b16 %v1651
      %v1926 = vunpack.c.l.b16 %v1652
      %v1927 = vunpack.c.l.b16 %v1653
      %v1928 = vunpack.c.l.b16 %v1654
      %v1929 = vunpack.c.l.b16 %v1655
      %v1930 = vunpack.c.l.b16 %v1656
      %v1931 = vunpack.c.l.b16 %v1657
      %v1932 = vunpack.c.l.b16 %v1658
      %v1933 = vunpack.c.l.b16 %v1659
      %v1934 = vpack.c.b16 %v1919, %v1918
      %v1935 = vpack.c.b16 %v1921, %v1920
      %v1936 = vpack.c.b16 %v1923, %v1922
      %v1937 = vpack.c.b16 %v1925, %v1924
      %v1938 = vpack.c.b16 %v1927, %v1926
      %v1939 = vpack.c.b16 %v1929, %v1928
      %v1940 = vpack.c.b16 %v1931, %v1930
      %v1941 = vpack.c.b16 %v1933, %v1932
      %1950 = vmatprep.subr.bf16.mxu0 0
      %1951 = vmatpush1.bf16.msra.mxu0 %v1934
      %1952 = vmatprep.subr.bf16.mxu0 0
      %1953 = vmatpush1.bf16.msra.mxu0 %v1935
      %1954 = vmatprep.subr.bf16.mxu0 0
      %1955 = vmatpush1.bf16.msra.mxu0 %v1936
      %1956 = vmatprep.subr.bf16.mxu0 0
      %1957 = vmatpush1.bf16.msra.mxu0 %v1937
      %1958 = vmatprep.subr.bf16.mxu0 0
      %1959 = vmatpush1.bf16.msra.mxu0 %v1938
      %1960 = vmatprep.subr.bf16.mxu0 0
      %1961 = vmatpush1.bf16.msra.mxu0 %v1939
      %1962 = vmatprep.subr.bf16.mxu0 0
      %1963 = vmatpush1.bf16.msra.mxu0 %v1940
      %1964 = vmatprep.subr.bf16.mxu0 0
      %1965 = vmatpush1.bf16.msra.mxu0 %v1941
      %1966 = vmatprep.subr.bf16.mxu0 0
      %1967 = vmatpush1.bf16.msra.mxu0 0
      %1968 = vmatprep.subr.bf16.mxu0 0
      %1969 = vmatpush1.bf16.msra.mxu0 0
      %1970 = vmatprep.subr.bf16.mxu0 0
      %1971 = vmatpush1.bf16.msra.mxu0 0
      %1972 = vmatprep.subr.bf16.mxu0 0
      %1973 = vmatpush1.bf16.msra.mxu0 0
      %1974 = vmatprep.subr.bf16.mxu0 0
      %1975 = vmatpush1.bf16.msra.mxu0 0
      %1976 = vmatprep.subr.bf16.mxu0 0
      %1977 = vmatpush1.bf16.msra.mxu0 0
      %1978 = vmatprep.subr.bf16.mxu0 0
      %1979 = vmatpush1.bf16.msra.mxu0 0
      %1980 = vmatprep.subr.bf16.mxu0 0
      %1981 = vmatpush1.bf16.msra.mxu0 0
      %1982 = vmatprep.mubr.bf16.mxu0 0
      %1983 = vmatmul.mubr.bf16.gmra.mrb[0].mxu0 %v1628
      %v1984 = vpop.f32.mrb[0].mxu0
      %v1985 = vadd.f32 %v1776, %v1984
      %v1986 = vpop.f32.mrb[0].mxu0
      %v1987 = vpop.f32.mrb[0].mxu0
      %v1988 = vadd.f32 %v1779, %v1987
      %v1989 = vpop.f32.mrb[0].mxu0
      %1990 = vmatprep.mubr.bf16.mxu0 0
      %1991 = vmatmul.mubr.bf16.gmra.mrb[0].mxu0 %v1629
      %v1992 = vpop.f32.mrb[0].mxu0
      %v1993 = vadd.f32 %v1784, %v1992
      %v1994 = vpop.f32.mrb[0].mxu0
      %v1995 = vpop.f32.mrb[0].mxu0
      %v1996 = vadd.f32 %v1787, %v1995
      %v1997 = vpop.f32.mrb[0].mxu0
      %1998 = vmatprep.mubr.bf16.mxu0 0
      %1999 = vmatmul.mubr.bf16.gmra.mrb[0].mxu0 %v1630
      %v2000 = vpop.f32.mrb[0].mxu0
      %v2001 = vadd.f32 %v1792, %v2000
      %v2002 = vpop.f32.mrb[0].mxu0
      %v2003 = vpop.f32.mrb[0].mxu0
      %v2004 = vadd.f32 %v1795, %v2003
      %v2005 = vpop.f32.mrb[0].mxu0
      %2006 = vmatprep.mubr.bf16.mxu0 0
      %2007 = vmatmul.mubr.bf16.gmra.mrb[0].mxu0 %v1631
      %v2008 = vpop.f32.mrb[0].mxu0
      %v2009 = vadd.f32 %v1800, %v2008
      %v2010 = vpop.f32.mrb[0].mxu0
      %v2011 = vpop.f32.mrb[0].mxu0
      %v2012 = vadd.f32 %v1803, %v2011
      %v2013 = vpop.f32.mrb[0].mxu0
      %2014 = vmatprep.mubr.bf16.mxu0 0
      %2015 = vmatmul.mubr.bf16.gmra.mrb[0].mxu0 %v1632
      %v2016 = vpop.f32.mrb[0].mxu0
      %v2017 = vadd.f32 %v1808, %v2016
      %v2018 = vpop.f32.mrb[0].mxu0
      %v2019 = vpop.f32.mrb[0].mxu0
      %v2020 = vadd.f32 %v1811, %v2019
      %v2021 = vpop.f32.mrb[0].mxu0
      %2022 = vmatprep.mubr.bf16.mxu0 0
      %2023 = vmatmul.mubr.bf16.gmra.mrb[0].mxu0 %v1633
      %v2024 = vpop.f32.mrb[0].mxu0
      %v2025 = vadd.f32 %v1816, %v2024
      %v2026 = vpop.f32.mrb[0].mxu0
      %v2027 = vpop.f32.mrb[0].mxu0
      %v2028 = vadd.f32 %v1819, %v2027
      %v2029 = vpop.f32.mrb[0].mxu0
      %2030 = vmatprep.mubr.bf16.mxu0 0
      %2031 = vmatmul.mubr.bf16.gmra.mrb[0].mxu0 %v1634
      %v2032 = vpop.f32.mrb[0].mxu0
      %v2033 = vadd.f32 %v1824, %v2032
      %v2034 = vpop.f32.mrb[0].mxu0
      %v2035 = vpop.f32.mrb[0].mxu0
      %v2036 = vadd.f32 %v1827, %v2035
      %v2037 = vpop.f32.mrb[0].mxu0
      %2038 = vmatprep.mubr.bf16.mxu0 0
      %2039 = vmatmul.mubr.bf16.gmra.mrb[0].mxu0 %v1635
      %v2040 = vpop.f32.mrb[0].mxu0
      %v2041 = vadd.f32 %v1832, %v2040
      %v2042 = vpop.f32.mrb[0].mxu0
      %v2043 = vpop.f32.mrb[0].mxu0
      %v2044 = vadd.f32 %v1835, %v2043
      %v2045 = vpop.f32.mrb[0].mxu0
      %2046 = vmatprep.mubr.bf16.mxu0 0
      %2047 = vmatmul.mubr.bf16.gmra.mrb[0].mxu0 %v1636
      %v2048 = vpop.f32.mrb[0].mxu0
      %v2049 = vadd.f32 %v1840, %v2048
      %v2050 = vpop.f32.mrb[0].mxu0
      %v2051 = vpop.f32.mrb[0].mxu0
      %v2052 = vadd.f32 %v1843, %v2051
      %v2053 = vpop.f32.mrb[0].mxu0
      %2054 = vmatprep.mubr.bf16.mxu0 0
      %2055 = vmatmul.mubr.bf16.gmra.mrb[0].mxu0 %v1637
      %v2056 = vpop.f32.mrb[0].mxu0
      %v2057 = vadd.f32 %v1848, %v2056
      %v2058 = vpop.f32.mrb[0].mxu0
      %v2059 = vpop.f32.mrb[0].mxu0
      %v2060 = vadd.f32 %v1851, %v2059
      %v2061 = vpop.f32.mrb[0].mxu0
      %2062 = vmatprep.mubr.bf16.mxu0 0
      %2063 = vmatmul.mubr.bf16.gmra.mrb[0].mxu0 %v1638
      %v2064 = vpop.f32.mrb[0].mxu0
      %v2065 = vadd.f32 %v1856, %v2064
      %v2066 = vpop.f32.mrb[0].mxu0
      %v2067 = vpop.f32.mrb[0].mxu0
      %v2068 = vadd.f32 %v1859, %v2067
      %v2069 = vpop.f32.mrb[0].mxu0
      %2070 = vmatprep.mubr.bf16.mxu0 0
      %2071 = vmatmul.mubr.bf16.gmra.mrb[0].mxu0 %v1639
      %v2072 = vpop.f32.mrb[0].mxu0
      %v2073 = vadd.f32 %v1864, %v2072
      %v2074 = vpop.f32.mrb[0].mxu0
      %v2075 = vpop.f32.mrb[0].mxu0
      %v2076 = vadd.f32 %v1867, %v2075
      %v2077 = vpop.f32.mrb[0].mxu0
      %2078 = vmatprep.mubr.bf16.mxu0 0
      %2079 = vmatmul.mubr.bf16.gmra.mrb[0].mxu0 %v1640
      %v2080 = vpop.f32.mrb[0].mxu0
      %v2081 = vadd.f32 %v1872, %v2080
      %v2082 = vpop.f32.mrb[0].mxu0
      %v2083 = vpop.f32.mrb[0].mxu0
      %v2084 = vadd.f32 %v1875, %v2083
      %v2085 = vpop.f32.mrb[0].mxu0
      %2086 = vmatprep.mubr.bf16.mxu0 0
      %2087 = vmatmul.mubr.bf16.gmra.mrb[0].mxu0 %v1641
      %v2088 = vpop.f32.mrb[0].mxu0
      %v2089 = vadd.f32 %v1880, %v2088
      %v2090 = vpop.f32.mrb[0].mxu0
      %v2091 = vpop.f32.mrb[0].mxu0
      %v2092 = vadd.f32 %v1883, %v2091
      %v2093 = vpop.f32.mrb[0].mxu0
      %2094 = vmatprep.mubr.bf16.mxu0 0
      %2095 = vmatmul.mubr.bf16.gmra.mrb[0].mxu0 %v1642
      %v2096 = vpop.f32.mrb[0].mxu0
      %v2097 = vadd.f32 %v1888, %v2096
      %v2098 = vpop.f32.mrb[0].mxu0
      %v2099 = vpop.f32.mrb[0].mxu0
      %v2100 = vadd.f32 %v1891, %v2099
      %v2101 = vpop.f32.mrb[0].mxu0
      %2102 = vmatprep.mubr.bf16.mxu0 0
      %2103 = vmatmul.mubr.bf16.gmra.mrb[0].mxu0 %v1643
      %v2104 = vpop.f32.mrb[0].mxu0
      %v2105 = vadd.f32 %v1896, %v2104
      %v2106 = vpop.f32.mrb[0].mxu0
      %v2107 = vpop.f32.mrb[0].mxu0
      %v2108 = vadd.f32 %v1899, %v2107
      %v2109 = vpop.f32.mrb[0].mxu0
      %2110 = vdwg.mxu0
      %v2111 = vld [vmem:[%s651] sm:$0xff]
      %v2112 = vld [vmem:[%s651 + $0x8] sm:$0xff]
      %v2113 = vld [vmem:[%s651 + $0x10] sm:$0xff]
      %v2114 = vld [vmem:[%s651 + $0x18] sm:$0xff]
      %v2115 = vld [vmem:[%s651 + $0x20] sm:$0xff]
      %v2116 = vld [vmem:[%s651 + $0x28] sm:$0xff]
      %v2117 = vld [vmem:[%s651 + $0x30] sm:$0xff]
      %v2118 = vld [vmem:[%s651 + $0x38] sm:$0xff]
      %v2119 = vld [vmem:[%s651 + $0x40] sm:$0xff]
      %v2120 = vld [vmem:[%s651 + $0x48] sm:$0xff]
      %v2121 = vld [vmem:[%s651 + $0x50] sm:$0xff]
      %v2122 = vld [vmem:[%s651 + $0x58] sm:$0xff]
      %v2123 = vld [vmem:[%s651 + $0x60] sm:$0xff]
      %v2124 = vld [vmem:[%s651 + $0x68] sm:$0xff]
      %v2125 = vld [vmem:[%s651 + $0x70] sm:$0xff]
      %v2126 = vld [vmem:[%s651 + $0x78] sm:$0xff]
      %s2127 = scalar_lea.vmem %s3, 128
      %v2128 = vld [vmem:[%s2127] sm:$0xf]
      %v2129 = vld [vmem:[%s2127 + $0x4] sm:$0xf]
      %v2130 = vld [vmem:[%s2127 + $0x8] sm:$0xf]
      %v2131 = vld [vmem:[%s2127 + $0xc] sm:$0xf]
      %v2132 = vld [vmem:[%s2127 + $0x10] sm:$0xf]
      %v2133 = vld [vmem:[%s2127 + $0x14] sm:$0xf]
      %v2134 = vld [vmem:[%s2127 + $0x18] sm:$0xf]
      %v2135 = vld [vmem:[%s2127 + $0x1c] sm:$0xf]
      %v2136 = vld [vmem:[%s2127 + $0x20] sm:$0xf]
      %v2137 = vld [vmem:[%s2127 + $0x24] sm:$0xf]
      %v2138 = vld [vmem:[%s2127 + $0x28] sm:$0xf]
      %v2139 = vld [vmem:[%s2127 + $0x2c] sm:$0xf]
      %v2140 = vld [vmem:[%s2127 + $0x30] sm:$0xf]
      %v2141 = vld [vmem:[%s2127 + $0x34] sm:$0xf]
      %v2142 = vld [vmem:[%s2127 + $0x38] sm:$0xf]
      %v2143 = vld [vmem:[%s2127 + $0x3c] sm:$0xf]
      %v2160 = vunpack.c.l.b16 %v2128
      %v2161 = vunpack.c.l.b16 %v2129
      %v2162 = vunpack.c.l.b16 %v2130
      %v2163 = vunpack.c.l.b16 %v2131
      %v2164 = vunpack.c.l.b16 %v2132
      %v2165 = vunpack.c.l.b16 %v2133
      %v2166 = vunpack.c.l.b16 %v2134
      %v2167 = vunpack.c.l.b16 %v2135
      %v2168 = vunpack.c.l.b16 %v2136
      %v2169 = vunpack.c.l.b16 %v2137
      %v2170 = vunpack.c.l.b16 %v2138
      %v2171 = vunpack.c.l.b16 %v2139
      %v2172 = vunpack.c.l.b16 %v2140
      %v2173 = vunpack.c.l.b16 %v2141
      %v2174 = vunpack.c.l.b16 %v2142
      %v2175 = vunpack.c.l.b16 %v2143
      %v2176 = vpack.c.b16 %v2161, %v2160
      %v2177 = vpack.c.b16 %v2163, %v2162
      %v2178 = vpack.c.b16 %v2165, %v2164
      %v2179 = vpack.c.b16 %v2167, %v2166
      %v2180 = vpack.c.b16 %v2169, %v2168
      %v2181 = vpack.c.b16 %v2171, %v2170
      %v2182 = vpack.c.b16 %v2173, %v2172
      %v2183 = vpack.c.b16 %v2175, %v2174
      %2192 = vmatprep.subr.bf16.mxu0 0
      %2193 = vmatpush1.bf16.msra.mxu0 %v2176
      %2194 = vmatprep.subr.bf16.mxu0 0
      %2195 = vmatpush1.bf16.msra.mxu0 %v2177
      %2196 = vmatprep.subr.bf16.mxu0 0
      %2197 = vmatpush1.bf16.msra.mxu0 %v2178
      %2198 = vmatprep.subr.bf16.mxu0 0
      %2199 = vmatpush1.bf16.msra.mxu0 %v2179
      %2200 = vmatprep.subr.bf16.mxu0 0
      %2201 = vmatpush1.bf16.msra.mxu0 %v2180
      %2202 = vmatprep.subr.bf16.mxu0 0
      %2203 = vmatpush1.bf16.msra.mxu0 %v2181
      %2204 = vmatprep.subr.bf16.mxu0 0
      %2205 = vmatpush1.bf16.msra.mxu0 %v2182
      %2206 = vmatprep.subr.bf16.mxu0 0
      %2207 = vmatpush1.bf16.msra.mxu0 %v2183
      %2208 = vmatprep.subr.bf16.mxu0 0
      %2209 = vmatpush1.bf16.msra.mxu0 0
      %2210 = vmatprep.subr.bf16.mxu0 0
      %2211 = vmatpush1.bf16.msra.mxu0 0
      %2212 = vmatprep.subr.bf16.mxu0 0
      %2213 = vmatpush1.bf16.msra.mxu0 0
      %2214 = vmatprep.subr.bf16.mxu0 0
      %2215 = vmatpush1.bf16.msra.mxu0 0
      %2216 = vmatprep.subr.bf16.mxu0 0
      %2217 = vmatpush1.bf16.msra.mxu0 0
      %2218 = vmatprep.subr.bf16.mxu0 0
      %2219 = vmatpush1.bf16.msra.mxu0 0
      %2220 = vmatprep.subr.bf16.mxu0 0
      %2221 = vmatpush1.bf16.msra.mxu0 0
      %2222 = vmatprep.subr.bf16.mxu0 0
      %2223 = vmatpush1.bf16.msra.mxu0 0
      %2224 = vmatprep.mubr.bf16.mxu0 0
      %2225 = vmatmul.mubr.bf16.gmra.mrb[0].mxu0 %v2111
      %v2226 = vpop.f32.mrb[0].mxu0
      %v2227 = vadd.f32 0.0, %v2226
      %v2228 = vpop.f32.mrb[0].mxu0
      %v2229 = vpop.f32.mrb[0].mxu0
      %v2230 = vadd.f32 0.0, %v2229
      %v2231 = vpop.f32.mrb[0].mxu0
      %2232 = vmatprep.mubr.bf16.mxu0 0
      %2233 = vmatmul.mubr.bf16.gmra.mrb[0].mxu0 %v2112
      %v2234 = vpop.f32.mrb[0].mxu0
      %v2235 = vadd.f32 0.0, %v2234
      %v2236 = vpop.f32.mrb[0].mxu0
      %v2237 = vpop.f32.mrb[0].mxu0
      %v2238 = vadd.f32 0.0, %v2237
      %v2239 = vpop.f32.mrb[0].mxu0
      %2240 = vmatprep.mubr.bf16.mxu0 0
      %2241 = vmatmul.mubr.bf16.gmra.mrb[0].mxu0 %v2113
      %v2242 = vpop.f32.mrb[0].mxu0
      %v2243 = vadd.f32 0.0, %v2242
      %v2244 = vpop.f32.mrb[0].mxu0
      %v2245 = vpop.f32.mrb[0].mxu0
      %v2246 = vadd.f32 0.0, %v2245
      %v2247 = vpop.f32.mrb[0].mxu0
      %2248 = vmatprep.mubr.bf16.mxu0 0
      %2249 = vmatmul.mubr.bf16.gmra.mrb[0].mxu0 %v2114
      %v2250 = vpop.f32.mrb[0].mxu0
      %v2251 = vadd.f32 0.0, %v2250
      %v2252 = vpop.f32.mrb[0].mxu0
      %v2253 = vpop.f32.mrb[0].mxu0
      %v2254 = vadd.f32 0.0, %v2253
      %v2255 = vpop.f32.mrb[0].mxu0
      %2256 = vmatprep.mubr.bf16.mxu0 0
      %2257 = vmatmul.mubr.bf16.gmra.mrb[0].mxu0 %v2115
      %v2258 = vpop.f32.mrb[0].mxu0
      %v2259 = vadd.f32 0.0, %v2258
      %v2260 = vpop.f32.mrb[0].mxu0
      %v2261 = vpop.f32.mrb[0].mxu0
      %v2262 = vadd.f32 0.0, %v2261
      %v2263 = vpop.f32.mrb[0].mxu0
      %2264 = vmatprep.mubr.bf16.mxu0 0
      %2265 = vmatmul.mubr.bf16.gmra.mrb[0].mxu0 %v2116
      %v2266 = vpop.f32.mrb[0].mxu0
      %v2267 = vadd.f32 0.0, %v2266
      %v2268 = vpop.f32.mrb[0].mxu0
      %v2269 = vpop.f32.mrb[0].mxu0
      %v2270 = vadd.f32 0.0, %v2269
      %v2271 = vpop.f32.mrb[0].mxu0
      %2272 = vmatprep.mubr.bf16.mxu0 0
      %2273 = vmatmul.mubr.bf16.gmra.mrb[0].mxu0 %v2117
      %v2274 = vpop.f32.mrb[0].mxu0
      %v2275 = vadd.f32 0.0, %v2274
      %v2276 = vpop.f32.mrb[0].mxu0
      %v2277 = vpop.f32.mrb[0].mxu0
      %v2278 = vadd.f32 0.0, %v2277
      %v2279 = vpop.f32.mrb[0].mxu0
      %2280 = vmatprep.mubr.bf16.mxu0 0
      %2281 = vmatmul.mubr.bf16.gmra.mrb[0].mxu0 %v2118
      %v2282 = vpop.f32.mrb[0].mxu0
      %v2283 = vadd.f32 0.0, %v2282
      %v2284 = vpop.f32.mrb[0].mxu0
      %v2285 = vpop.f32.mrb[0].mxu0
      %v2286 = vadd.f32 0.0, %v2285
      %v2287 = vpop.f32.mrb[0].mxu0
      %2288 = vmatprep.mubr.bf16.mxu0 0
      %2289 = vmatmul.mubr.bf16.gmra.mrb[0].mxu0 %v2119
      %v2290 = vpop.f32.mrb[0].mxu0
      %v2291 = vadd.f32 0.0, %v2290
      %v2292 = vpop.f32.mrb[0].mxu0
      %v2293 = vpop.f32.mrb[0].mxu0
      %v2294 = vadd.f32 0.0, %v2293
      %v2295 = vpop.f32.mrb[0].mxu0
      %2296 = vmatprep.mubr.bf16.mxu0 0
      %2297 = vmatmul.mubr.bf16.gmra.mrb[0].mxu0 %v2120
      %v2298 = vpop.f32.mrb[0].mxu0
      %v2299 = vadd.f32 0.0, %v2298
      %v2300 = vpop.f32.mrb[0].mxu0
      %v2301 = vpop.f32.mrb[0].mxu0
      %v2302 = vadd.f32 0.0, %v2301
      %v2303 = vpop.f32.mrb[0].mxu0
      %2304 = vmatprep.mubr.bf16.mxu0 0
      %2305 = vmatmul.mubr.bf16.gmra.mrb[0].mxu0 %v2121
      %v2306 = vpop.f32.mrb[0].mxu0
      %v2307 = vadd.f32 0.0, %v2306
      %v2308 = vpop.f32.mrb[0].mxu0
      %v2309 = vpop.f32.mrb[0].mxu0
      %v2310 = vadd.f32 0.0, %v2309
      %v2311 = vpop.f32.mrb[0].mxu0
      %2312 = vmatprep.mubr.bf16.mxu0 0
      %2313 = vmatmul.mubr.bf16.gmra.mrb[0].mxu0 %v2122
      %v2314 = vpop.f32.mrb[0].mxu0
      %v2315 = vadd.f32 0.0, %v2314
      %v2316 = vpop.f32.mrb[0].mxu0
      %v2317 = vpop.f32.mrb[0].mxu0
      %v2318 = vadd.f32 0.0, %v2317
      %v2319 = vpop.f32.mrb[0].mxu0
      %2320 = vmatprep.mubr.bf16.mxu0 0
      %2321 = vmatmul.mubr.bf16.gmra.mrb[0].mxu0 %v2123
      %v2322 = vpop.f32.mrb[0].mxu0
      %v2323 = vadd.f32 0.0, %v2322
      %v2324 = vpop.f32.mrb[0].mxu0
      %v2325 = vpop.f32.mrb[0].mxu0
      %v2326 = vadd.f32 0.0, %v2325
      %v2327 = vpop.f32.mrb[0].mxu0
      %2328 = vmatprep.mubr.bf16.mxu0 0
      %2329 = vmatmul.mubr.bf16.gmra.mrb[0].mxu0 %v2124
      %v2330 = vpop.f32.mrb[0].mxu0
      %v2331 = vadd.f32 0.0, %v2330
      %v2332 = vpop.f32.mrb[0].mxu0
      %v2333 = vpop.f32.mrb[0].mxu0
      %v2334 = vadd.f32 0.0, %v2333
      %v2335 = vpop.f32.mrb[0].mxu0
      %2336 = vmatprep.mubr.bf16.mxu0 0
      %2337 = vmatmul.mubr.bf16.gmra.mrb[0].mxu0 %v2125
      %v2338 = vpop.f32.mrb[0].mxu0
      %v2339 = vadd.f32 0.0, %v2338
      %v2340 = vpop.f32.mrb[0].mxu0
      %v2341 = vpop.f32.mrb[0].mxu0
      %v2342 = vadd.f32 0.0, %v2341
      %v2343 = vpop.f32.mrb[0].mxu0
      %2344 = vmatprep.mubr.bf16.mxu0 0
      %2345 = vmatmul.mubr.bf16.gmra.mrb[0].mxu0 %v2126
      %v2346 = vpop.f32.mrb[0].mxu0
      %v2347 = vadd.f32 0.0, %v2346
      %v2348 = vpop.f32.mrb[0].mxu0
      %v2349 = vpop.f32.mrb[0].mxu0
      %v2350 = vadd.f32 0.0, %v2349
      %v2351 = vpop.f32.mrb[0].mxu0
      %2352 = vdwg.mxu0
      %v2353 = vadd.f32 %v1985, %v2227
      %v2354 = vadd.f32 %v1988, %v2230
      %v2355 = vadd.f32 %v1993, %v2235
      %v2356 = vadd.f32 %v1996, %v2238
      %v2357 = vadd.f32 %v2001, %v2243
      %v2358 = vadd.f32 %v2004, %v2246
      %v2359 = vadd.f32 %v2009, %v2251
      %v2360 = vadd.f32 %v2012, %v2254
      %v2361 = vadd.f32 %v2017, %v2259
      %v2362 = vadd.f32 %v2020, %v2262
      %v2363 = vadd.f32 %v2025, %v2267
      %v2364 = vadd.f32 %v2028, %v2270
      %v2365 = vadd.f32 %v2033, %v2275
      %v2366 = vadd.f32 %v2036, %v2278
      %v2367 = vadd.f32 %v2041, %v2283
      %v2368 = vadd.f32 %v2044, %v2286
      %v2369 = vadd.f32 %v2049, %v2291
      %v2370 = vadd.f32 %v2052, %v2294
      %v2371 = vadd.f32 %v2057, %v2299
      %v2372 = vadd.f32 %v2060, %v2302
      %v2373 = vadd.f32 %v2065, %v2307
      %v2374 = vadd.f32 %v2068, %v2310
      %v2375 = vadd.f32 %v2073, %v2315
      %v2376 = vadd.f32 %v2076, %v2318
      %v2377 = vadd.f32 %v2081, %v2323
      %v2378 = vadd.f32 %v2084, %v2326
      %v2379 = vadd.f32 %v2089, %v2331
      %v2380 = vadd.f32 %v2092, %v2334
      %v2381 = vadd.f32 %v2097, %v2339
      %v2382 = vadd.f32 %v2100, %v2342
      %v2383 = vadd.f32 %v2105, %v2347
      %v2384 = vadd.f32 %v2108, %v2350
      %v2385 = vld [vmem:[#allocation2 + $0x8] sm:$0xff]
      %v2386 = vld [vmem:[#allocation2 + $0x10] sm:$0xff]
      %v2387 = vld [vmem:[#allocation2 + $0x18] sm:$0xff]
      %v2388 = vld [vmem:[#allocation2 + $0x20] sm:$0xff]
      %v2389 = vld [vmem:[#allocation2 + $0x28] sm:$0xff]
      %v2390 = vld [vmem:[#allocation2 + $0x30] sm:$0xff]
      %v2391 = vld [vmem:[#allocation2 + $0x38] sm:$0xff]
      %v2392 = vld [vmem:[#allocation2 + $0x40] sm:$0xff]
      %v2393 = vld [vmem:[#allocation2 + $0x48] sm:$0xff]
      %v2394 = vld [vmem:[#allocation2 + $0x50] sm:$0xff]
      %v2395 = vld [vmem:[#allocation2 + $0x58] sm:$0xff]
      %v2396 = vld [vmem:[#allocation2 + $0x60] sm:$0xff]
      %v2397 = vld [vmem:[#allocation2 + $0x68] sm:$0xff]
      %v2398 = vld [vmem:[#allocation2 + $0x70] sm:$0xff]
      %v2399 = vld [vmem:[#allocation2 + $0x78] sm:$0xff]
      %v2400 = vld [vmem:[#allocation2 + $0x80] sm:$0xff]
      %s2401 = scalar_lea.vmem %s3, 192
      %v2402 = vld [vmem:[%s2401] sm:$0xf]
      %v2403 = vld [vmem:[%s2401 + $0x4] sm:$0xf]
      %v2404 = vld [vmem:[%s2401 + $0x8] sm:$0xf]
      %v2405 = vld [vmem:[%s2401 + $0xc] sm:$0xf]
      %v2406 = vld [vmem:[%s2401 + $0x10] sm:$0xf]
      %v2407 = vld [vmem:[%s2401 + $0x14] sm:$0xf]
      %v2408 = vld [vmem:[%s2401 + $0x18] sm:$0xf]
      %v2409 = vld [vmem:[%s2401 + $0x1c] sm:$0xf]
      %v2410 = vld [vmem:[%s2401 + $0x20] sm:$0xf]
      %v2411 = vld [vmem:[%s2401 + $0x24] sm:$0xf]
      %v2412 = vld [vmem:[%s2401 + $0x28] sm:$0xf]
      %v2413 = vld [vmem:[%s2401 + $0x2c] sm:$0xf]
      %v2414 = vld [vmem:[%s2401 + $0x30] sm:$0xf]
      %v2415 = vld [vmem:[%s2401 + $0x34] sm:$0xf]
      %v2416 = vld [vmem:[%s2401 + $0x38] sm:$0xf]
      %v2417 = vld [vmem:[%s2401 + $0x3c] sm:$0xf]
      %v2434 = vunpack.c.l.b16 %v2402
      %v2435 = vunpack.c.l.b16 %v2403
      %v2436 = vunpack.c.l.b16 %v2404
      %v2437 = vunpack.c.l.b16 %v2405
      %v2438 = vunpack.c.l.b16 %v2406
      %v2439 = vunpack.c.l.b16 %v2407
      %v2440 = vunpack.c.l.b16 %v2408
      %v2441 = vunpack.c.l.b16 %v2409
      %v2442 = vunpack.c.l.b16 %v2410
      %v2443 = vunpack.c.l.b16 %v2411
      %v2444 = vunpack.c.l.b16 %v2412
      %v2445 = vunpack.c.l.b16 %v2413
      %v2446 = vunpack.c.l.b16 %v2414
      %v2447 = vunpack.c.l.b16 %v2415
      %v2448 = vunpack.c.l.b16 %v2416
      %v2449 = vunpack.c.l.b16 %v2417
      %v2450 = vpack.c.b16 %v2435, %v2434
      %v2451 = vpack.c.b16 %v2437, %v2436
      %v2452 = vpack.c.b16 %v2439, %v2438
      %v2453 = vpack.c.b16 %v2441, %v2440
      %v2454 = vpack.c.b16 %v2443, %v2442
      %v2455 = vpack.c.b16 %v2445, %v2444
      %v2456 = vpack.c.b16 %v2447, %v2446
      %v2457 = vpack.c.b16 %v2449, %v2448
      %2466 = vmatprep.subr.bf16.mxu0 0
      %2467 = vmatpush1.bf16.msra.mxu0 %v2450
      %2468 = vmatprep.subr.bf16.mxu0 0
      %2469 = vmatpush1.bf16.msra.mxu0 %v2451
      %2470 = vmatprep.subr.bf16.mxu0 0
      %2471 = vmatpush1.bf16.msra.mxu0 %v2452
      %2472 = vmatprep.subr.bf16.mxu0 0
      %2473 = vmatpush1.bf16.msra.mxu0 %v2453
      %2474 = vmatprep.subr.bf16.mxu0 0
      %2475 = vmatpush1.bf16.msra.mxu0 %v2454
      %2476 = vmatprep.subr.bf16.mxu0 0
      %2477 = vmatpush1.bf16.msra.mxu0 %v2455
      %2478 = vmatprep.subr.bf16.mxu0 0
      %2479 = vmatpush1.bf16.msra.mxu0 %v2456
      %2480 = vmatprep.subr.bf16.mxu0 0
      %2481 = vmatpush1.bf16.msra.mxu0 %v2457
      %2482 = vmatprep.subr.bf16.mxu0 0
      %2483 = vmatpush1.bf16.msra.mxu0 0
      %2484 = vmatprep.subr.bf16.mxu0 0
      %2485 = vmatpush1.bf16.msra.mxu0 0
      %2486 = vmatprep.subr.bf16.mxu0 0
      %2487 = vmatpush1.bf16.msra.mxu0 0
      %2488 = vmatprep.subr.bf16.mxu0 0
      %2489 = vmatpush1.bf16.msra.mxu0 0
      %2490 = vmatprep.subr.bf16.mxu0 0
      %2491 = vmatpush1.bf16.msra.mxu0 0
      %2492 = vmatprep.subr.bf16.mxu0 0
      %2493 = vmatpush1.bf16.msra.mxu0 0
      %2494 = vmatprep.subr.bf16.mxu0 0
      %2495 = vmatpush1.bf16.msra.mxu0 0
      %2496 = vmatprep.subr.bf16.mxu0 0
      %2497 = vmatpush1.bf16.msra.mxu0 0
      %2498 = vmatprep.mubr.bf16.mxu0 0
      %2499 = vmatmul.mubr.bf16.gmra.mrb[0].mxu0 %v2385
      %v2500 = vpop.f32.mrb[0].mxu0
      %v2501 = vadd.f32 0.0, %v2500
      %v2502 = vpop.f32.mrb[0].mxu0
      %v2503 = vpop.f32.mrb[0].mxu0
      %v2504 = vadd.f32 0.0, %v2503
      %v2505 = vpop.f32.mrb[0].mxu0
      %2506 = vmatprep.mubr.bf16.mxu0 0
      %2507 = vmatmul.mubr.bf16.gmra.mrb[0].mxu0 %v2386
      %v2508 = vpop.f32.mrb[0].mxu0
      %v2509 = vadd.f32 0.0, %v2508
      %v2510 = vpop.f32.mrb[0].mxu0
      %v2511 = vpop.f32.mrb[0].mxu0
      %v2512 = vadd.f32 0.0, %v2511
      %v2513 = vpop.f32.mrb[0].mxu0
      %2514 = vmatprep.mubr.bf16.mxu0 0
      %2515 = vmatmul.mubr.bf16.gmra.mrb[0].mxu0 %v2387
      %v2516 = vpop.f32.mrb[0].mxu0
      %v2517 = vadd.f32 0.0, %v2516
      %v2518 = vpop.f32.mrb[0].mxu0
      %v2519 = vpop.f32.mrb[0].mxu0
      %v2520 = vadd.f32 0.0, %v2519
      %v2521 = vpop.f32.mrb[0].mxu0
      %2522 = vmatprep.mubr.bf16.mxu0 0
      %2523 = vmatmul.mubr.bf16.gmra.mrb[0].mxu0 %v2388
      %v2524 = vpop.f32.mrb[0].mxu0
      %v2525 = vadd.f32 0.0, %v2524
      %v2526 = vpop.f32.mrb[0].mxu0
      %v2527 = vpop.f32.mrb[0].mxu0
      %v2528 = vadd.f32 0.0, %v2527
      %v2529 = vpop.f32.mrb[0].mxu0
      %2530 = vmatprep.mubr.bf16.mxu0 0
      %2531 = vmatmul.mubr.bf16.gmra.mrb[0].mxu0 %v2389
      %v2532 = vpop.f32.mrb[0].mxu0
      %v2533 = vadd.f32 0.0, %v2532
      %v2534 = vpop.f32.mrb[0].mxu0
      %v2535 = vpop.f32.mrb[0].mxu0
      %v2536 = vadd.f32 0.0, %v2535
      %v2537 = vpop.f32.mrb[0].mxu0
      %2538 = vmatprep.mubr.bf16.mxu0 0
      %2539 = vmatmul.mubr.bf16.gmra.mrb[0].mxu0 %v2390
      %v2540 = vpop.f32.mrb[0].mxu0
      %v2541 = vadd.f32 0.0, %v2540
      %v2542 = vpop.f32.mrb[0].mxu0
      %v2543 = vpop.f32.mrb[0].mxu0
      %v2544 = vadd.f32 0.0, %v2543
      %v2545 = vpop.f32.mrb[0].mxu0
      %2546 = vmatprep.mubr.bf16.mxu0 0
      %2547 = vmatmul.mubr.bf16.gmra.mrb[0].mxu0 %v2391
      %v2548 = vpop.f32.mrb[0].mxu0
      %v2549 = vadd.f32 0.0, %v2548
      %v2550 = vpop.f32.mrb[0].mxu0
      %v2551 = vpop.f32.mrb[0].mxu0
      %v2552 = vadd.f32 0.0, %v2551
      %v2553 = vpop.f32.mrb[0].mxu0
      %2554 = vmatprep.mubr.bf16.mxu0 0
      %2555 = vmatmul.mubr.bf16.gmra.mrb[0].mxu0 %v2392
      %v2556 = vpop.f32.mrb[0].mxu0
      %v2557 = vadd.f32 0.0, %v2556
      %v2558 = vpop.f32.mrb[0].mxu0
      %v2559 = vpop.f32.mrb[0].mxu0
      %v2560 = vadd.f32 0.0, %v2559
      %v2561 = vpop.f32.mrb[0].mxu0
      %2562 = vmatprep.mubr.bf16.mxu0 0
      %2563 = vmatmul.mubr.bf16.gmra.mrb[0].mxu0 %v2393
      %v2564 = vpop.f32.mrb[0].mxu0
      %v2565 = vadd.f32 0.0, %v2564
      %v2566 = vpop.f32.mrb[0].mxu0
      %v2567 = vpop.f32.mrb[0].mxu0
      %v2568 = vadd.f32 0.0, %v2567
      %v2569 = vpop.f32.mrb[0].mxu0
      %2570 = vmatprep.mubr.bf16.mxu0 0
      %2571 = vmatmul.mubr.bf16.gmra.mrb[0].mxu0 %v2394
      %v2572 = vpop.f32.mrb[0].mxu0
      %v2573 = vadd.f32 0.0, %v2572
      %v2574 = vpop.f32.mrb[0].mxu0
      %v2575 = vpop.f32.mrb[0].mxu0
      %v2576 = vadd.f32 0.0, %v2575
      %v2577 = vpop.f32.mrb[0].mxu0
      %2578 = vmatprep.mubr.bf16.mxu0 0
      %2579 = vmatmul.mubr.bf16.gmra.mrb[0].mxu0 %v2395
      %v2580 = vpop.f32.mrb[0].mxu0
      %v2581 = vadd.f32 0.0, %v2580
      %v2582 = vpop.f32.mrb[0].mxu0
      %v2583 = vpop.f32.mrb[0].mxu0
      %v2584 = vadd.f32 0.0, %v2583
      %v2585 = vpop.f32.mrb[0].mxu0
      %2586 = vmatprep.mubr.bf16.mxu0 0
      %2587 = vmatmul.mubr.bf16.gmra.mrb[0].mxu0 %v2396
      %v2588 = vpop.f32.mrb[0].mxu0
      %v2589 = vadd.f32 0.0, %v2588
      %v2590 = vpop.f32.mrb[0].mxu0
      %v2591 = vpop.f32.mrb[0].mxu0
      %v2592 = vadd.f32 0.0, %v2591
      %v2593 = vpop.f32.mrb[0].mxu0
      %2594 = vmatprep.mubr.bf16.mxu0 0
      %2595 = vmatmul.mubr.bf16.gmra.mrb[0].mxu0 %v2397
      %v2596 = vpop.f32.mrb[0].mxu0
      %v2597 = vadd.f32 0.0, %v2596
      %v2598 = vpop.f32.mrb[0].mxu0
      %v2599 = vpop.f32.mrb[0].mxu0
      %v2600 = vadd.f32 0.0, %v2599
      %v2601 = vpop.f32.mrb[0].mxu0
      %2602 = vmatprep.mubr.bf16.mxu0 0
      %2603 = vmatmul.mubr.bf16.gmra.mrb[0].mxu0 %v2398
      %v2604 = vpop.f32.mrb[0].mxu0
      %v2605 = vadd.f32 0.0, %v2604
      %v2606 = vpop.f32.mrb[0].mxu0
      %v2607 = vpop.f32.mrb[0].mxu0
      %v2608 = vadd.f32 0.0, %v2607
      %v2609 = vpop.f32.mrb[0].mxu0
      %2610 = vmatprep.mubr.bf16.mxu0 0
      %2611 = vmatmul.mubr.bf16.gmra.mrb[0].mxu0 %v2399
      %v2612 = vpop.f32.mrb[0].mxu0
      %v2613 = vadd.f32 0.0, %v2612
      %v2614 = vpop.f32.mrb[0].mxu0
      %v2615 = vpop.f32.mrb[0].mxu0
      %v2616 = vadd.f32 0.0, %v2615
      %v2617 = vpop.f32.mrb[0].mxu0
      %2618 = vmatprep.mubr.bf16.mxu0 0
      %2619 = vmatmul.mubr.bf16.gmra.mrb[0].mxu0 %v2400
      %v2620 = vpop.f32.mrb[0].mxu0
      %v2621 = vadd.f32 0.0, %v2620
      %v2622 = vpop.f32.mrb[0].mxu0
      %v2623 = vpop.f32.mrb[0].mxu0
      %v2624 = vadd.f32 0.0, %v2623
      %v2625 = vpop.f32.mrb[0].mxu0
      %2626 = vdwg.mxu0
      %v2627 = vadd.f32 %v2353, %v2501
      %v2628 = vadd.f32 %v2354, %v2504
      %v2629 = vadd.f32 %v2355, %v2509
      %v2630 = vadd.f32 %v2356, %v2512
      %v2631 = vadd.f32 %v2357, %v2517
      %v2632 = vadd.f32 %v2358, %v2520
      %v2633 = vadd.f32 %v2359, %v2525
      %v2634 = vadd.f32 %v2360, %v2528
      %v2635 = vadd.f32 %v2361, %v2533
      %v2636 = vadd.f32 %v2362, %v2536
      %v2637 = vadd.f32 %v2363, %v2541
      %v2638 = vadd.f32 %v2364, %v2544
      %v2639 = vadd.f32 %v2365, %v2549
      %v2640 = vadd.f32 %v2366, %v2552
      %v2641 = vadd.f32 %v2367, %v2557
      %v2642 = vadd.f32 %v2368, %v2560
      %v2643 = vadd.f32 %v2369, %v2565
      %v2644 = vadd.f32 %v2370, %v2568
      %v2645 = vadd.f32 %v2371, %v2573
      %v2646 = vadd.f32 %v2372, %v2576
      %v2647 = vadd.f32 %v2373, %v2581
      %v2648 = vadd.f32 %v2374, %v2584
      %v2649 = vadd.f32 %v2375, %v2589
      %v2650 = vadd.f32 %v2376, %v2592
      %v2651 = vadd.f32 %v2377, %v2597
      %v2652 = vadd.f32 %v2378, %v2600
      %v2653 = vadd.f32 %v2379, %v2605
      %v2654 = vadd.f32 %v2380, %v2608
      %v2655 = vadd.f32 %v2381, %v2613
      %v2656 = vadd.f32 %v2382, %v2616
      %v2657 = vadd.f32 %v2383, %v2621
      %v2658 = vadd.f32 %v2384, %v2624
      %v2659 = vld [vmem:[%s648 + $0x8] sm:$0xff]
      %v2660 = vld [vmem:[%s648 + $0x10] sm:$0xff]
      %v2661 = vld [vmem:[%s648 + $0x18] sm:$0xff]
      %v2662 = vld [vmem:[%s648 + $0x20] sm:$0xff]
      %v2663 = vld [vmem:[%s648 + $0x28] sm:$0xff]
      %v2664 = vld [vmem:[%s648 + $0x30] sm:$0xff]
      %v2665 = vld [vmem:[%s648 + $0x38] sm:$0xff]
      %v2666 = vld [vmem:[%s648 + $0x40] sm:$0xff]
      %v2667 = vld [vmem:[%s648 + $0x48] sm:$0xff]
      %v2668 = vld [vmem:[%s648 + $0x50] sm:$0xff]
      %v2669 = vld [vmem:[%s648 + $0x58] sm:$0xff]
      %v2670 = vld [vmem:[%s648 + $0x60] sm:$0xff]
      %v2671 = vld [vmem:[%s648 + $0x68] sm:$0xff]
      %v2672 = vld [vmem:[%s648 + $0x70] sm:$0xff]
      %v2673 = vld [vmem:[%s648 + $0x78] sm:$0xff]
      %v2674 = vld [vmem:[%s648 + $0x80] sm:$0xff]
      %s2675 = scalar_lea.vmem %s3, 256
      %v2676 = vld [vmem:[%s2675] sm:$0xf]
      %v2677 = vld [vmem:[%s2675 + $0x4] sm:$0xf]
      %v2678 = vld [vmem:[%s2675 + $0x8] sm:$0xf]
      %v2679 = vld [vmem:[%s2675 + $0xc] sm:$0xf]
      %v2680 = vld [vmem:[%s2675 + $0x10] sm:$0xf]
      %v2681 = vld [vmem:[%s2675 + $0x14] sm:$0xf]
      %v2682 = vld [vmem:[%s2675 + $0x18] sm:$0xf]
      %v2683 = vld [vmem:[%s2675 + $0x1c] sm:$0xf]
      %v2684 = vld [vmem:[%s2675 + $0x20] sm:$0xf]
      %v2685 = vld [vmem:[%s2675 + $0x24] sm:$0xf]
      %v2686 = vld [vmem:[%s2675 + $0x28] sm:$0xf]
      %v2687 = vld [vmem:[%s2675 + $0x2c] sm:$0xf]
      %v2688 = vld [vmem:[%s2675 + $0x30] sm:$0xf]
      %v2689 = vld [vmem:[%s2675 + $0x34] sm:$0xf]
      %v2690 = vld [vmem:[%s2675 + $0x38] sm:$0xf]
      %v2691 = vld [vmem:[%s2675 + $0x3c] sm:$0xf]
      %v2708 = vunpack.c.l.b16 %v2676
      %v2709 = vunpack.c.l.b16 %v2677
      %v2710 = vunpack.c.l.b16 %v2678
      %v2711 = vunpack.c.l.b16 %v2679
      %v2712 = vunpack.c.l.b16 %v2680
      %v2713 = vunpack.c.l.b16 %v2681
      %v2714 = vunpack.c.l.b16 %v2682
      %v2715 = vunpack.c.l.b16 %v2683
      %v2716 = vunpack.c.l.b16 %v2684
      %v2717 = vunpack.c.l.b16 %v2685
      %v2718 = vunpack.c.l.b16 %v2686
      %v2719 = vunpack.c.l.b16 %v2687
      %v2720 = vunpack.c.l.b16 %v2688
      %v2721 = vunpack.c.l.b16 %v2689
      %v2722 = vunpack.c.l.b16 %v2690
      %v2723 = vunpack.c.l.b16 %v2691
      %v2724 = vpack.c.b16 %v2709, %v2708
      %v2725 = vpack.c.b16 %v2711, %v2710
      %v2726 = vpack.c.b16 %v2713, %v2712
      %v2727 = vpack.c.b16 %v2715, %v2714
      %v2728 = vpack.c.b16 %v2717, %v2716
      %v2729 = vpack.c.b16 %v2719, %v2718
      %v2730 = vpack.c.b16 %v2721, %v2720
      %v2731 = vpack.c.b16 %v2723, %v2722
      %2740 = vmatprep.subr.bf16.mxu0 0
      %2741 = vmatpush1.bf16.msra.mxu0 %v2724
      %2742 = vmatprep.subr.bf16.mxu0 0
      %2743 = vmatpush1.bf16.msra.mxu0 %v2725
      %2744 = vmatprep.subr.bf16.mxu0 0
      %2745 = vmatpush1.bf16.msra.mxu0 %v2726
      %2746 = vmatprep.subr.bf16.mxu0 0
      %2747 = vmatpush1.bf16.msra.mxu0 %v2727
      %2748 = vmatprep.subr.bf16.mxu0 0
      %2749 = vmatpush1.bf16.msra.mxu0 %v2728
      %2750 = vmatprep.subr.bf16.mxu0 0
      %2751 = vmatpush1.bf16.msra.mxu0 %v2729
      %2752 = vmatprep.subr.bf16.mxu0 0
      %2753 = vmatpush1.bf16.msra.mxu0 %v2730
      %2754 = vmatprep.subr.bf16.mxu0 0
      %2755 = vmatpush1.bf16.msra.mxu0 %v2731
      %2756 = vmatprep.subr.bf16.mxu0 0
      %2757 = vmatpush1.bf16.msra.mxu0 0
      %2758 = vmatprep.subr.bf16.mxu0 0
      %2759 = vmatpush1.bf16.msra.mxu0 0
      %2760 = vmatprep.subr.bf16.mxu0 0
      %2761 = vmatpush1.bf16.msra.mxu0 0
      %2762 = vmatprep.subr.bf16.mxu0 0
      %2763 = vmatpush1.bf16.msra.mxu0 0
      %2764 = vmatprep.subr.bf16.mxu0 0
      %2765 = vmatpush1.bf16.msra.mxu0 0
      %2766 = vmatprep.subr.bf16.mxu0 0
      %2767 = vmatpush1.bf16.msra.mxu0 0
      %2768 = vmatprep.subr.bf16.mxu0 0
      %2769 = vmatpush1.bf16.msra.mxu0 0
      %2770 = vmatprep.subr.bf16.mxu0 0
      %2771 = vmatpush1.bf16.msra.mxu0 0
      %2772 = vmatprep.mubr.bf16.mxu0 0
      %2773 = vmatmul.mubr.bf16.gmra.mrb[0].mxu0 %v2659
      %v2774 = vpop.f32.mrb[0].mxu0
      %v2775 = vadd.f32 0.0, %v2774
      %v2776 = vpop.f32.mrb[0].mxu0
      %v2777 = vpop.f32.mrb[0].mxu0
      %v2778 = vadd.f32 0.0, %v2777
      %v2779 = vpop.f32.mrb[0].mxu0
      %2780 = vmatprep.mubr.bf16.mxu0 0
      %2781 = vmatmul.mubr.bf16.gmra.mrb[0].mxu0 %v2660
      %v2782 = vpop.f32.mrb[0].mxu0
      %v2783 = vadd.f32 0.0, %v2782
      %v2784 = vpop.f32.mrb[0].mxu0
      %v2785 = vpop.f32.mrb[0].mxu0
      %v2786 = vadd.f32 0.0, %v2785
      %v2787 = vpop.f32.mrb[0].mxu0
      %2788 = vmatprep.mubr.bf16.mxu0 0
      %2789 = vmatmul.mubr.bf16.gmra.mrb[0].mxu0 %v2661
      %v2790 = vpop.f32.mrb[0].mxu0
      %v2791 = vadd.f32 0.0, %v2790
      %v2792 = vpop.f32.mrb[0].mxu0
      %v2793 = vpop.f32.mrb[0].mxu0
      %v2794 = vadd.f32 0.0, %v2793
      %v2795 = vpop.f32.mrb[0].mxu0
      %2796 = vmatprep.mubr.bf16.mxu0 0
      %2797 = vmatmul.mubr.bf16.gmra.mrb[0].mxu0 %v2662
      %v2798 = vpop.f32.mrb[0].mxu0
      %v2799 = vadd.f32 0.0, %v2798
      %v2800 = vpop.f32.mrb[0].mxu0
      %v2801 = vpop.f32.mrb[0].mxu0
      %v2802 = vadd.f32 0.0, %v2801
      %v2803 = vpop.f32.mrb[0].mxu0
      %2804 = vmatprep.mubr.bf16.mxu0 0
      %2805 = vmatmul.mubr.bf16.gmra.mrb[0].mxu0 %v2663
      %v2806 = vpop.f32.mrb[0].mxu0
      %v2807 = vadd.f32 0.0, %v2806
      %v2808 = vpop.f32.mrb[0].mxu0
      %v2809 = vpop.f32.mrb[0].mxu0
      %v2810 = vadd.f32 0.0, %v2809
      %v2811 = vpop.f32.mrb[0].mxu0
      %2812 = vmatprep.mubr.bf16.mxu0 0
      %2813 = vmatmul.mubr.bf16.gmra.mrb[0].mxu0 %v2664
      %v2814 = vpop.f32.mrb[0].mxu0
      %v2815 = vadd.f32 0.0, %v2814
      %v2816 = vpop.f32.mrb[0].mxu0
      %v2817 = vpop.f32.mrb[0].mxu0
      %v2818 = vadd.f32 0.0, %v2817
      %v2819 = vpop.f32.mrb[0].mxu0
      %2820 = vmatprep.mubr.bf16.mxu0 0
      %2821 = vmatmul.mubr.bf16.gmra.mrb[0].mxu0 %v2665
      %v2822 = vpop.f32.mrb[0].mxu0
      %v2823 = vadd.f32 0.0, %v2822
      %v2824 = vpop.f32.mrb[0].mxu0
      %v2825 = vpop.f32.mrb[0].mxu0
      %v2826 = vadd.f32 0.0, %v2825
      %v2827 = vpop.f32.mrb[0].mxu0
      %2828 = vmatprep.mubr.bf16.mxu0 0
      %2829 = vmatmul.mubr.bf16.gmra.mrb[0].mxu0 %v2666
      %v2830 = vpop.f32.mrb[0].mxu0
      %v2831 = vadd.f32 0.0, %v2830
      %v2832 = vpop.f32.mrb[0].mxu0
      %v2833 = vpop.f32.mrb[0].mxu0
      %v2834 = vadd.f32 0.0, %v2833
      %v2835 = vpop.f32.mrb[0].mxu0
      %2836 = vmatprep.mubr.bf16.mxu0 0
      %2837 = vmatmul.mubr.bf16.gmra.mrb[0].mxu0 %v2667
      %v2838 = vpop.f32.mrb[0].mxu0
      %v2839 = vadd.f32 0.0, %v2838
      %v2840 = vpop.f32.mrb[0].mxu0
      %v2841 = vpop.f32.mrb[0].mxu0
      %v2842 = vadd.f32 0.0, %v2841
      %v2843 = vpop.f32.mrb[0].mxu0
      %2844 = vmatprep.mubr.bf16.mxu0 0
      %2845 = vmatmul.mubr.bf16.gmra.mrb[0].mxu0 %v2668
      %v2846 = vpop.f32.mrb[0].mxu0
      %v2847 = vadd.f32 0.0, %v2846
      %v2848 = vpop.f32.mrb[0].mxu0
      %v2849 = vpop.f32.mrb[0].mxu0
      %v2850 = vadd.f32 0.0, %v2849
      %v2851 = vpop.f32.mrb[0].mxu0
      %2852 = vmatprep.mubr.bf16.mxu0 0
      %2853 = vmatmul.mubr.bf16.gmra.mrb[0].mxu0 %v2669
      %v2854 = vpop.f32.mrb[0].mxu0
      %v2855 = vadd.f32 0.0, %v2854
      %v2856 = vpop.f32.mrb[0].mxu0
      %v2857 = vpop.f32.mrb[0].mxu0
      %v2858 = vadd.f32 0.0, %v2857
      %v2859 = vpop.f32.mrb[0].mxu0
      %2860 = vmatprep.mubr.bf16.mxu0 0
      %2861 = vmatmul.mubr.bf16.gmra.mrb[0].mxu0 %v2670
      %v2862 = vpop.f32.mrb[0].mxu0
      %v2863 = vadd.f32 0.0, %v2862
      %v2864 = vpop.f32.mrb[0].mxu0
      %v2865 = vpop.f32.mrb[0].mxu0
      %v2866 = vadd.f32 0.0, %v2865
      %v2867 = vpop.f32.mrb[0].mxu0
      %2868 = vmatprep.mubr.bf16.mxu0 0
      %2869 = vmatmul.mubr.bf16.gmra.mrb[0].mxu0 %v2671
      %v2870 = vpop.f32.mrb[0].mxu0
      %v2871 = vadd.f32 0.0, %v2870
      %v2872 = vpop.f32.mrb[0].mxu0
      %v2873 = vpop.f32.mrb[0].mxu0
      %v2874 = vadd.f32 0.0, %v2873
      %v2875 = vpop.f32.mrb[0].mxu0
      %2876 = vmatprep.mubr.bf16.mxu0 0
      %2877 = vmatmul.mubr.bf16.gmra.mrb[0].mxu0 %v2672
      %v2878 = vpop.f32.mrb[0].mxu0
      %v2879 = vadd.f32 0.0, %v2878
      %v2880 = vpop.f32.mrb[0].mxu0
      %v2881 = vpop.f32.mrb[0].mxu0
      %v2882 = vadd.f32 0.0, %v2881
      %v2883 = vpop.f32.mrb[0].mxu0
      %2884 = vmatprep.mubr.bf16.mxu0 0
      %2885 = vmatmul.mubr.bf16.gmra.mrb[0].mxu0 %v2673
      %v2886 = vpop.f32.mrb[0].mxu0
      %v2887 = vadd.f32 0.0, %v2886
      %v2888 = vpop.f32.mrb[0].mxu0
      %v2889 = vpop.f32.mrb[0].mxu0
      %v2890 = vadd.f32 0.0, %v2889
      %v2891 = vpop.f32.mrb[0].mxu0
      %2892 = vmatprep.mubr.bf16.mxu0 0
      %2893 = vmatmul.mubr.bf16.gmra.mrb[0].mxu0 %v2674
      %v2894 = vpop.f32.mrb[0].mxu0
      %v2895 = vadd.f32 0.0, %v2894
      %v2896 = vpop.f32.mrb[0].mxu0
      %v2897 = vpop.f32.mrb[0].mxu0
      %v2898 = vadd.f32 0.0, %v2897
      %v2899 = vpop.f32.mrb[0].mxu0
      %2900 = vdwg.mxu0
      %v2901 = vadd.f32 %v2627, %v2775
      %v2902 = vadd.f32 %v2628, %v2778
      %v2903 = vadd.f32 %v2629, %v2783
      %v2904 = vadd.f32 %v2630, %v2786
      %v2905 = vadd.f32 %v2631, %v2791
      %v2906 = vadd.f32 %v2632, %v2794
      %v2907 = vadd.f32 %v2633, %v2799
      %v2908 = vadd.f32 %v2634, %v2802
      %v2909 = vadd.f32 %v2635, %v2807
      %v2910 = vadd.f32 %v2636, %v2810
      %v2911 = vadd.f32 %v2637, %v2815
      %v2912 = vadd.f32 %v2638, %v2818
      %v2913 = vadd.f32 %v2639, %v2823
      %v2914 = vadd.f32 %v2640, %v2826
      %v2915 = vadd.f32 %v2641, %v2831
      %v2916 = vadd.f32 %v2642, %v2834
      %v2917 = vadd.f32 %v2643, %v2839
      %v2918 = vadd.f32 %v2644, %v2842
      %v2919 = vadd.f32 %v2645, %v2847
      %v2920 = vadd.f32 %v2646, %v2850
      %v2921 = vadd.f32 %v2647, %v2855
      %v2922 = vadd.f32 %v2648, %v2858
      %v2923 = vadd.f32 %v2649, %v2863
      %v2924 = vadd.f32 %v2650, %v2866
      %v2925 = vadd.f32 %v2651, %v2871
      %v2926 = vadd.f32 %v2652, %v2874
      %v2927 = vadd.f32 %v2653, %v2879
      %v2928 = vadd.f32 %v2654, %v2882
      %v2929 = vadd.f32 %v2655, %v2887
      %v2930 = vadd.f32 %v2656, %v2890
      %v2931 = vadd.f32 %v2657, %v2895
      %v2932 = vadd.f32 %v2658, %v2898
      %v2933 = vld [vmem:[%s651 + $0x8] sm:$0xff]
      %v2934 = vld [vmem:[%s651 + $0x10] sm:$0xff]
      %v2935 = vld [vmem:[%s651 + $0x18] sm:$0xff]
      %v2936 = vld [vmem:[%s651 + $0x20] sm:$0xff]
      %v2937 = vld [vmem:[%s651 + $0x28] sm:$0xff]
      %v2938 = vld [vmem:[%s651 + $0x30] sm:$0xff]
      %v2939 = vld [vmem:[%s651 + $0x38] sm:$0xff]
      %v2940 = vld [vmem:[%s651 + $0x40] sm:$0xff]
      %v2941 = vld [vmem:[%s651 + $0x48] sm:$0xff]
      %v2942 = vld [vmem:[%s651 + $0x50] sm:$0xff]
      %v2943 = vld [vmem:[%s651 + $0x58] sm:$0xff]
      %v2944 = vld [vmem:[%s651 + $0x60] sm:$0xff]
      %v2945 = vld [vmem:[%s651 + $0x68] sm:$0xff]
      %v2946 = vld [vmem:[%s651 + $0x70] sm:$0xff]
      %v2947 = vld [vmem:[%s651 + $0x78] sm:$0xff]
      %v2948 = vld [vmem:[%s651 + $0x80] sm:$0xff]
      %s2949 = scalar_lea.vmem %s3, 320
      %v2950 = vld [vmem:[%s2949] sm:$0xf]
      %v2951 = vld [vmem:[%s2949 + $0x4] sm:$0xf]
      %v2952 = vld [vmem:[%s2949 + $0x8] sm:$0xf]
      %v2953 = vld [vmem:[%s2949 + $0xc] sm:$0xf]
      %v2954 = vld [vmem:[%s2949 + $0x10] sm:$0xf]
      %v2955 = vld [vmem:[%s2949 + $0x14] sm:$0xf]
      %v2956 = vld [vmem:[%s2949 + $0x18] sm:$0xf]
      %v2957 = vld [vmem:[%s2949 + $0x1c] sm:$0xf]
      %v2958 = vld [vmem:[%s2949 + $0x20] sm:$0xf]
      %v2959 = vld [vmem:[%s2949 + $0x24] sm:$0xf]
      %v2960 = vld [vmem:[%s2949 + $0x28] sm:$0xf]
      %v2961 = vld [vmem:[%s2949 + $0x2c] sm:$0xf]
      %v2962 = vld [vmem:[%s2949 + $0x30] sm:$0xf]
      %v2963 = vld [vmem:[%s2949 + $0x34] sm:$0xf]
      %v2964 = vld [vmem:[%s2949 + $0x38] sm:$0xf]
      %v2965 = vld [vmem:[%s2949 + $0x3c] sm:$0xf]
      %v2982 = vunpack.c.l.b16 %v2950
      %v2983 = vunpack.c.l.b16 %v2951
      %v2984 = vunpack.c.l.b16 %v2952
      %v2985 = vunpack.c.l.b16 %v2953
      %v2986 = vunpack.c.l.b16 %v2954
      %v2987 = vunpack.c.l.b16 %v2955
      %v2988 = vunpack.c.l.b16 %v2956
      %v2989 = vunpack.c.l.b16 %v2957
      %v2990 = vunpack.c.l.b16 %v2958
      %v2991 = vunpack.c.l.b16 %v2959
      %v2992 = vunpack.c.l.b16 %v2960
      %v2993 = vunpack.c.l.b16 %v2961
      %v2994 = vunpack.c.l.b16 %v2962
      %v2995 = vunpack.c.l.b16 %v2963
      %v2996 = vunpack.c.l.b16 %v2964
      %v2997 = vunpack.c.l.b16 %v2965
      %v2998 = vpack.c.b16 %v2983, %v2982
      %v2999 = vpack.c.b16 %v2985, %v2984
      %v3000 = vpack.c.b16 %v2987, %v2986
      %v3001 = vpack.c.b16 %v2989, %v2988
      %v3002 = vpack.c.b16 %v2991, %v2990
      %v3003 = vpack.c.b16 %v2993, %v2992
      %v3004 = vpack.c.b16 %v2995, %v2994
      %v3005 = vpack.c.b16 %v2997, %v2996
      %3014 = vmatprep.subr.bf16.mxu0 0
      %3015 = vmatpush1.bf16.msra.mxu0 %v2998
      %3016 = vmatprep.subr.bf16.mxu0 0
      %3017 = vmatpush1.bf16.msra.mxu0 %v2999
      %3018 = vmatprep.subr.bf16.mxu0 0
      %3019 = vmatpush1.bf16.msra.mxu0 %v3000
      %3020 = vmatprep.subr.bf16.mxu0 0
      %3021 = vmatpush1.bf16.msra.mxu0 %v3001
      %3022 = vmatprep.subr.bf16.mxu0 0
      %3023 = vmatpush1.bf16.msra.mxu0 %v3002
      %3024 = vmatprep.subr.bf16.mxu0 0
      %3025 = vmatpush1.bf16.msra.mxu0 %v3003
      %3026 = vmatprep.subr.bf16.mxu0 0
      %3027 = vmatpush1.bf16.msra.mxu0 %v3004
      %3028 = vmatprep.subr.bf16.mxu0 0
      %3029 = vmatpush1.bf16.msra.mxu0 %v3005
      %3030 = vmatprep.subr.bf16.mxu0 0
      %3031 = vmatpush1.bf16.msra.mxu0 0
      %3032 = vmatprep.subr.bf16.mxu0 0
      %3033 = vmatpush1.bf16.msra.mxu0 0
      %3034 = vmatprep.subr.bf16.mxu0 0
      %3035 = vmatpush1.bf16.msra.mxu0 0
      %3036 = vmatprep.subr.bf16.mxu0 0
      %3037 = vmatpush1.bf16.msra.mxu0 0
      %3038 = vmatprep.subr.bf16.mxu0 0
      %3039 = vmatpush1.bf16.msra.mxu0 0
      %3040 = vmatprep.subr.bf16.mxu0 0
      %3041 = vmatpush1.bf16.msra.mxu0 0
      %3042 = vmatprep.subr.bf16.mxu0 0
      %3043 = vmatpush1.bf16.msra.mxu0 0
      %3044 = vmatprep.subr.bf16.mxu0 0
      %3045 = vmatpush1.bf16.msra.mxu0 0
      %3046 = vmatprep.mubr.bf16.mxu0 0
      %3047 = vmatmul.mubr.bf16.gmra.mrb[0].mxu0 %v2933
      %v3048 = vpop.f32.mrb[0].mxu0
      %v3049 = vadd.f32 0.0, %v3048
      %v3050 = vpop.f32.mrb[0].mxu0
      %v3051 = vpop.f32.mrb[0].mxu0
      %v3052 = vadd.f32 0.0, %v3051
      %v3053 = vpop.f32.mrb[0].mxu0
      %3054 = vmatprep.mubr.bf16.mxu0 0
      %3055 = vmatmul.mubr.bf16.gmra.mrb[0].mxu0 %v2934
      %v3056 = vpop.f32.mrb[0].mxu0
      %v3057 = vadd.f32 0.0, %v3056
      %v3058 = vpop.f32.mrb[0].mxu0
      %v3059 = vpop.f32.mrb[0].mxu0
      %v3060 = vadd.f32 0.0, %v3059
      %v3061 = vpop.f32.mrb[0].mxu0
      %3062 = vmatprep.mubr.bf16.mxu0 0
      %3063 = vmatmul.mubr.bf16.gmra.mrb[0].mxu0 %v2935
      %v3064 = vpop.f32.mrb[0].mxu0
      %v3065 = vadd.f32 0.0, %v3064
      %v3066 = vpop.f32.mrb[0].mxu0
      %v3067 = vpop.f32.mrb[0].mxu0
      %v3068 = vadd.f32 0.0, %v3067
      %v3069 = vpop.f32.mrb[0].mxu0
      %3070 = vmatprep.mubr.bf16.mxu0 0
      %3071 = vmatmul.mubr.bf16.gmra.mrb[0].mxu0 %v2936
      %v3072 = vpop.f32.mrb[0].mxu0
      %v3073 = vadd.f32 0.0, %v3072
      %v3074 = vpop.f32.mrb[0].mxu0
      %v3075 = vpop.f32.mrb[0].mxu0
      %v3076 = vadd.f32 0.0, %v3075
      %v3077 = vpop.f32.mrb[0].mxu0
      %3078 = vmatprep.mubr.bf16.mxu0 0
      %3079 = vmatmul.mubr.bf16.gmra.mrb[0].mxu0 %v2937
      %v3080 = vpop.f32.mrb[0].mxu0
      %v3081 = vadd.f32 0.0, %v3080
      %v3082 = vpop.f32.mrb[0].mxu0
      %v3083 = vpop.f32.mrb[0].mxu0
      %v3084 = vadd.f32 0.0, %v3083
      %v3085 = vpop.f32.mrb[0].mxu0
      %3086 = vmatprep.mubr.bf16.mxu0 0
      %3087 = vmatmul.mubr.bf16.gmra.mrb[0].mxu0 %v2938
      %v3088 = vpop.f32.mrb[0].mxu0
      %v3089 = vadd.f32 0.0, %v3088
      %v3090 = vpop.f32.mrb[0].mxu0
      %v3091 = vpop.f32.mrb[0].mxu0
      %v3092 = vadd.f32 0.0, %v3091
      %v3093 = vpop.f32.mrb[0].mxu0
      %3094 = vmatprep.mubr.bf16.mxu0 0
      %3095 = vmatmul.mubr.bf16.gmra.mrb[0].mxu0 %v2939
      %v3096 = vpop.f32.mrb[0].mxu0
      %v3097 = vadd.f32 0.0, %v3096
      %v3098 = vpop.f32.mrb[0].mxu0
      %v3099 = vpop.f32.mrb[0].mxu0
      %v3100 = vadd.f32 0.0, %v3099
      %v3101 = vpop.f32.mrb[0].mxu0
      %3102 = vmatprep.mubr.bf16.mxu0 0
      %3103 = vmatmul.mubr.bf16.gmra.mrb[0].mxu0 %v2940
      %v3104 = vpop.f32.mrb[0].mxu0
      %v3105 = vadd.f32 0.0, %v3104
      %v3106 = vpop.f32.mrb[0].mxu0
      %v3107 = vpop.f32.mrb[0].mxu0
      %v3108 = vadd.f32 0.0, %v3107
      %v3109 = vpop.f32.mrb[0].mxu0
      %3110 = vmatprep.mubr.bf16.mxu0 0
      %3111 = vmatmul.mubr.bf16.gmra.mrb[0].mxu0 %v2941
      %v3112 = vpop.f32.mrb[0].mxu0
      %v3113 = vadd.f32 0.0, %v3112
      %v3114 = vpop.f32.mrb[0].mxu0
      %v3115 = vpop.f32.mrb[0].mxu0
      %v3116 = vadd.f32 0.0, %v3115
      %v3117 = vpop.f32.mrb[0].mxu0
      %3118 = vmatprep.mubr.bf16.mxu0 0
      %3119 = vmatmul.mubr.bf16.gmra.mrb[0].mxu0 %v2942
      %v3120 = vpop.f32.mrb[0].mxu0
      %v3121 = vadd.f32 0.0, %v3120
      %v3122 = vpop.f32.mrb[0].mxu0
      %v3123 = vpop.f32.mrb[0].mxu0
      %v3124 = vadd.f32 0.0, %v3123
      %v3125 = vpop.f32.mrb[0].mxu0
      %3126 = vmatprep.mubr.bf16.mxu0 0
      %3127 = vmatmul.mubr.bf16.gmra.mrb[0].mxu0 %v2943
      %v3128 = vpop.f32.mrb[0].mxu0
      %v3129 = vadd.f32 0.0, %v3128
      %v3130 = vpop.f32.mrb[0].mxu0
      %v3131 = vpop.f32.mrb[0].mxu0
      %v3132 = vadd.f32 0.0, %v3131
      %v3133 = vpop.f32.mrb[0].mxu0
      %3134 = vmatprep.mubr.bf16.mxu0 0
      %3135 = vmatmul.mubr.bf16.gmra.mrb[0].mxu0 %v2944
      %v3136 = vpop.f32.mrb[0].mxu0
      %v3137 = vadd.f32 0.0, %v3136
      %v3138 = vpop.f32.mrb[0].mxu0
      %v3139 = vpop.f32.mrb[0].mxu0
      %v3140 = vadd.f32 0.0, %v3139
      %v3141 = vpop.f32.mrb[0].mxu0
      %3142 = vmatprep.mubr.bf16.mxu0 0
      %3143 = vmatmul.mubr.bf16.gmra.mrb[0].mxu0 %v2945
      %v3144 = vpop.f32.mrb[0].mxu0
      %v3145 = vadd.f32 0.0, %v3144
      %v3146 = vpop.f32.mrb[0].mxu0
      %v3147 = vpop.f32.mrb[0].mxu0
      %v3148 = vadd.f32 0.0, %v3147
      %v3149 = vpop.f32.mrb[0].mxu0
      %3150 = vmatprep.mubr.bf16.mxu0 0
      %3151 = vmatmul.mubr.bf16.gmra.mrb[0].mxu0 %v2946
      %v3152 = vpop.f32.mrb[0].mxu0
      %v3153 = vadd.f32 0.0, %v3152
      %v3154 = vpop.f32.mrb[0].mxu0
      %v3155 = vpop.f32.mrb[0].mxu0
      %v3156 = vadd.f32 0.0, %v3155
      %v3157 = vpop.f32.mrb[0].mxu0
      %3158 = vmatprep.mubr.bf16.mxu0 0
      %3159 = vmatmul.mubr.bf16.gmra.mrb[0].mxu0 %v2947
      %v3160 = vpop.f32.mrb[0].mxu0
      %v3161 = vadd.f32 0.0, %v3160
      %v3162 = vpop.f32.mrb[0].mxu0
      %v3163 = vpop.f32.mrb[0].mxu0
      %v3164 = vadd.f32 0.0, %v3163
      %v3165 = vpop.f32.mrb[0].mxu0
      %3166 = vmatprep.mubr.bf16.mxu0 0
      %3167 = vmatmul.mubr.bf16.gmra.mrb[0].mxu0 %v2948
      %v3168 = vpop.f32.mrb[0].mxu0
      %v3169 = vadd.f32 0.0, %v3168
      %v3170 = vpop.f32.mrb[0].mxu0
      %v3171 = vpop.f32.mrb[0].mxu0
      %v3172 = vadd.f32 0.0, %v3171
      %v3173 = vpop.f32.mrb[0].mxu0
      %3174 = vdwg.mxu0
      %v3175 = vadd.f32 %v2901, %v3049
      %v3176 = vadd.f32 %v2902, %v3052
      %v3177 = vadd.f32 %v2903, %v3057
      %v3178 = vadd.f32 %v2904, %v3060
      %v3179 = vadd.f32 %v2905, %v3065
      %v3180 = vadd.f32 %v2906, %v3068
      %v3181 = vadd.f32 %v2907, %v3073
      %v3182 = vadd.f32 %v2908, %v3076
      %v3183 = vadd.f32 %v2909, %v3081
      %v3184 = vadd.f32 %v2910, %v3084
      %v3185 = vadd.f32 %v2911, %v3089
      %v3186 = vadd.f32 %v2912, %v3092
      %v3187 = vadd.f32 %v2913, %v3097
      %v3188 = vadd.f32 %v2914, %v3100
      %v3189 = vadd.f32 %v2915, %v3105
      %v3190 = vadd.f32 %v2916, %v3108
      %v3191 = vadd.f32 %v2917, %v3113
      %v3192 = vadd.f32 %v2918, %v3116
      %v3193 = vadd.f32 %v2919, %v3121
      %v3194 = vadd.f32 %v2920, %v3124
      %v3195 = vadd.f32 %v2921, %v3129
      %v3196 = vadd.f32 %v2922, %v3132
      %v3197 = vadd.f32 %v2923, %v3137
      %v3198 = vadd.f32 %v2924, %v3140
      %v3199 = vadd.f32 %v2925, %v3145
      %v3200 = vadd.f32 %v2926, %v3148
      %v3201 = vadd.f32 %v2927, %v3153
      %v3202 = vadd.f32 %v2928, %v3156
      %v3203 = vadd.f32 %v2929, %v3161
      %v3204 = vadd.f32 %v2930, %v3164
      %v3205 = vadd.f32 %v2931, %v3169
      %v3206 = vadd.f32 %v2932, %v3172
      %v3207 = vld [vmem:[#allocation2 + $0x10] sm:$0xff]
      %v3208 = vld [vmem:[#allocation2 + $0x18] sm:$0xff]
      %v3209 = vld [vmem:[#allocation2 + $0x20] sm:$0xff]
      %v3210 = vld [vmem:[#allocation2 + $0x28] sm:$0xff]
      %v3211 = vld [vmem:[#allocation2 + $0x30] sm:$0xff]
      %v3212 = vld [vmem:[#allocation2 + $0x38] sm:$0xff]
      %v3213 = vld [vmem:[#allocation2 + $0x40] sm:$0xff]
      %v3214 = vld [vmem:[#allocation2 + $0x48] sm:$0xff]
      %v3215 = vld [vmem:[#allocation2 + $0x50] sm:$0xff]
      %v3216 = vld [vmem:[#allocation2 + $0x58] sm:$0xff]
      %v3217 = vld [vmem:[#allocation2 + $0x60] sm:$0xff]
      %v3218 = vld [vmem:[#allocation2 + $0x68] sm:$0xff]
      %v3219 = vld [vmem:[#allocation2 + $0x70] sm:$0xff]
      %v3220 = vld [vmem:[#allocation2 + $0x78] sm:$0xff]
      %v3221 = vld [vmem:[#allocation2 + $0x80] sm:$0xff]
      %v3222 = vld [vmem:[#allocation2 + $0x88] sm:$0xff]
      %s3223 = scalar_lea.vmem %s3, 384
      %v3224 = vld [vmem:[%s3223] sm:$0xf]
      %v3225 = vld [vmem:[%s3223 + $0x4] sm:$0xf]
      %v3226 = vld [vmem:[%s3223 + $0x8] sm:$0xf]
      %v3227 = vld [vmem:[%s3223 + $0xc] sm:$0xf]
      %v3228 = vld [vmem:[%s3223 + $0x10] sm:$0xf]
      %v3229 = vld [vmem:[%s3223 + $0x14] sm:$0xf]
      %v3230 = vld [vmem:[%s3223 + $0x18] sm:$0xf]
      %v3231 = vld [vmem:[%s3223 + $0x1c] sm:$0xf]
      %v3232 = vld [vmem:[%s3223 + $0x20] sm:$0xf]
      %v3233 = vld [vmem:[%s3223 + $0x24] sm:$0xf]
      %v3234 = vld [vmem:[%s3223 + $0x28] sm:$0xf]
      %v3235 = vld [vmem:[%s3223 + $0x2c] sm:$0xf]
      %v3236 = vld [vmem:[%s3223 + $0x30] sm:$0xf]
      %v3237 = vld [vmem:[%s3223 + $0x34] sm:$0xf]
      %v3238 = vld [vmem:[%s3223 + $0x38] sm:$0xf]
      %v3239 = vld [vmem:[%s3223 + $0x3c] sm:$0xf]
      %v3256 = vunpack.c.l.b16 %v3224
      %v3257 = vunpack.c.l.b16 %v3225
      %v3258 = vunpack.c.l.b16 %v3226
      %v3259 = vunpack.c.l.b16 %v3227
      %v3260 = vunpack.c.l.b16 %v3228
      %v3261 = vunpack.c.l.b16 %v3229
      %v3262 = vunpack.c.l.b16 %v3230
      %v3263 = vunpack.c.l.b16 %v3231
      %v3264 = vunpack.c.l.b16 %v3232
      %v3265 = vunpack.c.l.b16 %v3233
      %v3266 = vunpack.c.l.b16 %v3234
      %v3267 = vunpack.c.l.b16 %v3235
      %v3268 = vunpack.c.l.b16 %v3236
      %v3269 = vunpack.c.l.b16 %v3237
      %v3270 = vunpack.c.l.b16 %v3238
      %v3271 = vunpack.c.l.b16 %v3239
      %v3272 = vpack.c.b16 %v3257, %v3256
      %v3273 = vpack.c.b16 %v3259, %v3258
      %v3274 = vpack.c.b16 %v3261, %v3260
      %v3275 = vpack.c.b16 %v3263, %v3262
      %v3276 = vpack.c.b16 %v3265, %v3264
      %v3277 = vpack.c.b16 %v3267, %v3266
      %v3278 = vpack.c.b16 %v3269, %v3268
      %v3279 = vpack.c.b16 %v3271, %v3270
      %3288 = vmatprep.subr.bf16.mxu0 0
      %3289 = vmatpush1.bf16.msra.mxu0 %v3272
      %3290 = vmatprep.subr.bf16.mxu0 0
      %3291 = vmatpush1.bf16.msra.mxu0 %v3273
      %3292 = vmatprep.subr.bf16.mxu0 0
      %3293 = vmatpush1.bf16.msra.mxu0 %v3274
      %3294 = vmatprep.subr.bf16.mxu0 0
      %3295 = vmatpush1.bf16.msra.mxu0 %v3275
      %3296 = vmatprep.subr.bf16.mxu0 0
      %3297 = vmatpush1.bf16.msra.mxu0 %v3276
      %3298 = vmatprep.subr.bf16.mxu0 0
      %3299 = vmatpush1.bf16.msra.mxu0 %v3277
      %3300 = vmatprep.subr.bf16.mxu0 0
      %3301 = vmatpush1.bf16.msra.mxu0 %v3278
      %3302 = vmatprep.subr.bf16.mxu0 0
      %3303 = vmatpush1.bf16.msra.mxu0 %v3279
      %3304 = vmatprep.subr.bf16.mxu0 0
      %3305 = vmatpush1.bf16.msra.mxu0 0
      %3306 = vmatprep.subr.bf16.mxu0 0
      %3307 = vmatpush1.bf16.msra.mxu0 0
      %3308 = vmatprep.subr.bf16.mxu0 0
      %3309 = vmatpush1.bf16.msra.mxu0 0
      %3310 = vmatprep.subr.bf16.mxu0 0
      %3311 = vmatpush1.bf16.msra.mxu0 0
      %3312 = vmatprep.subr.bf16.mxu0 0
      %3313 = vmatpush1.bf16.msra.mxu0 0
      %3314 = vmatprep.subr.bf16.mxu0 0
      %3315 = vmatpush1.bf16.msra.mxu0 0
      %3316 = vmatprep.subr.bf16.mxu0 0
      %3317 = vmatpush1.bf16.msra.mxu0 0
      %3318 = vmatprep.subr.bf16.mxu0 0
      %3319 = vmatpush1.bf16.msra.mxu0 0
      %3320 = vmatprep.mubr.bf16.mxu0 0
      %3321 = vmatmul.mubr.bf16.gmra.mrb[0].mxu0 %v3207
      %v3322 = vpop.f32.mrb[0].mxu0
      %v3323 = vadd.f32 0.0, %v3322
      %v3324 = vpop.f32.mrb[0].mxu0
      %v3325 = vpop.f32.mrb[0].mxu0
      %v3326 = vadd.f32 0.0, %v3325
      %v3327 = vpop.f32.mrb[0].mxu0
      %3328 = vmatprep.mubr.bf16.mxu0 0
      %3329 = vmatmul.mubr.bf16.gmra.mrb[0].mxu0 %v3208
      %v3330 = vpop.f32.mrb[0].mxu0
      %v3331 = vadd.f32 0.0, %v3330
      %v3332 = vpop.f32.mrb[0].mxu0
      %v3333 = vpop.f32.mrb[0].mxu0
      %v3334 = vadd.f32 0.0, %v3333
      %v3335 = vpop.f32.mrb[0].mxu0
      %3336 = vmatprep.mubr.bf16.mxu0 0
      %3337 = vmatmul.mubr.bf16.gmra.mrb[0].mxu0 %v3209
      %v3338 = vpop.f32.mrb[0].mxu0
      %v3339 = vadd.f32 0.0, %v3338
      %v3340 = vpop.f32.mrb[0].mxu0
      %v3341 = vpop.f32.mrb[0].mxu0
      %v3342 = vadd.f32 0.0, %v3341
      %v3343 = vpop.f32.mrb[0].mxu0
      %3344 = vmatprep.mubr.bf16.mxu0 0
      %3345 = vmatmul.mubr.bf16.gmra.mrb[0].mxu0 %v3210
      %v3346 = vpop.f32.mrb[0].mxu0
      %v3347 = vadd.f32 0.0, %v3346
      %v3348 = vpop.f32.mrb[0].mxu0
      %v3349 = vpop.f32.mrb[0].mxu0
      %v3350 = vadd.f32 0.0, %v3349
      %v3351 = vpop.f32.mrb[0].mxu0
      %3352 = vmatprep.mubr.bf16.mxu0 0
      %3353 = vmatmul.mubr.bf16.gmra.mrb[0].mxu0 %v3211
      %v3354 = vpop.f32.mrb[0].mxu0
      %v3355 = vadd.f32 0.0, %v3354
      %v3356 = vpop.f32.mrb[0].mxu0
      %v3357 = vpop.f32.mrb[0].mxu0
      %v3358 = vadd.f32 0.0, %v3357
      %v3359 = vpop.f32.mrb[0].mxu0
      %3360 = vmatprep.mubr.bf16.mxu0 0
      %3361 = vmatmul.mubr.bf16.gmra.mrb[0].mxu0 %v3212
      %v3362 = vpop.f32.mrb[0].mxu0
      %v3363 = vadd.f32 0.0, %v3362
      %v3364 = vpop.f32.mrb[0].mxu0
      %v3365 = vpop.f32.mrb[0].mxu0
      %v3366 = vadd.f32 0.0, %v3365
      %v3367 = vpop.f32.mrb[0].mxu0
      %3368 = vmatprep.mubr.bf16.mxu0 0
      %3369 = vmatmul.mubr.bf16.gmra.mrb[0].mxu0 %v3213
      %v3370 = vpop.f32.mrb[0].mxu0
      %v3371 = vadd.f32 0.0, %v3370
      %v3372 = vpop.f32.mrb[0].mxu0
      %v3373 = vpop.f32.mrb[0].mxu0
      %v3374 = vadd.f32 0.0, %v3373
      %v3375 = vpop.f32.mrb[0].mxu0
      %3376 = vmatprep.mubr.bf16.mxu0 0
      %3377 = vmatmul.mubr.bf16.gmra.mrb[0].mxu0 %v3214
      %v3378 = vpop.f32.mrb[0].mxu0
      %v3379 = vadd.f32 0.0, %v3378
      %v3380 = vpop.f32.mrb[0].mxu0
      %v3381 = vpop.f32.mrb[0].mxu0
      %v3382 = vadd.f32 0.0, %v3381
      %v3383 = vpop.f32.mrb[0].mxu0
      %3384 = vmatprep.mubr.bf16.mxu0 0
      %3385 = vmatmul.mubr.bf16.gmra.mrb[0].mxu0 %v3215
      %v3386 = vpop.f32.mrb[0].mxu0
      %v3387 = vadd.f32 0.0, %v3386
      %v3388 = vpop.f32.mrb[0].mxu0
      %v3389 = vpop.f32.mrb[0].mxu0
      %v3390 = vadd.f32 0.0, %v3389
      %v3391 = vpop.f32.mrb[0].mxu0
      %3392 = vmatprep.mubr.bf16.mxu0 0
      %3393 = vmatmul.mubr.bf16.gmra.mrb[0].mxu0 %v3216
      %v3394 = vpop.f32.mrb[0].mxu0
      %v3395 = vadd.f32 0.0, %v3394
      %v3396 = vpop.f32.mrb[0].mxu0
      %v3397 = vpop.f32.mrb[0].mxu0
      %v3398 = vadd.f32 0.0, %v3397
      %v3399 = vpop.f32.mrb[0].mxu0
      %3400 = vmatprep.mubr.bf16.mxu0 0
      %3401 = vmatmul.mubr.bf16.gmra.mrb[0].mxu0 %v3217
      %v3402 = vpop.f32.mrb[0].mxu0
      %v3403 = vadd.f32 0.0, %v3402
      %v3404 = vpop.f32.mrb[0].mxu0
      %v3405 = vpop.f32.mrb[0].mxu0
      %v3406 = vadd.f32 0.0, %v3405
      %v3407 = vpop.f32.mrb[0].mxu0
      %3408 = vmatprep.mubr.bf16.mxu0 0
      %3409 = vmatmul.mubr.bf16.gmra.mrb[0].mxu0 %v3218
      %v3410 = vpop.f32.mrb[0].mxu0
      %v3411 = vadd.f32 0.0, %v3410
      %v3412 = vpop.f32.mrb[0].mxu0
      %v3413 = vpop.f32.mrb[0].mxu0
      %v3414 = vadd.f32 0.0, %v3413
      %v3415 = vpop.f32.mrb[0].mxu0
      %3416 = vmatprep.mubr.bf16.mxu0 0
      %3417 = vmatmul.mubr.bf16.gmra.mrb[0].mxu0 %v3219
      %v3418 = vpop.f32.mrb[0].mxu0
      %v3419 = vadd.f32 0.0, %v3418
      %v3420 = vpop.f32.mrb[0].mxu0
      %v3421 = vpop.f32.mrb[0].mxu0
      %v3422 = vadd.f32 0.0, %v3421
      %v3423 = vpop.f32.mrb[0].mxu0
      %3424 = vmatprep.mubr.bf16.mxu0 0
      %3425 = vmatmul.mubr.bf16.gmra.mrb[0].mxu0 %v3220
      %v3426 = vpop.f32.mrb[0].mxu0
      %v3427 = vadd.f32 0.0, %v3426
      %v3428 = vpop.f32.mrb[0].mxu0
      %v3429 = vpop.f32.mrb[0].mxu0
      %v3430 = vadd.f32 0.0, %v3429
      %v3431 = vpop.f32.mrb[0].mxu0
      %3432 = vmatprep.mubr.bf16.mxu0 0
      %3433 = vmatmul.mubr.bf16.gmra.mrb[0].mxu0 %v3221
      %v3434 = vpop.f32.mrb[0].mxu0
      %v3435 = vadd.f32 0.0, %v3434
      %v3436 = vpop.f32.mrb[0].mxu0
      %v3437 = vpop.f32.mrb[0].mxu0
      %v3438 = vadd.f32 0.0, %v3437
      %v3439 = vpop.f32.mrb[0].mxu0
      %3440 = vmatprep.mubr.bf16.mxu0 0
      %3441 = vmatmul.mubr.bf16.gmra.mrb[0].mxu0 %v3222
      %v3442 = vpop.f32.mrb[0].mxu0
      %v3443 = vadd.f32 0.0, %v3442
      %v3444 = vpop.f32.mrb[0].mxu0
      %v3445 = vpop.f32.mrb[0].mxu0
      %v3446 = vadd.f32 0.0, %v3445
      %v3447 = vpop.f32.mrb[0].mxu0
      %3448 = vdwg.mxu0
      %v3449 = vadd.f32 %v3175, %v3323
      %v3450 = vadd.f32 %v3176, %v3326
      %v3451 = vadd.f32 %v3177, %v3331
      %v3452 = vadd.f32 %v3178, %v3334
      %v3453 = vadd.f32 %v3179, %v3339
      %v3454 = vadd.f32 %v3180, %v3342
      %v3455 = vadd.f32 %v3181, %v3347
      %v3456 = vadd.f32 %v3182, %v3350
      %v3457 = vadd.f32 %v3183, %v3355
      %v3458 = vadd.f32 %v3184, %v3358
      %v3459 = vadd.f32 %v3185, %v3363
      %v3460 = vadd.f32 %v3186, %v3366
      %v3461 = vadd.f32 %v3187, %v3371
      %v3462 = vadd.f32 %v3188, %v3374
      %v3463 = vadd.f32 %v3189, %v3379
      %v3464 = vadd.f32 %v3190, %v3382
      %v3465 = vadd.f32 %v3191, %v3387
      %v3466 = vadd.f32 %v3192, %v3390
      %v3467 = vadd.f32 %v3193, %v3395
      %v3468 = vadd.f32 %v3194, %v3398
      %v3469 = vadd.f32 %v3195, %v3403
      %v3470 = vadd.f32 %v3196, %v3406
      %v3471 = vadd.f32 %v3197, %v3411
      %v3472 = vadd.f32 %v3198, %v3414
      %v3473 = vadd.f32 %v3199, %v3419
      %v3474 = vadd.f32 %v3200, %v3422
      %v3475 = vadd.f32 %v3201, %v3427
      %v3476 = vadd.f32 %v3202, %v3430
      %v3477 = vadd.f32 %v3203, %v3435
      %v3478 = vadd.f32 %v3204, %v3438
      %v3479 = vadd.f32 %v3205, %v3443
      %v3480 = vadd.f32 %v3206, %v3446
      %v3481 = vld [vmem:[%s648 + $0x10] sm:$0xff]
      %v3482 = vld [vmem:[%s648 + $0x18] sm:$0xff]
      %v3483 = vld [vmem:[%s648 + $0x20] sm:$0xff]
      %v3484 = vld [vmem:[%s648 + $0x28] sm:$0xff]
      %v3485 = vld [vmem:[%s648 + $0x30] sm:$0xff]
      %v3486 = vld [vmem:[%s648 + $0x38] sm:$0xff]
      %v3487 = vld [vmem:[%s648 + $0x40] sm:$0xff]
      %v3488 = vld [vmem:[%s648 + $0x48] sm:$0xff]
      %v3489 = vld [vmem:[%s648 + $0x50] sm:$0xff]
      %v3490 = vld [vmem:[%s648 + $0x58] sm:$0xff]
      %v3491 = vld [vmem:[%s648 + $0x60] sm:$0xff]
      %v3492 = vld [vmem:[%s648 + $0x68] sm:$0xff]
      %v3493 = vld [vmem:[%s648 + $0x70] sm:$0xff]
      %v3494 = vld [vmem:[%s648 + $0x78] sm:$0xff]
      %v3495 = vld [vmem:[%s648 + $0x80] sm:$0xff]
      %v3496 = vld [vmem:[%s648 + $0x88] sm:$0xff]
      %s3497 = scalar_lea.vmem %s3, 448
      %v3498 = vld [vmem:[%s3497] sm:$0xf]
      %v3499 = vld [vmem:[%s3497 + $0x4] sm:$0xf]
      %v3500 = vld [vmem:[%s3497 + $0x8] sm:$0xf]
      %v3501 = vld [vmem:[%s3497 + $0xc] sm:$0xf]
      %v3502 = vld [vmem:[%s3497 + $0x10] sm:$0xf]
      %v3503 = vld [vmem:[%s3497 + $0x14] sm:$0xf]
      %v3504 = vld [vmem:[%s3497 + $0x18] sm:$0xf]
      %v3505 = vld [vmem:[%s3497 + $0x1c] sm:$0xf]
      %v3506 = vld [vmem:[%s3497 + $0x20] sm:$0xf]
      %v3507 = vld [vmem:[%s3497 + $0x24] sm:$0xf]
      %v3508 = vld [vmem:[%s3497 + $0x28] sm:$0xf]
      %v3509 = vld [vmem:[%s3497 + $0x2c] sm:$0xf]
      %v3510 = vld [vmem:[%s3497 + $0x30] sm:$0xf]
      %v3511 = vld [vmem:[%s3497 + $0x34] sm:$0xf]
      %v3512 = vld [vmem:[%s3497 + $0x38] sm:$0xf]
      %v3513 = vld [vmem:[%s3497 + $0x3c] sm:$0xf]
      %v3530 = vunpack.c.l.b16 %v3498
      %v3531 = vunpack.c.l.b16 %v3499
      %v3532 = vunpack.c.l.b16 %v3500
      %v3533 = vunpack.c.l.b16 %v3501
      %v3534 = vunpack.c.l.b16 %v3502
      %v3535 = vunpack.c.l.b16 %v3503
      %v3536 = vunpack.c.l.b16 %v3504
      %v3537 = vunpack.c.l.b16 %v3505
      %v3538 = vunpack.c.l.b16 %v3506
      %v3539 = vunpack.c.l.b16 %v3507
      %v3540 = vunpack.c.l.b16 %v3508
      %v3541 = vunpack.c.l.b16 %v3509
      %v3542 = vunpack.c.l.b16 %v3510
      %v3543 = vunpack.c.l.b16 %v3511
      %v3544 = vunpack.c.l.b16 %v3512
      %v3545 = vunpack.c.l.b16 %v3513
      %v3546 = vpack.c.b16 %v3531, %v3530
      %v3547 = vpack.c.b16 %v3533, %v3532
      %v3548 = vpack.c.b16 %v3535, %v3534
      %v3549 = vpack.c.b16 %v3537, %v3536
      %v3550 = vpack.c.b16 %v3539, %v3538
      %v3551 = vpack.c.b16 %v3541, %v3540
      %v3552 = vpack.c.b16 %v3543, %v3542
      %v3553 = vpack.c.b16 %v3545, %v3544
      %3562 = vmatprep.subr.bf16.mxu0 0
      %3563 = vmatpush1.bf16.msra.mxu0 %v3546
      %3564 = vmatprep.subr.bf16.mxu0 0
      %3565 = vmatpush1.bf16.msra.mxu0 %v3547
      %3566 = vmatprep.subr.bf16.mxu0 0
      %3567 = vmatpush1.bf16.msra.mxu0 %v3548
      %3568 = vmatprep.subr.bf16.mxu0 0
      %3569 = vmatpush1.bf16.msra.mxu0 %v3549
      %3570 = vmatprep.subr.bf16.mxu0 0
      %3571 = vmatpush1.bf16.msra.mxu0 %v3550
      %3572 = vmatprep.subr.bf16.mxu0 0
      %3573 = vmatpush1.bf16.msra.mxu0 %v3551
      %3574 = vmatprep.subr.bf16.mxu0 0
      %3575 = vmatpush1.bf16.msra.mxu0 %v3552
      %3576 = vmatprep.subr.bf16.mxu0 0
      %3577 = vmatpush1.bf16.msra.mxu0 %v3553
      %3578 = vmatprep.subr.bf16.mxu0 0
      %3579 = vmatpush1.bf16.msra.mxu0 0
      %3580 = vmatprep.subr.bf16.mxu0 0
      %3581 = vmatpush1.bf16.msra.mxu0 0
      %3582 = vmatprep.subr.bf16.mxu0 0
      %3583 = vmatpush1.bf16.msra.mxu0 0
      %3584 = vmatprep.subr.bf16.mxu0 0
      %3585 = vmatpush1.bf16.msra.mxu0 0
      %3586 = vmatprep.subr.bf16.mxu0 0
      %3587 = vmatpush1.bf16.msra.mxu0 0
      %3588 = vmatprep.subr.bf16.mxu0 0
      %3589 = vmatpush1.bf16.msra.mxu0 0
      %3590 = vmatprep.subr.bf16.mxu0 0
      %3591 = vmatpush1.bf16.msra.mxu0 0
      %3592 = vmatprep.subr.bf16.mxu0 0
      %3593 = vmatpush1.bf16.msra.mxu0 0
      %3594 = vmatprep.mubr.bf16.mxu0 0
      %3595 = vmatmul.mubr.bf16.gmra.mrb[0].mxu0 %v3481
      %v3596 = vpop.f32.mrb[0].mxu0
      %v3597 = vadd.f32 0.0, %v3596
      %v3598 = vpop.f32.mrb[0].mxu0
      %v3599 = vpop.f32.mrb[0].mxu0
      %v3600 = vadd.f32 0.0, %v3599
      %v3601 = vpop.f32.mrb[0].mxu0
      %3602 = vmatprep.mubr.bf16.mxu0 0
      %3603 = vmatmul.mubr.bf16.gmra.mrb[0].mxu0 %v3482
      %v3604 = vpop.f32.mrb[0].mxu0
      %v3605 = vadd.f32 0.0, %v3604
      %v3606 = vpop.f32.mrb[0].mxu0
      %v3607 = vpop.f32.mrb[0].mxu0
      %v3608 = vadd.f32 0.0, %v3607
      %v3609 = vpop.f32.mrb[0].mxu0
      %3610 = vmatprep.mubr.bf16.mxu0 0
      %3611 = vmatmul.mubr.bf16.gmra.mrb[0].mxu0 %v3483
      %v3612 = vpop.f32.mrb[0].mxu0
      %v3613 = vadd.f32 0.0, %v3612
      %v3614 = vpop.f32.mrb[0].mxu0
      %v3615 = vpop.f32.mrb[0].mxu0
      %v3616 = vadd.f32 0.0, %v3615
      %v3617 = vpop.f32.mrb[0].mxu0
      %3618 = vmatprep.mubr.bf16.mxu0 0
      %3619 = vmatmul.mubr.bf16.gmra.mrb[0].mxu0 %v3484
      %v3620 = vpop.f32.mrb[0].mxu0
      %v3621 = vadd.f32 0.0, %v3620
      %v3622 = vpop.f32.mrb[0].mxu0
      %v3623 = vpop.f32.mrb[0].mxu0
      %v3624 = vadd.f32 0.0, %v3623
      %v3625 = vpop.f32.mrb[0].mxu0
      %3626 = vmatprep.mubr.bf16.mxu0 0
      %3627 = vmatmul.mubr.bf16.gmra.mrb[0].mxu0 %v3485
      %v3628 = vpop.f32.mrb[0].mxu0
      %v3629 = vadd.f32 0.0, %v3628
      %v3630 = vpop.f32.mrb[0].mxu0
      %v3631 = vpop.f32.mrb[0].mxu0
      %v3632 = vadd.f32 0.0, %v3631
      %v3633 = vpop.f32.mrb[0].mxu0
      %3634 = vmatprep.mubr.bf16.mxu0 0
      %3635 = vmatmul.mubr.bf16.gmra.mrb[0].mxu0 %v3486
      %v3636 = vpop.f32.mrb[0].mxu0
      %v3637 = vadd.f32 0.0, %v3636
      %v3638 = vpop.f32.mrb[0].mxu0
      %v3639 = vpop.f32.mrb[0].mxu0
      %v3640 = vadd.f32 0.0, %v3639
      %v3641 = vpop.f32.mrb[0].mxu0
      %3642 = vmatprep.mubr.bf16.mxu0 0
      %3643 = vmatmul.mubr.bf16.gmra.mrb[0].mxu0 %v3487
      %v3644 = vpop.f32.mrb[0].mxu0
      %v3645 = vadd.f32 0.0, %v3644
      %v3646 = vpop.f32.mrb[0].mxu0
      %v3647 = vpop.f32.mrb[0].mxu0
      %v3648 = vadd.f32 0.0, %v3647
      %v3649 = vpop.f32.mrb[0].mxu0
      %3650 = vmatprep.mubr.bf16.mxu0 0
      %3651 = vmatmul.mubr.bf16.gmra.mrb[0].mxu0 %v3488
      %v3652 = vpop.f32.mrb[0].mxu0
      %v3653 = vadd.f32 0.0, %v3652
      %v3654 = vpop.f32.mrb[0].mxu0
      %v3655 = vpop.f32.mrb[0].mxu0
      %v3656 = vadd.f32 0.0, %v3655
      %v3657 = vpop.f32.mrb[0].mxu0
      %3658 = vmatprep.mubr.bf16.mxu0 0
      %3659 = vmatmul.mubr.bf16.gmra.mrb[0].mxu0 %v3489
      %v3660 = vpop.f32.mrb[0].mxu0
      %v3661 = vadd.f32 0.0, %v3660
      %v3662 = vpop.f32.mrb[0].mxu0
      %v3663 = vpop.f32.mrb[0].mxu0
      %v3664 = vadd.f32 0.0, %v3663
      %v3665 = vpop.f32.mrb[0].mxu0
      %3666 = vmatprep.mubr.bf16.mxu0 0
      %3667 = vmatmul.mubr.bf16.gmra.mrb[0].mxu0 %v3490
      %v3668 = vpop.f32.mrb[0].mxu0
      %v3669 = vadd.f32 0.0, %v3668
      %v3670 = vpop.f32.mrb[0].mxu0
      %v3671 = vpop.f32.mrb[0].mxu0
      %v3672 = vadd.f32 0.0, %v3671
      %v3673 = vpop.f32.mrb[0].mxu0
      %3674 = vmatprep.mubr.bf16.mxu0 0
      %3675 = vmatmul.mubr.bf16.gmra.mrb[0].mxu0 %v3491
      %v3676 = vpop.f32.mrb[0].mxu0
      %v3677 = vadd.f32 0.0, %v3676
      %v3678 = vpop.f32.mrb[0].mxu0
      %v3679 = vpop.f32.mrb[0].mxu0
      %v3680 = vadd.f32 0.0, %v3679
      %v3681 = vpop.f32.mrb[0].mxu0
      %3682 = vmatprep.mubr.bf16.mxu0 0
      %3683 = vmatmul.mubr.bf16.gmra.mrb[0].mxu0 %v3492
      %v3684 = vpop.f32.mrb[0].mxu0
      %v3685 = vadd.f32 0.0, %v3684
      %v3686 = vpop.f32.mrb[0].mxu0
      %v3687 = vpop.f32.mrb[0].mxu0
      %v3688 = vadd.f32 0.0, %v3687
      %v3689 = vpop.f32.mrb[0].mxu0
      %3690 = vmatprep.mubr.bf16.mxu0 0
      %3691 = vmatmul.mubr.bf16.gmra.mrb[0].mxu0 %v3493
      %v3692 = vpop.f32.mrb[0].mxu0
      %v3693 = vadd.f32 0.0, %v3692
      %v3694 = vpop.f32.mrb[0].mxu0
      %v3695 = vpop.f32.mrb[0].mxu0
      %v3696 = vadd.f32 0.0, %v3695
      %v3697 = vpop.f32.mrb[0].mxu0
      %3698 = vmatprep.mubr.bf16.mxu0 0
      %3699 = vmatmul.mubr.bf16.gmra.mrb[0].mxu0 %v3494
      %v3700 = vpop.f32.mrb[0].mxu0
      %v3701 = vadd.f32 0.0, %v3700
      %v3702 = vpop.f32.mrb[0].mxu0
      %v3703 = vpop.f32.mrb[0].mxu0
      %v3704 = vadd.f32 0.0, %v3703
      %v3705 = vpop.f32.mrb[0].mxu0
      %3706 = vmatprep.mubr.bf16.mxu0 0
      %3707 = vmatmul.mubr.bf16.gmra.mrb[0].mxu0 %v3495
      %v3708 = vpop.f32.mrb[0].mxu0
      %v3709 = vadd.f32 0.0, %v3708
      %v3710 = vpop.f32.mrb[0].mxu0
      %v3711 = vpop.f32.mrb[0].mxu0
      %v3712 = vadd.f32 0.0, %v3711
      %v3713 = vpop.f32.mrb[0].mxu0
      %3714 = vmatprep.mubr.bf16.mxu0 0
      %3715 = vmatmul.mubr.bf16.gmra.mrb[0].mxu0 %v3496
      %v3716 = vpop.f32.mrb[0].mxu0
      %v3717 = vadd.f32 0.0, %v3716
      %v3718 = vpop.f32.mrb[0].mxu0
      %v3719 = vpop.f32.mrb[0].mxu0
      %v3720 = vadd.f32 0.0, %v3719
      %v3721 = vpop.f32.mrb[0].mxu0
      %3722 = vdwg.mxu0
      %v3723 = vadd.f32 %v3449, %v3597
      %v3724 = vadd.f32 %v3450, %v3600
      %v3725 = vadd.f32 %v3451, %v3605
      %v3726 = vadd.f32 %v3452, %v3608
      %v3727 = vadd.f32 %v3453, %v3613
      %v3728 = vadd.f32 %v3454, %v3616
      %v3729 = vadd.f32 %v3455, %v3621
      %v3730 = vadd.f32 %v3456, %v3624
      %v3731 = vadd.f32 %v3457, %v3629
      %v3732 = vadd.f32 %v3458, %v3632
      %v3733 = vadd.f32 %v3459, %v3637
      %v3734 = vadd.f32 %v3460, %v3640
      %v3735 = vadd.f32 %v3461, %v3645
      %v3736 = vadd.f32 %v3462, %v3648
      %v3737 = vadd.f32 %v3463, %v3653
      %v3738 = vadd.f32 %v3464, %v3656
      %v3739 = vadd.f32 %v3465, %v3661
      %v3740 = vadd.f32 %v3466, %v3664
      %v3741 = vadd.f32 %v3467, %v3669
      %v3742 = vadd.f32 %v3468, %v3672
      %v3743 = vadd.f32 %v3469, %v3677
      %v3744 = vadd.f32 %v3470, %v3680
      %v3745 = vadd.f32 %v3471, %v3685
      %v3746 = vadd.f32 %v3472, %v3688
      %v3747 = vadd.f32 %v3473, %v3693
      %v3748 = vadd.f32 %v3474, %v3696
      %v3749 = vadd.f32 %v3475, %v3701
      %v3750 = vadd.f32 %v3476, %v3704
      %v3751 = vadd.f32 %v3477, %v3709
      %v3752 = vadd.f32 %v3478, %v3712
      %v3753 = vadd.f32 %v3479, %v3717
      %v3754 = vadd.f32 %v3480, %v3720
      %v3755 = vld [vmem:[%s651 + $0x10] sm:$0xff]
      %v3756 = vld [vmem:[%s651 + $0x18] sm:$0xff]
      %v3757 = vld [vmem:[%s651 + $0x20] sm:$0xff]
      %v3758 = vld [vmem:[%s651 + $0x28] sm:$0xff]
      %v3759 = vld [vmem:[%s651 + $0x30] sm:$0xff]
      %v3760 = vld [vmem:[%s651 + $0x38] sm:$0xff]
      %v3761 = vld [vmem:[%s651 + $0x40] sm:$0xff]
      %v3762 = vld [vmem:[%s651 + $0x48] sm:$0xff]
      %v3763 = vld [vmem:[%s651 + $0x50] sm:$0xff]
      %v3764 = vld [vmem:[%s651 + $0x58] sm:$0xff]
      %v3765 = vld [vmem:[%s651 + $0x60] sm:$0xff]
      %v3766 = vld [vmem:[%s651 + $0x68] sm:$0xff]
      %v3767 = vld [vmem:[%s651 + $0x70] sm:$0xff]
      %v3768 = vld [vmem:[%s651 + $0x78] sm:$0xff]
      %v3769 = vld [vmem:[%s651 + $0x80] sm:$0xff]
      %v3770 = vld [vmem:[%s651 + $0x88] sm:$0xff]
      %s3771 = scalar_lea.vmem %s3, 512
      %v3772 = vld [vmem:[%s3771] sm:$0xf]
      %v3773 = vld [vmem:[%s3771 + $0x4] sm:$0xf]
      %v3774 = vld [vmem:[%s3771 + $0x8] sm:$0xf]
      %v3775 = vld [vmem:[%s3771 + $0xc] sm:$0xf]
      %v3776 = vld [vmem:[%s3771 + $0x10] sm:$0xf]
      %v3777 = vld [vmem:[%s3771 + $0x14] sm:$0xf]
      %v3778 = vld [vmem:[%s3771 + $0x18] sm:$0xf]
      %v3779 = vld [vmem:[%s3771 + $0x1c] sm:$0xf]
      %v3780 = vld [vmem:[%s3771 + $0x20] sm:$0xf]
      %v3781 = vld [vmem:[%s3771 + $0x24] sm:$0xf]
      %v3782 = vld [vmem:[%s3771 + $0x28] sm:$0xf]
      %v3783 = vld [vmem:[%s3771 + $0x2c] sm:$0xf]
      %v3784 = vld [vmem:[%s3771 + $0x30] sm:$0xf]
      %v3785 = vld [vmem:[%s3771 + $0x34] sm:$0xf]
      %v3786 = vld [vmem:[%s3771 + $0x38] sm:$0xf]
      %v3787 = vld [vmem:[%s3771 + $0x3c] sm:$0xf]
      %v3804 = vunpack.c.l.b16 %v3772
      %v3805 = vunpack.c.l.b16 %v3773
      %v3806 = vunpack.c.l.b16 %v3774
      %v3807 = vunpack.c.l.b16 %v3775
      %v3808 = vunpack.c.l.b16 %v3776
      %v3809 = vunpack.c.l.b16 %v3777
      %v3810 = vunpack.c.l.b16 %v3778
      %v3811 = vunpack.c.l.b16 %v3779
      %v3812 = vunpack.c.l.b16 %v3780
      %v3813 = vunpack.c.l.b16 %v3781
      %v3814 = vunpack.c.l.b16 %v3782
      %v3815 = vunpack.c.l.b16 %v3783
      %v3816 = vunpack.c.l.b16 %v3784
      %v3817 = vunpack.c.l.b16 %v3785
      %v3818 = vunpack.c.l.b16 %v3786
      %v3819 = vunpack.c.l.b16 %v3787
      %v3820 = vpack.c.b16 %v3805, %v3804
      %v3821 = vpack.c.b16 %v3807, %v3806
      %v3822 = vpack.c.b16 %v3809, %v3808
      %v3823 = vpack.c.b16 %v3811, %v3810
      %v3824 = vpack.c.b16 %v3813, %v3812
      %v3825 = vpack.c.b16 %v3815, %v3814
      %v3826 = vpack.c.b16 %v3817, %v3816
      %v3827 = vpack.c.b16 %v3819, %v3818
      %3836 = vmatprep.subr.bf16.mxu0 0
      %3837 = vmatpush1.bf16.msra.mxu0 %v3820
      %3838 = vmatprep.subr.bf16.mxu0 0
      %3839 = vmatpush1.bf16.msra.mxu0 %v3821
      %3840 = vmatprep.subr.bf16.mxu0 0
      %3841 = vmatpush1.bf16.msra.mxu0 %v3822
      %3842 = vmatprep.subr.bf16.mxu0 0
      %3843 = vmatpush1.bf16.msra.mxu0 %v3823
      %3844 = vmatprep.subr.bf16.mxu0 0
      %3845 = vmatpush1.bf16.msra.mxu0 %v3824
      %3846 = vmatprep.subr.bf16.mxu0 0
      %3847 = vmatpush1.bf16.msra.mxu0 %v3825
      %3848 = vmatprep.subr.bf16.mxu0 0
      %3849 = vmatpush1.bf16.msra.mxu0 %v3826
      %3850 = vmatprep.subr.bf16.mxu0 0
      %3851 = vmatpush1.bf16.msra.mxu0 %v3827
      %3852 = vmatprep.subr.bf16.mxu0 0
      %3853 = vmatpush1.bf16.msra.mxu0 0
      %3854 = vmatprep.subr.bf16.mxu0 0
      %3855 = vmatpush1.bf16.msra.mxu0 0
      %3856 = vmatprep.subr.bf16.mxu0 0
      %3857 = vmatpush1.bf16.msra.mxu0 0
      %3858 = vmatprep.subr.bf16.mxu0 0
      %3859 = vmatpush1.bf16.msra.mxu0 0
      %3860 = vmatprep.subr.bf16.mxu0 0
      %3861 = vmatpush1.bf16.msra.mxu0 0
      %3862 = vmatprep.subr.bf16.mxu0 0
      %3863 = vmatpush1.bf16.msra.mxu0 0
      %3864 = vmatprep.subr.bf16.mxu0 0
      %3865 = vmatpush1.bf16.msra.mxu0 0
      %3866 = vmatprep.subr.bf16.mxu0 0
      %3867 = vmatpush1.bf16.msra.mxu0 0
      %3868 = vmatprep.mubr.bf16.mxu0 0
      %3869 = vmatmul.mubr.bf16.gmra.mrb[0].mxu0 %v3755
      %v3870 = vpop.f32.mrb[0].mxu0
      %v3871 = vadd.f32 0.0, %v3870
      %v3872 = vpop.f32.mrb[0].mxu0
      %v3873 = vpop.f32.mrb[0].mxu0
      %v3874 = vadd.f32 0.0, %v3873
      %v3875 = vpop.f32.mrb[0].mxu0
      %3876 = vmatprep.mubr.bf16.mxu0 0
      %3877 = vmatmul.mubr.bf16.gmra.mrb[0].mxu0 %v3756
      %v3878 = vpop.f32.mrb[0].mxu0
      %v3879 = vadd.f32 0.0, %v3878
      %v3880 = vpop.f32.mrb[0].mxu0
      %v3881 = vpop.f32.mrb[0].mxu0
      %v3882 = vadd.f32 0.0, %v3881
      %v3883 = vpop.f32.mrb[0].mxu0
      %3884 = vmatprep.mubr.bf16.mxu0 0
      %3885 = vmatmul.mubr.bf16.gmra.mrb[0].mxu0 %v3757
      %v3886 = vpop.f32.mrb[0].mxu0
      %v3887 = vadd.f32 0.0, %v3886
      %v3888 = vpop.f32.mrb[0].mxu0
      %v3889 = vpop.f32.mrb[0].mxu0
      %v3890 = vadd.f32 0.0, %v3889
      %v3891 = vpop.f32.mrb[0].mxu0
      %3892 = vmatprep.mubr.bf16.mxu0 0
      %3893 = vmatmul.mubr.bf16.gmra.mrb[0].mxu0 %v3758
      %v3894 = vpop.f32.mrb[0].mxu0
      %v3895 = vadd.f32 0.0, %v3894
      %v3896 = vpop.f32.mrb[0].mxu0
      %v3897 = vpop.f32.mrb[0].mxu0
      %v3898 = vadd.f32 0.0, %v3897
      %v3899 = vpop.f32.mrb[0].mxu0
      %3900 = vmatprep.mubr.bf16.mxu0 0
      %3901 = vmatmul.mubr.bf16.gmra.mrb[0].mxu0 %v3759
      %v3902 = vpop.f32.mrb[0].mxu0
      %v3903 = vadd.f32 0.0, %v3902
      %v3904 = vpop.f32.mrb[0].mxu0
      %v3905 = vpop.f32.mrb[0].mxu0
      %v3906 = vadd.f32 0.0, %v3905
      %v3907 = vpop.f32.mrb[0].mxu0
      %3908 = vmatprep.mubr.bf16.mxu0 0
      %3909 = vmatmul.mubr.bf16.gmra.mrb[0].mxu0 %v3760
      %v3910 = vpop.f32.mrb[0].mxu0
      %v3911 = vadd.f32 0.0, %v3910
      %v3912 = vpop.f32.mrb[0].mxu0
      %v3913 = vpop.f32.mrb[0].mxu0
      %v3914 = vadd.f32 0.0, %v3913
      %v3915 = vpop.f32.mrb[0].mxu0
      %3916 = vmatprep.mubr.bf16.mxu0 0
      %3917 = vmatmul.mubr.bf16.gmra.mrb[0].mxu0 %v3761
      %v3918 = vpop.f32.mrb[0].mxu0
      %v3919 = vadd.f32 0.0, %v3918
      %v3920 = vpop.f32.mrb[0].mxu0
      %v3921 = vpop.f32.mrb[0].mxu0
      %v3922 = vadd.f32 0.0, %v3921
      %v3923 = vpop.f32.mrb[0].mxu0
      %3924 = vmatprep.mubr.bf16.mxu0 0
      %3925 = vmatmul.mubr.bf16.gmra.mrb[0].mxu0 %v3762
      %v3926 = vpop.f32.mrb[0].mxu0
      %v3927 = vadd.f32 0.0, %v3926
      %v3928 = vpop.f32.mrb[0].mxu0
      %v3929 = vpop.f32.mrb[0].mxu0
      %v3930 = vadd.f32 0.0, %v3929
      %v3931 = vpop.f32.mrb[0].mxu0
      %3932 = vmatprep.mubr.bf16.mxu0 0
      %3933 = vmatmul.mubr.bf16.gmra.mrb[0].mxu0 %v3763
      %v3934 = vpop.f32.mrb[0].mxu0
      %v3935 = vadd.f32 0.0, %v3934
      %v3936 = vpop.f32.mrb[0].mxu0
      %v3937 = vpop.f32.mrb[0].mxu0
      %v3938 = vadd.f32 0.0, %v3937
      %v3939 = vpop.f32.mrb[0].mxu0
      %3940 = vmatprep.mubr.bf16.mxu0 0
      %3941 = vmatmul.mubr.bf16.gmra.mrb[0].mxu0 %v3764
      %v3942 = vpop.f32.mrb[0].mxu0
      %v3943 = vadd.f32 0.0, %v3942
      %v3944 = vpop.f32.mrb[0].mxu0
      %v3945 = vpop.f32.mrb[0].mxu0
      %v3946 = vadd.f32 0.0, %v3945
      %v3947 = vpop.f32.mrb[0].mxu0
      %3948 = vmatprep.mubr.bf16.mxu0 0
      %3949 = vmatmul.mubr.bf16.gmra.mrb[0].mxu0 %v3765
      %v3950 = vpop.f32.mrb[0].mxu0
      %v3951 = vadd.f32 0.0, %v3950
      %v3952 = vpop.f32.mrb[0].mxu0
      %v3953 = vpop.f32.mrb[0].mxu0
      %v3954 = vadd.f32 0.0, %v3953
      %v3955 = vpop.f32.mrb[0].mxu0
      %3956 = vmatprep.mubr.bf16.mxu0 0
      %3957 = vmatmul.mubr.bf16.gmra.mrb[0].mxu0 %v3766
      %v3958 = vpop.f32.mrb[0].mxu0
      %v3959 = vadd.f32 0.0, %v3958
      %v3960 = vpop.f32.mrb[0].mxu0
      %v3961 = vpop.f32.mrb[0].mxu0
      %v3962 = vadd.f32 0.0, %v3961
      %v3963 = vpop.f32.mrb[0].mxu0
      %3964 = vmatprep.mubr.bf16.mxu0 0
      %3965 = vmatmul.mubr.bf16.gmra.mrb[0].mxu0 %v3767
      %v3966 = vpop.f32.mrb[0].mxu0
      %v3967 = vadd.f32 0.0, %v3966
      %v3968 = vpop.f32.mrb[0].mxu0
      %v3969 = vpop.f32.mrb[0].mxu0
      %v3970 = vadd.f32 0.0, %v3969
      %v3971 = vpop.f32.mrb[0].mxu0
      %3972 = vmatprep.mubr.bf16.mxu0 0
      %3973 = vmatmul.mubr.bf16.gmra.mrb[0].mxu0 %v3768
      %v3974 = vpop.f32.mrb[0].mxu0
      %v3975 = vadd.f32 0.0, %v3974
      %v3976 = vpop.f32.mrb[0].mxu0
      %v3977 = vpop.f32.mrb[0].mxu0
      %v3978 = vadd.f32 0.0, %v3977
      %v3979 = vpop.f32.mrb[0].mxu0
      %3980 = vmatprep.mubr.bf16.mxu0 0
      %3981 = vmatmul.mubr.bf16.gmra.mrb[0].mxu0 %v3769
      %v3982 = vpop.f32.mrb[0].mxu0
      %v3983 = vadd.f32 0.0, %v3982
      %v3984 = vpop.f32.mrb[0].mxu0
      %v3985 = vpop.f32.mrb[0].mxu0
      %v3986 = vadd.f32 0.0, %v3985
      %v3987 = vpop.f32.mrb[0].mxu0
      %3988 = vmatprep.mubr.bf16.mxu0 0
      %3989 = vmatmul.mubr.bf16.gmra.mrb[0].mxu0 %v3770
      %v3990 = vpop.f32.mrb[0].mxu0
      %v3991 = vadd.f32 0.0, %v3990
      %v3992 = vpop.f32.mrb[0].mxu0
      %v3993 = vpop.f32.mrb[0].mxu0
      %v3994 = vadd.f32 0.0, %v3993
      %v3995 = vpop.f32.mrb[0].mxu0
      %3996 = vdwg.mxu0
      %v3997 = vadd.f32 %v3723, %v3871
      %v3998 = vadd.f32 %v3724, %v3874
      %v3999 = vadd.f32 %v3725, %v3879
      %v4000 = vadd.f32 %v3726, %v3882
      %v4001 = vadd.f32 %v3727, %v3887
      %v4002 = vadd.f32 %v3728, %v3890
      %v4003 = vadd.f32 %v3729, %v3895
      %v4004 = vadd.f32 %v3730, %v3898
      %v4005 = vadd.f32 %v3731, %v3903
      %v4006 = vadd.f32 %v3732, %v3906
      %v4007 = vadd.f32 %v3733, %v3911
      %v4008 = vadd.f32 %v3734, %v3914
      %v4009 = vadd.f32 %v3735, %v3919
      %v4010 = vadd.f32 %v3736, %v3922
      %v4011 = vadd.f32 %v3737, %v3927
      %v4012 = vadd.f32 %v3738, %v3930
      %v4013 = vadd.f32 %v3739, %v3935
      %v4014 = vadd.f32 %v3740, %v3938
      %v4015 = vadd.f32 %v3741, %v3943
      %v4016 = vadd.f32 %v3742, %v3946
      %v4017 = vadd.f32 %v3743, %v3951
      %v4018 = vadd.f32 %v3744, %v3954
      %v4019 = vadd.f32 %v3745, %v3959
      %v4020 = vadd.f32 %v3746, %v3962
      %v4021 = vadd.f32 %v3747, %v3967
      %v4022 = vadd.f32 %v3748, %v3970
      %v4023 = vadd.f32 %v3749, %v3975
      %v4024 = vadd.f32 %v3750, %v3978
      %v4025 = vadd.f32 %v3751, %v3983
      %v4026 = vadd.f32 %v3752, %v3986
      %v4027 = vadd.f32 %v3753, %v3991
      %v4028 = vadd.f32 %v3754, %v3994
      %v4029 = vld [vmem:[%s4] sm:$0x1]
      %v4031 = vlaneseq
      %v4032 = vshrl.u32 %v4031, 7
      %v4033 = vsub.s32 0, %v4032
      %v4034 = vrot.slane %v4029, %v4033
      %v4036 = vadd.f32 %v3997, %v4034
      %v4037 = vadd.f32 %v3998, %v4034
      %v4038 = vadd.f32 %v3999, %v4034
      %v4039 = vadd.f32 %v4000, %v4034
      %v4040 = vadd.f32 %v4001, %v4034
      %v4041 = vadd.f32 %v4002, %v4034
      %v4042 = vadd.f32 %v4003, %v4034
      %v4043 = vadd.f32 %v4004, %v4034
      %v4044 = vadd.f32 %v4005, %v4034
      %v4045 = vadd.f32 %v4006, %v4034
      %v4046 = vadd.f32 %v4007, %v4034
      %v4047 = vadd.f32 %v4008, %v4034
      %v4048 = vadd.f32 %v4009, %v4034
      %v4049 = vadd.f32 %v4010, %v4034
      %v4050 = vadd.f32 %v4011, %v4034
      %v4051 = vadd.f32 %v4012, %v4034
      %v4052 = vadd.f32 %v4013, %v4034
      %v4053 = vadd.f32 %v4014, %v4034
      %v4054 = vadd.f32 %v4015, %v4034
      %v4055 = vadd.f32 %v4016, %v4034
      %v4056 = vadd.f32 %v4017, %v4034
      %v4057 = vadd.f32 %v4018, %v4034
      %v4058 = vadd.f32 %v4019, %v4034
      %v4059 = vadd.f32 %v4020, %v4034
      %v4060 = vadd.f32 %v4021, %v4034
      %v4061 = vadd.f32 %v4022, %v4034
      %v4062 = vadd.f32 %v4023, %v4034
      %v4063 = vadd.f32 %v4024, %v4034
      %v4064 = vadd.f32 %v4025, %v4034
      %v4065 = vadd.f32 %v4026, %v4034
      %v4066 = vadd.f32 %v4027, %v4034
      %v4067 = vadd.f32 %v4028, %v4034
      %v4068 = vmax.f32 %v4036, 0.0
      %v4069 = vmax.f32 %v4037, 0.0
      %v4070 = vmax.f32 %v4038, 0.0
      %v4071 = vmax.f32 %v4039, 0.0
      %v4072 = vmax.f32 %v4040, 0.0
      %v4073 = vmax.f32 %v4041, 0.0
      %v4074 = vmax.f32 %v4042, 0.0
      %v4075 = vmax.f32 %v4043, 0.0
      %v4076 = vmax.f32 %v4044, 0.0
      %v4077 = vmax.f32 %v4045, 0.0
      %v4078 = vmax.f32 %v4046, 0.0
      %v4079 = vmax.f32 %v4047, 0.0
      %v4080 = vmax.f32 %v4048, 0.0
      %v4081 = vmax.f32 %v4049, 0.0
      %v4082 = vmax.f32 %v4050, 0.0
      %v4083 = vmax.f32 %v4051, 0.0
      %v4084 = vmax.f32 %v4052, 0.0
      %v4085 = vmax.f32 %v4053, 0.0
      %v4086 = vmax.f32 %v4054, 0.0
      %v4087 = vmax.f32 %v4055, 0.0
      %v4088 = vmax.f32 %v4056, 0.0
      %v4089 = vmax.f32 %v4057, 0.0
      %v4090 = vmax.f32 %v4058, 0.0
      %v4091 = vmax.f32 %v4059, 0.0
      %v4092 = vmax.f32 %v4060, 0.0
      %v4093 = vmax.f32 %v4061, 0.0
      %v4094 = vmax.f32 %v4062, 0.0
      %v4095 = vmax.f32 %v4063, 0.0
      %v4096 = vmax.f32 %v4064, 0.0
      %v4097 = vmax.f32 %v4065, 0.0
      %v4098 = vmax.f32 %v4066, 0.0
      %v4099 = vmax.f32 %v4067, 0.0
      %v4100 = vpack.c.bf16 %v4069, %v4068
      %v4101 = vpack.c.bf16 %v4071, %v4070
      %v4102 = vpack.c.bf16 %v4073, %v4072
      %v4103 = vpack.c.bf16 %v4075, %v4074
      %v4104 = vpack.c.bf16 %v4077, %v4076
      %v4105 = vpack.c.bf16 %v4079, %v4078
      %v4106 = vpack.c.bf16 %v4081, %v4080
      %v4107 = vpack.c.bf16 %v4083, %v4082
      %v4108 = vpack.c.bf16 %v4085, %v4084
      %v4109 = vpack.c.bf16 %v4087, %v4086
      %v4110 = vpack.c.bf16 %v4089, %v4088
      %v4111 = vpack.c.bf16 %v4091, %v4090
      %v4112 = vpack.c.bf16 %v4093, %v4092
      %v4113 = vpack.c.bf16 %v4095, %v4094
      %v4114 = vpack.c.bf16 %v4097, %v4096
      %v4115 = vpack.c.bf16 %v4099, %v4098
      %v4116 = vld [vmem:[%s5] sm:$0xf]
      %v4117 = vld [vmem:[%s5 + $0x4] sm:$0xf]
      %v4118 = vld [vmem:[%s5 + $0x8] sm:$0xf]
      %v4119 = vld [vmem:[%s5 + $0xc] sm:$0xf]
      %v4120 = vld [vmem:[%s5 + $0x10] sm:$0xf]
      %v4121 = vld [vmem:[%s5 + $0x14] sm:$0xf]
      %v4122 = vld [vmem:[%s5 + $0x18] sm:$0xf]
      %v4123 = vld [vmem:[%s5 + $0x1c] sm:$0xf]
      %v4124 = vld [vmem:[%s5 + $0x20] sm:$0xf]
      %v4125 = vld [vmem:[%s5 + $0x24] sm:$0xf]
      %v4126 = vld [vmem:[%s5 + $0x28] sm:$0xf]
      %v4127 = vld [vmem:[%s5 + $0x2c] sm:$0xf]
      %v4128 = vld [vmem:[%s5 + $0x30] sm:$0xf]
      %v4129 = vld [vmem:[%s5 + $0x34] sm:$0xf]
      %v4130 = vld [vmem:[%s5 + $0x38] sm:$0xf]
      %v4131 = vld [vmem:[%s5 + $0x3c] sm:$0xf]
      %v4132 = vld [vmem:[%s6] sm:$0x1]
      %v4134 = vlaneseq
      %v4135 = vshrl.u32 %v4134, 7
      %v4136 = vsub.s32 0, %v4135
      %v4137 = vrot.slane %v4132, %v4136
      %v4155 = vunpack.c.l.b16 %v4116
      %v4156 = vunpack.c.l.b16 %v4117
      %v4157 = vunpack.c.l.b16 %v4118
      %v4158 = vunpack.c.l.b16 %v4119
      %v4159 = vunpack.c.l.b16 %v4120
      %v4160 = vunpack.c.l.b16 %v4121
      %v4161 = vunpack.c.l.b16 %v4122
      %v4162 = vunpack.c.l.b16 %v4123
      %v4163 = vunpack.c.l.b16 %v4124
      %v4164 = vunpack.c.l.b16 %v4125
      %v4165 = vunpack.c.l.b16 %v4126
      %v4166 = vunpack.c.l.b16 %v4127
      %v4167 = vunpack.c.l.b16 %v4128
      %v4168 = vunpack.c.l.b16 %v4129
      %v4169 = vunpack.c.l.b16 %v4130
      %v4170 = vunpack.c.l.b16 %v4131
      %v4171 = vpack.c.b16 %v4156, %v4155
      %v4172 = vpack.c.b16 %v4158, %v4157
      %v4173 = vpack.c.b16 %v4160, %v4159
      %v4174 = vpack.c.b16 %v4162, %v4161
      %v4175 = vpack.c.b16 %v4164, %v4163
      %v4176 = vpack.c.b16 %v4166, %v4165
      %v4177 = vpack.c.b16 %v4168, %v4167
      %v4178 = vpack.c.b16 %v4170, %v4169
      %4187 = vmatprep.subr.bf16.mxu0 0
      %4188 = vmatpush1.bf16.msra.mxu0 %v4171
      %4189 = vmatprep.subr.bf16.mxu0 0
      %4190 = vmatpush1.bf16.msra.mxu0 %v4172
      %4191 = vmatprep.subr.bf16.mxu0 0
      %4192 = vmatpush1.bf16.msra.mxu0 %v4173
      %4193 = vmatprep.subr.bf16.mxu0 0
      %4194 = vmatpush1.bf16.msra.mxu0 %v4174
      %4195 = vmatprep.subr.bf16.mxu0 0
      %4196 = vmatpush1.bf16.msra.mxu0 %v4175
      %4197 = vmatprep.subr.bf16.mxu0 0
      %4198 = vmatpush1.bf16.msra.mxu0 %v4176
      %4199 = vmatprep.subr.bf16.mxu0 0
      %4200 = vmatpush1.bf16.msra.mxu0 %v4177
      %4201 = vmatprep.subr.bf16.mxu0 0
      %4202 = vmatpush1.bf16.msra.mxu0 %v4178
      %4203 = vmatprep.subr.bf16.mxu0 0
      %4204 = vmatpush1.bf16.msra.mxu0 0
      %4205 = vmatprep.subr.bf16.mxu0 0
      %4206 = vmatpush1.bf16.msra.mxu0 0
      %4207 = vmatprep.subr.bf16.mxu0 0
      %4208 = vmatpush1.bf16.msra.mxu0 0
      %4209 = vmatprep.subr.bf16.mxu0 0
      %4210 = vmatpush1.bf16.msra.mxu0 0
      %4211 = vmatprep.subr.bf16.mxu0 0
      %4212 = vmatpush1.bf16.msra.mxu0 0
      %4213 = vmatprep.subr.bf16.mxu0 0
      %4214 = vmatpush1.bf16.msra.mxu0 0
      %4215 = vmatprep.subr.bf16.mxu0 0
      %4216 = vmatpush1.bf16.msra.mxu0 0
      %4217 = vmatprep.subr.bf16.mxu0 0
      %4218 = vmatpush1.bf16.msra.mxu0 0
      %4219 = vmatprep.mubr.bf16.mxu0 0
      %4220 = vmatmul.mubr.bf16.gmra.mrb[0].mxu0 %v4100
      %v4221 = vpop.f32.mrb[0].mxu0
      %v4222 = vadd.f32 %v4137, %v4221
      %v4223 = vpop.f32.mrb[0].mxu0
      %v4224 = vpop.f32.mrb[0].mxu0
      %v4225 = vadd.f32 %v4137, %v4224
      %v4226 = vpop.f32.mrb[0].mxu0
      %4227 = vmatprep.mubr.bf16.mxu0 0
      %4228 = vmatmul.mubr.bf16.gmra.mrb[0].mxu0 %v4101
      %v4229 = vpop.f32.mrb[0].mxu0
      %v4230 = vadd.f32 %v4137, %v4229
      %v4231 = vpop.f32.mrb[0].mxu0
      %v4232 = vpop.f32.mrb[0].mxu0
      %v4233 = vadd.f32 %v4137, %v4232
      %v4234 = vpop.f32.mrb[0].mxu0
      %4235 = vmatprep.mubr.bf16.mxu0 0
      %4236 = vmatmul.mubr.bf16.gmra.mrb[0].mxu0 %v4102
      %v4237 = vpop.f32.mrb[0].mxu0
      %v4238 = vadd.f32 %v4137, %v4237
      %v4239 = vpop.f32.mrb[0].mxu0
      %v4240 = vpop.f32.mrb[0].mxu0
      %v4241 = vadd.f32 %v4137, %v4240
      %v4242 = vpop.f32.mrb[0].mxu0
      %4243 = vmatprep.mubr.bf16.mxu0 0
      %4244 = vmatmul.mubr.bf16.gmra.mrb[0].mxu0 %v4103
      %v4245 = vpop.f32.mrb[0].mxu0
      %v4246 = vadd.f32 %v4137, %v4245
      %v4247 = vpop.f32.mrb[0].mxu0
      %v4248 = vpop.f32.mrb[0].mxu0
      %v4249 = vadd.f32 %v4137, %v4248
      %v4250 = vpop.f32.mrb[0].mxu0
      %4251 = vmatprep.mubr.bf16.mxu0 0
      %4252 = vmatmul.mubr.bf16.gmra.mrb[0].mxu0 %v4104
      %v4253 = vpop.f32.mrb[0].mxu0
      %v4254 = vadd.f32 %v4137, %v4253
      %v4255 = vpop.f32.mrb[0].mxu0
      %v4256 = vpop.f32.mrb[0].mxu0
      %v4257 = vadd.f32 %v4137, %v4256
      %v4258 = vpop.f32.mrb[0].mxu0
      %4259 = vmatprep.mubr.bf16.mxu0 0
      %4260 = vmatmul.mubr.bf16.gmra.mrb[0].mxu0 %v4105
      %v4261 = vpop.f32.mrb[0].mxu0
      %v4262 = vadd.f32 %v4137, %v4261
      %v4263 = vpop.f32.mrb[0].mxu0
      %v4264 = vpop.f32.mrb[0].mxu0
      %v4265 = vadd.f32 %v4137, %v4264
      %v4266 = vpop.f32.mrb[0].mxu0
      %4267 = vmatprep.mubr.bf16.mxu0 0
      %4268 = vmatmul.mubr.bf16.gmra.mrb[0].mxu0 %v4106
      %v4269 = vpop.f32.mrb[0].mxu0
      %v4270 = vadd.f32 %v4137, %v4269
      %v4271 = vpop.f32.mrb[0].mxu0
      %v4272 = vpop.f32.mrb[0].mxu0
      %v4273 = vadd.f32 %v4137, %v4272
      %v4274 = vpop.f32.mrb[0].mxu0
      %4275 = vmatprep.mubr.bf16.mxu0 0
      %4276 = vmatmul.mubr.bf16.gmra.mrb[0].mxu0 %v4107
      %v4277 = vpop.f32.mrb[0].mxu0
      %v4278 = vadd.f32 %v4137, %v4277
      %v4279 = vpop.f32.mrb[0].mxu0
      %v4280 = vpop.f32.mrb[0].mxu0
      %v4281 = vadd.f32 %v4137, %v4280
      %v4282 = vpop.f32.mrb[0].mxu0
      %4283 = vmatprep.mubr.bf16.mxu0 0
      %4284 = vmatmul.mubr.bf16.gmra.mrb[0].mxu0 %v4108
      %v4285 = vpop.f32.mrb[0].mxu0
      %v4286 = vadd.f32 %v4137, %v4285
      %v4287 = vpop.f32.mrb[0].mxu0
      %v4288 = vpop.f32.mrb[0].mxu0
      %v4289 = vadd.f32 %v4137, %v4288
      %v4290 = vpop.f32.mrb[0].mxu0
      %4291 = vmatprep.mubr.bf16.mxu0 0
      %4292 = vmatmul.mubr.bf16.gmra.mrb[0].mxu0 %v4109
      %v4293 = vpop.f32.mrb[0].mxu0
      %v4294 = vadd.f32 %v4137, %v4293
      %v4295 = vpop.f32.mrb[0].mxu0
      %v4296 = vpop.f32.mrb[0].mxu0
      %v4297 = vadd.f32 %v4137, %v4296
      %v4298 = vpop.f32.mrb[0].mxu0
      %4299 = vmatprep.mubr.bf16.mxu0 0
      %4300 = vmatmul.mubr.bf16.gmra.mrb[0].mxu0 %v4110
      %v4301 = vpop.f32.mrb[0].mxu0
      %v4302 = vadd.f32 %v4137, %v4301
      %v4303 = vpop.f32.mrb[0].mxu0
      %v4304 = vpop.f32.mrb[0].mxu0
      %v4305 = vadd.f32 %v4137, %v4304
      %v4306 = vpop.f32.mrb[0].mxu0
      %4307 = vmatprep.mubr.bf16.mxu0 0
      %4308 = vmatmul.mubr.bf16.gmra.mrb[0].mxu0 %v4111
      %v4309 = vpop.f32.mrb[0].mxu0
      %v4310 = vadd.f32 %v4137, %v4309
      %v4311 = vpop.f32.mrb[0].mxu0
      %v4312 = vpop.f32.mrb[0].mxu0
      %v4313 = vadd.f32 %v4137, %v4312
      %v4314 = vpop.f32.mrb[0].mxu0
      %4315 = vmatprep.mubr.bf16.mxu0 0
      %4316 = vmatmul.mubr.bf16.gmra.mrb[0].mxu0 %v4112
      %v4317 = vpop.f32.mrb[0].mxu0
      %v4318 = vadd.f32 %v4137, %v4317
      %v4319 = vpop.f32.mrb[0].mxu0
      %v4320 = vpop.f32.mrb[0].mxu0
      %v4321 = vadd.f32 %v4137, %v4320
      %v4322 = vpop.f32.mrb[0].mxu0
      %4323 = vmatprep.mubr.bf16.mxu0 0
      %4324 = vmatmul.mubr.bf16.gmra.mrb[0].mxu0 %v4113
      %v4325 = vpop.f32.mrb[0].mxu0
      %v4326 = vadd.f32 %v4137, %v4325
      %v4327 = vpop.f32.mrb[0].mxu0
      %v4328 = vpop.f32.mrb[0].mxu0
      %v4329 = vadd.f32 %v4137, %v4328
      %v4330 = vpop.f32.mrb[0].mxu0
      %4331 = vmatprep.mubr.bf16.mxu0 0
      %4332 = vmatmul.mubr.bf16.gmra.mrb[0].mxu0 %v4114
      %v4333 = vpop.f32.mrb[0].mxu0
      %v4334 = vadd.f32 %v4137, %v4333
      %v4335 = vpop.f32.mrb[0].mxu0
      %v4336 = vpop.f32.mrb[0].mxu0
      %v4337 = vadd.f32 %v4137, %v4336
      %v4338 = vpop.f32.mrb[0].mxu0
      %4339 = vmatprep.mubr.bf16.mxu0 0
      %4340 = vmatmul.mubr.bf16.gmra.mrb[0].mxu0 %v4115
      %v4341 = vpop.f32.mrb[0].mxu0
      %v4342 = vadd.f32 %v4137, %v4341
      %v4343 = vpop.f32.mrb[0].mxu0
      %v4344 = vpop.f32.mrb[0].mxu0
      %v4345 = vadd.f32 %v4137, %v4344
      %v4346 = vpop.f32.mrb[0].mxu0
      %4347 = vdwg.mxu0
      %v4348 = vld [vmem:[%s327] sm:$0xff]
      %v4349 = vld [vmem:[%s327 + $0x8] sm:$0xff]
      %v4350 = vld [vmem:[%s327 + $0x10] sm:$0xff]
      %v4351 = vld [vmem:[%s327 + $0x18] sm:$0xff]
      %v4352 = vld [vmem:[%s327 + $0x20] sm:$0xff]
      %v4353 = vld [vmem:[%s327 + $0x28] sm:$0xff]
      %v4354 = vld [vmem:[%s327 + $0x30] sm:$0xff]
      %v4355 = vld [vmem:[%s327 + $0x38] sm:$0xff]
      %v4356 = vld [vmem:[%s327 + $0x40] sm:$0xff]
      %v4357 = vld [vmem:[%s327 + $0x48] sm:$0xff]
      %v4358 = vld [vmem:[%s327 + $0x50] sm:$0xff]
      %v4359 = vld [vmem:[%s327 + $0x58] sm:$0xff]
      %v4360 = vld [vmem:[%s327 + $0x60] sm:$0xff]
      %v4361 = vld [vmem:[%s327 + $0x68] sm:$0xff]
      %v4362 = vld [vmem:[%s327 + $0x70] sm:$0xff]
      %v4363 = vld [vmem:[%s327 + $0x78] sm:$0xff]
      %v4364 = vld [vmem:[%s327 + $0x80] sm:$0xff]
      %v4365 = vld [vmem:[%s327 + $0x88] sm:$0xff]
      %v4366 = vld [vmem:[%s327 + $0x90] sm:$0xff]
      %v4367 = vld [vmem:[%s327 + $0x98] sm:$0xff]
      %v4368 = vld [vmem:[%s327 + $0xa0] sm:$0xff]
      %v4369 = vld [vmem:[%s327 + $0xa8] sm:$0xff]
      %v4370 = vld [vmem:[%s327 + $0xb0] sm:$0xff]
      %v4371 = vld [vmem:[%s327 + $0xb8] sm:$0xff]
      %v4372 = vld [vmem:[%s327 + $0xc0] sm:$0xff]
      %v4373 = vld [vmem:[%s327 + $0xc8] sm:$0xff]
      %v4374 = vld [vmem:[%s327 + $0xd0] sm:$0xff]
      %v4375 = vld [vmem:[%s327 + $0xd8] sm:$0xff]
      %v4376 = vld [vmem:[%s327 + $0xe0] sm:$0xff]
      %v4377 = vld [vmem:[%s327 + $0xe8] sm:$0xff]
      %v4378 = vld [vmem:[%s327 + $0xf0] sm:$0xff]
      %v4379 = vld [vmem:[%s327 + $0xf8] sm:$0xff]
      %v4380 = vadd.f32 %v4222, %v4348
      %v4381 = vadd.f32 %v4225, %v4349
      %v4382 = vadd.f32 %v4230, %v4350
      %v4383 = vadd.f32 %v4233, %v4351
      %v4384 = vadd.f32 %v4238, %v4352
      %v4385 = vadd.f32 %v4241, %v4353
      %v4386 = vadd.f32 %v4246, %v4354
      %v4387 = vadd.f32 %v4249, %v4355
      %v4388 = vadd.f32 %v4254, %v4356
      %v4389 = vadd.f32 %v4257, %v4357
      %v4390 = vadd.f32 %v4262, %v4358
      %v4391 = vadd.f32 %v4265, %v4359
      %v4392 = vadd.f32 %v4270, %v4360
      %v4393 = vadd.f32 %v4273, %v4361
      %v4394 = vadd.f32 %v4278, %v4362
      %v4395 = vadd.f32 %v4281, %v4363
      %v4396 = vadd.f32 %v4286, %v4364
      %v4397 = vadd.f32 %v4289, %v4365
      %v4398 = vadd.f32 %v4294, %v4366
      %v4399 = vadd.f32 %v4297, %v4367
      %v4400 = vadd.f32 %v4302, %v4368
      %v4401 = vadd.f32 %v4305, %v4369
      %v4402 = vadd.f32 %v4310, %v4370
      %v4403 = vadd.f32 %v4313, %v4371
      %v4404 = vadd.f32 %v4318, %v4372
      %v4405 = vadd.f32 %v4321, %v4373
      %v4406 = vadd.f32 %v4326, %v4374
      %v4407 = vadd.f32 %v4329, %v4375
      %v4408 = vadd.f32 %v4334, %v4376
      %v4409 = vadd.f32 %v4337, %v4377
      %v4410 = vadd.f32 %v4342, %v4378
      %v4411 = vadd.f32 %v4345, %v4379
      %v4412 = vmax.f32 %v4380, 0.0
      %v4413 = vmax.f32 %v4381, 0.0
      %v4414 = vmax.f32 %v4382, 0.0
      %v4415 = vmax.f32 %v4383, 0.0
      %v4416 = vmax.f32 %v4384, 0.0
      %v4417 = vmax.f32 %v4385, 0.0
      %v4418 = vmax.f32 %v4386, 0.0
      %v4419 = vmax.f32 %v4387, 0.0
      %v4420 = vmax.f32 %v4388, 0.0
      %v4421 = vmax.f32 %v4389, 0.0
      %v4422 = vmax.f32 %v4390, 0.0
      %v4423 = vmax.f32 %v4391, 0.0
      %v4424 = vmax.f32 %v4392, 0.0
      %v4425 = vmax.f32 %v4393, 0.0
      %v4426 = vmax.f32 %v4394, 0.0
      %v4427 = vmax.f32 %v4395, 0.0
      %v4428 = vmax.f32 %v4396, 0.0
      %v4429 = vmax.f32 %v4397, 0.0
      %v4430 = vmax.f32 %v4398, 0.0
      %v4431 = vmax.f32 %v4399, 0.0
      %v4432 = vmax.f32 %v4400, 0.0
      %v4433 = vmax.f32 %v4401, 0.0
      %v4434 = vmax.f32 %v4402, 0.0
      %v4435 = vmax.f32 %v4403, 0.0
      %v4436 = vmax.f32 %v4404, 0.0
      %v4437 = vmax.f32 %v4405, 0.0
      %v4438 = vmax.f32 %v4406, 0.0
      %v4439 = vmax.f32 %v4407, 0.0
      %v4440 = vmax.f32 %v4408, 0.0
      %v4441 = vmax.f32 %v4409, 0.0
      %v4442 = vmax.f32 %v4410, 0.0
      %v4443 = vmax.f32 %v4411, 0.0
      %4444 = vst [vmem:[%s332] sm:$0xff] %v4412
      %4445 = vst [vmem:[%s332 + $0x8] sm:$0xff] %v4413
      %4446 = vst [vmem:[%s332 + $0x10] sm:$0xff] %v4414
      %4447 = vst [vmem:[%s332 + $0x18] sm:$0xff] %v4415
      %4448 = vst [vmem:[%s332 + $0x20] sm:$0xff] %v4416
      %4449 = vst [vmem:[%s332 + $0x28] sm:$0xff] %v4417
      %4450 = vst [vmem:[%s332 + $0x30] sm:$0xff] %v4418
      %4451 = vst [vmem:[%s332 + $0x38] sm:$0xff] %v4419
      %4452 = vst [vmem:[%s332 + $0x40] sm:$0xff] %v4420
      %4453 = vst [vmem:[%s332 + $0x48] sm:$0xff] %v4421
      %4454 = vst [vmem:[%s332 + $0x50] sm:$0xff] %v4422
      %4455 = vst [vmem:[%s332 + $0x58] sm:$0xff] %v4423
      %4456 = vst [vmem:[%s332 + $0x60] sm:$0xff] %v4424
      %4457 = vst [vmem:[%s332 + $0x68] sm:$0xff] %v4425
      %4458 = vst [vmem:[%s332 + $0x70] sm:$0xff] %v4426
      %4459 = vst [vmem:[%s332 + $0x78] sm:$0xff] %v4427
      %4460 = vst [vmem:[%s332 + $0x80] sm:$0xff] %v4428
      %4461 = vst [vmem:[%s332 + $0x88] sm:$0xff] %v4429
      %4462 = vst [vmem:[%s332 + $0x90] sm:$0xff] %v4430
      %4463 = vst [vmem:[%s332 + $0x98] sm:$0xff] %v4431
      %4464 = vst [vmem:[%s332 + $0xa0] sm:$0xff] %v4432
      %4465 = vst [vmem:[%s332 + $0xa8] sm:$0xff] %v4433
      %4466 = vst [vmem:[%s332 + $0xb0] sm:$0xff] %v4434
      %4467 = vst [vmem:[%s332 + $0xb8] sm:$0xff] %v4435
      %4468 = vst [vmem:[%s332 + $0xc0] sm:$0xff] %v4436
      %4469 = vst [vmem:[%s332 + $0xc8] sm:$0xff] %v4437
      %4470 = vst [vmem:[%s332 + $0xd0] sm:$0xff] %v4438
      %4471 = vst [vmem:[%s332 + $0xd8] sm:$0xff] %v4439
      %4472 = vst [vmem:[%s332 + $0xe0] sm:$0xff] %v4440
      %4473 = vst [vmem:[%s332 + $0xe8] sm:$0xff] %v4441
      %4474 = vst [vmem:[%s332 + $0xf0] sm:$0xff] %v4442
      %4475 = vst [vmem:[%s332 + $0xf8] sm:$0xff] %v4443
      %p4476 = scmp.lt.s32.totalorder %s20, 1
      %s4477 = scalar_select %p4476, %s20, 1
      %s4478 = smul.addr %s4477, 32
      %s4479 = smul.addr %s4478, 8
      %s4480 = scalar_lea.vmem %s9, %s4479
      // Predicated region
      $region57: #{_forward_impl.1} parent=55 // pred_check
        %p4481 = pneg %p232
      $region58: #{_forward_impl.1} parent=55 // pred_check_branch
        %4483 = sbr.rel (%p4481) target = $region60
      $region59: #{_forward_impl.1} parent=55 // pred_region
        _
      $region60: #{_forward_impl.1} parent=55 // pred_fallthru
        _
    $region56: #{_forward_impl.1} parent=5 // pred_fallthru
      _
    %p4484 = scmp.le.s32.totalorder 2, %s15
    // Predicated region
    $region61: #{_forward_impl.1} parent=5 // pred_check
      %p4485 = pneg %p4484
    $region62: #{_forward_impl.1} parent=5 // pred_check_branch
      %4487 = sbr.rel (%p4485) target = $region64
    $region63: #{_forward_impl.1} parent=5 // pred_region
      %s4488 = ssub.s32 %s15, 2
      // Predicated region
      $region65: #{_forward_impl.1} parent=63 // pred_check
        %p4489 = pneg %p238
      $region66: #{_forward_impl.1} parent=63 // pred_check_branch
        %4491 = sbr.rel (%p4489) target = $region68
      $region67: #{_forward_impl.1} parent=63 // pred_region
        %p4492 = scmp.lt.s32.totalorder %s21, 1
        %s4493 = scalar_select %p4492, %s21, 1
        %s4494 = smul.addr %s4493, 32
        %s4495 = smul.addr %s4494, 8
        %s4496 = scalar_lea.vmem %s9, %s4495
      $region68: #{_forward_impl.1} parent=63 // pred_fallthru
        _
    $region64: #{_forward_impl.1} parent=5 // pred_fallthru
      _
  $region6: #{_forward_impl.1} parent=0 // loop_footer
    %s19 = sadd.s32 1, %s15
  $region7: #{_forward_impl.1} parent=0 // loop_footer_branch
    %14 = sbr.rel target = $region3
  $region8: #{_forward_impl.1} parent=0 // loop_exit
    _

</llo_original>
